<compile_context>
chip_gen: v7x
topology: tpu7x:2x2x1
jax: 0.10.0
libtpu: 0.0.40
codegen_flags: <defaults>
</compile_context>

<pallas_src>
import jax
import jax.numpy as jnp
from jax.experimental import pallas as pl
from jax.experimental.pallas import tpu as pltpu


def _sigmoid(x):
    # One EUP op (tanh) + cheap VPU FMA, instead of exp + full-precision divide.
    return 0.5 * (jnp.tanh(0.5 * x) + 1.0)


def tree_lstm_kernel(lh_ref, rh_ref, lc_ref, rc_ref, wl_ref, wr_ref, b_ref,
                     h_ref, c_ref):
    D = lh_ref.shape[-1]
    mm_dtype = wl_ref.dtype            # bf16 fast path or f32 reference path

    lh = lh_ref[...].astype(mm_dtype)  # no-op when states are stored in bf16
    rh = rh_ref[...].astype(mm_dtype)

    # Two accumulating MXU pushes replace concat([lh, rh]) @ W.T.
    z = (jnp.dot(lh, wl_ref[...], preferred_element_type=jnp.float32)
         + jnp.dot(rh, wr_ref[...], preferred_element_type=jnp.float32)
         + b_ref[...])

    # chunk(5, -1): vreg/lane aligned when D is a multiple of 128 (demo case).
    a  = z[:, 0 * D:1 * D]
    i  = z[:, 1 * D:2 * D]
    f1 = z[:, 2 * D:3 * D]
    f2 = z[:, 3 * D:4 * D]
    o  = z[:, 4 * D:5 * D]

    # Epilogue entirely in f32 (c is the recurrent state; also keeps v5e happy).
    c = (jnp.tanh(a) * _sigmoid(i)
         + _sigmoid(f1) * lc_ref[...].astype(jnp.float32)
         + _sigmoid(f2) * rc_ref[...].astype(jnp.float32))
    h = _sigmoid(o) * jnp.tanh(c)

    h_ref[...] = h.astype(h_ref.dtype)
    c_ref[...] = c.astype(c_ref.dtype)


def prepare_params(weight, bias, matmul_dtype=jnp.bfloat16):
    """One-time ("at init") param prep: transpose + split the PyTorch Linear
    weight (5D, 2D) into the left-h and right-h halves (each (D, 5D)), reshape
    bias to (1, 5D). bf16 weights by default: they are VMEM-resident and the
    matmul accumulates in f32, so this is bandwidth/VMEM headroom for free."""
    D5, D2 = weight.shape
    D = D2 // 2
    wt = weight.T                                  # (2D, 5D)
    wl = wt[:D, :].astype(matmul_dtype)            # multiplies left_h
    wr = wt[D:, :].astype(matmul_dtype)            # multiplies right_h
    b = bias.reshape(1, D5).astype(jnp.float32)
    return wl, wr, b


def _round_up(x, m):
    return (x + m - 1) // m * m


def tree_lstm_forward(right_h, right_c, left_h, left_c, params, *, block_b=512):
    """Batched TreeLSTM cell. right_h/right_c/left_h/left_c are (B, D) (h
    states may be bf16, c states should stay f32); params from prepare_params.
    Returns (h, c): h in left_h.dtype, c in left_c.dtype, each (B, D).

    No input padding / output slicing: grid = cdiv(B, TB); the tail block's
    out-of-range rows read unspecified data and are never written back. Rows
    are independent, so this is safe (keep that invariant)."""
    wl, wr, b = params
    B, D = left_h.shape

    # Row block: multiple of 8, capped by block_b and by the (8-rounded) batch.
    TB = min(block_b, _round_up(B, 8))
    TB = max(8, (TB // 8) * 8)
    grid = (pl.cdiv(B, TB),)   # prefer an even step count so v7x's 2 TCs split it

    row_spec = pl.BlockSpec((TB, D), lambda i: (i, 0))
    # Constant index_maps -> weights/bias DMA'd once, VMEM-resident for the grid.
    wl_spec = pl.BlockSpec(wl.shape, lambda i: (0, 0))
    wr_spec = pl.BlockSpec(wr.shape, lambda i: (0, 0))
    b_spec = pl.BlockSpec(b.shape, lambda i: (0, 0))

    h, c = pl.pallas_call(
        tree_lstm_kernel,
        out_shape=(
            jax.ShapeDtypeStruct((B, D), left_h.dtype),
            jax.ShapeDtypeStruct((B, D), left_c.dtype),
        ),
        grid=grid,
        in_specs=[row_spec, row_spec, row_spec, row_spec,
                  wl_spec, wr_spec, b_spec],
        out_specs=(row_spec, row_spec),
        compiler_params=pltpu.CompilerParams(
            dimension_semantics=("parallel",)),
    )(left_h, right_h, left_c, right_c, wl, wr, b)
    return h, c


def tree_lstm_reference(right_h, right_c, left_h, left_c, weight, bias):
    x = jnp.concatenate([left_h, right_h], axis=-1)
    z = jnp.dot(x, weight.T, precision=jax.lax.Precision.HIGHEST) + bias
    a, i, f1, f2, o = jnp.split(z, 5, axis=-1)
    c = (jnp.tanh(a) * jax.nn.sigmoid(i)
         + jax.nn.sigmoid(f1) * left_c
         + jax.nn.sigmoid(f2) * right_c)
    h = jax.nn.sigmoid(o) * jnp.tanh(c)
    return h, c


def _make_inputs(B, D, key):
    k1, k2, k3, k4, kw, kb = jax.random.split(key, 6)
    right_h = jax.random.normal(k1, (B, D), jnp.float32)
    right_c = jax.random.normal(k2, (B, D), jnp.float32)
    left_h = jax.random.normal(k3, (B, D), jnp.float32)
    left_c = jax.random.normal(k4, (B, D), jnp.float32)
    # Deterministic Linear(state*2, state*5) init (PyTorch-style uniform bound).
    bound = 1.0 / jnp.sqrt(2.0 * D)
    weight = jax.random.uniform(kw, (5 * D, 2 * D), jnp.float32, -bound, bound)
    bias = jax.random.uniform(kb, (5 * D,), jnp.float32, -bound, bound)
    return right_h, right_c, left_h, left_c, weight, bias


if __name__ == "__main__":
    key = jax.random.PRNGKey(0)

    # ---- Case 1: batched nodes, f32 path, non-divisible B (tail-block path),
    #      grid=(4,) so both v7x TCs get work and the pipeline has steps. ----
    B, D = 1000, 128
    rh, rc, lh, lc, W, bb = _make_inputs(B, D, key)
    h_ref, c_ref = tree_lstm_reference(rh, rc, lh, lc, W, bb)

    params_f32 = prepare_params(W, bb, matmul_dtype=jnp.float32)
    h, c = tree_lstm_forward(rh, rc, lh, lc, params_f32, block_b=256)
    jax.block_until_ready((h, c))
    assert h.shape == (B, D) and c.shape == (B, D)
    assert jnp.allclose(h, h_ref, atol=1e-4, rtol=1e-4)
    assert jnp.allclose(c, c_ref, atol=1e-4, rtol=1e-4)

    # ---- Case 2: bandwidth fast path (v6e/v7x): bf16 HBM storage of the
    #      streamed h-states and h output, bf16 weights; c stays f32. ----
    params_bf16 = prepare_params(W, bb, matmul_dtype=jnp.bfloat16)
    rh16 = rh.astype(jnp.bfloat16)
    lh16 = lh.astype(jnp.bfloat16)
    h16, c16 = tree_lstm_forward(rh16, rc, lh16, lc, params_bf16, block_b=512)
    jax.block_until_ready((h16, c16))
    assert h16.dtype == jnp.bfloat16 and c16.dtype == jnp.float32
    assert jnp.allclose(h16.astype(jnp.float32), h_ref, atol=5e-2, rtol=5e-2)
    assert jnp.allclose(c16, c_ref, atol=5e-2, rtol=5e-2)

    # ---- Case 3: original tiny per-node shape still works (generic D). ----
    # (Correct but not a performance path: D<128 means masked partial stores.)
    B2, D2 = 8, 32
    rh2, rc2, lh2, lc2, W2, b2 = _make_inputs(B2, D2, jax.random.PRNGKey(1))
    params2 = prepare_params(W2, b2, matmul_dtype=jnp.float32)
    h2, c2 = tree_lstm_forward(rh2, rc2, lh2, lc2, params2)
    jax.block_until_ready((h2, c2))
    h2_ref, c2_ref = tree_lstm_reference(rh2, rc2, lh2, lc2, W2, b2)
    assert jnp.allclose(h2, h2_ref, atol=1e-4, rtol=1e-4)
    assert jnp.allclose(c2, c2_ref, atol=1e-4, rtol=1e-4)

    print("KERNEL_OK")
</pallas_src>

<mosaic_0001>
module attributes {stable_mosaic.version = 11 : i64} {
  func.func @tree_lstm_kernel(%arg0: i32, %arg1: memref<256x128xf32, #tpu.memory_space<vmem>>, %arg2: memref<256x128xf32, #tpu.memory_space<vmem>>, %arg3: memref<256x128xf32, #tpu.memory_space<vmem>>, %arg4: memref<256x128xf32, #tpu.memory_space<vmem>>, %arg5: memref<128x640xf32, #tpu.memory_space<vmem>>, %arg6: memref<128x640xf32, #tpu.memory_space<vmem>>, %arg7: memref<1x640xf32, #tpu.memory_space<vmem>>, %arg8: memref<256x128xf32, #tpu.memory_space<vmem>>, %arg9: memref<256x128xf32, #tpu.memory_space<vmem>>) attributes {dimension_semantics = [#tpu.dimension_semantics<parallel>], iteration_bounds = array<i64: 4>, scalar_prefetch = 0 : i64, scratch_operands = 0 : i64, tpu.core_type = #tpu.core_type<tc>, window_params = [{transform_indices = @transform_0, window_bounds = array<i64: 256, 128>}, {transform_indices = @transform_1, window_bounds = array<i64: 256, 128>}, {transform_indices = @transform_2, window_bounds = array<i64: 256, 128>}, {transform_indices = @transform_3, window_bounds = array<i64: 256, 128>}, {pipeline_mode = #tpu.pipeline_mode<synchronous>, transform_indices = @transform_4, window_bounds = array<i64: 128, 640>}, {pipeline_mode = #tpu.pipeline_mode<synchronous>, transform_indices = @transform_5, window_bounds = array<i64: 128, 640>}, {pipeline_mode = #tpu.pipeline_mode<synchronous>, transform_indices = @transform_6, window_bounds = array<i64: 1, 640>}, {transform_indices = @transform_7, window_bounds = array<i64: 256, 128>}, {transform_indices = @transform_8, window_bounds = array<i64: 256, 128>}]} {
    %c0 = arith.constant 0 : index
    %c0_0 = arith.constant 0 : index
    %0 = vector.load %arg1[%c0, %c0_0] : memref<256x128xf32, #tpu.memory_space<vmem>>, vector<256x128xf32>
    %c0_1 = arith.constant 0 : index
    %c0_2 = arith.constant 0 : index
    %1 = vector.load %arg2[%c0_1, %c0_2] : memref<256x128xf32, #tpu.memory_space<vmem>>, vector<256x128xf32>
    %c0_3 = arith.constant 0 : index
    %c0_4 = arith.constant 0 : index
    %2 = vector.load %arg5[%c0_3, %c0_4] : memref<128x640xf32, #tpu.memory_space<vmem>>, vector<128x640xf32>
    %cst = arith.constant dense<0.000000e+00> : vector<256x640xf32>
    %3 = tpu.matmul %0, %2, %cst {dimension_numbers = #tpu.dot_dimension_numbers<[1], [0], [0], [1], [0, 0, 1, 1], [], []>} : vector<256x128xf32>, vector<128x640xf32>, vector<256x640xf32> -> vector<256x640xf32>
    %c0_5 = arith.constant 0 : index
    %c0_6 = arith.constant 0 : index
    %4 = vector.load %arg6[%c0_5, %c0_6] : memref<128x640xf32, #tpu.memory_space<vmem>>, vector<128x640xf32>
    %cst_7 = arith.constant dense<0.000000e+00> : vector<256x640xf32>
    %5 = tpu.matmul %1, %4, %cst_7 {dimension_numbers = #tpu.dot_dimension_numbers<[1], [0], [0], [1], [0, 0, 1, 1], [], []>} : vector<256x128xf32>, vector<128x640xf32>, vector<256x640xf32> -> vector<256x640xf32>
    %6 = arith.addf %3, %5 : vector<256x640xf32>
    %c0_8 = arith.constant 0 : index
    %c0_9 = arith.constant 0 : index
    %7 = vector.load %arg7[%c0_8, %c0_9] : memref<1x640xf32, #tpu.memory_space<vmem>>, vector<1x640xf32>
    %8 = vector.broadcast %7 : vector<1x640xf32> to vector<256x640xf32>
    %9 = arith.addf %6, %8 : vector<256x640xf32>
    %10 = vector.extract_strided_slice %9 {offsets = [0, 0], sizes = [256, 128], strides = [1, 1]} : vector<256x640xf32> to vector<256x128xf32>
    %11 = vector.extract_strided_slice %9 {offsets = [0, 128], sizes = [256, 128], strides = [1, 1]} : vector<256x640xf32> to vector<256x128xf32>
    %12 = vector.extract_strided_slice %9 {offsets = [0, 256], sizes = [256, 128], strides = [1, 1]} : vector<256x640xf32> to vector<256x128xf32>
    %13 = vector.extract_strided_slice %9 {offsets = [0, 384], sizes = [256, 128], strides = [1, 1]} : vector<256x640xf32> to vector<256x128xf32>
    %14 = vector.extract_strided_slice %9 {offsets = [0, 512], sizes = [256, 128], strides = [1, 1]} : vector<256x640xf32> to vector<256x128xf32>
    %15 = math.tanh %10 : vector<256x128xf32>
    %cst_10 = arith.constant 5.000000e-01 : f32
    %16 = vector.broadcast %cst_10 : f32 to vector<256x128xf32>
    %17 = arith.mulf %16, %11 : vector<256x128xf32>
    %18 = math.tanh %17 : vector<256x128xf32>
    %cst_11 = arith.constant 1.000000e+00 : f32
    %19 = vector.broadcast %cst_11 : f32 to vector<256x128xf32>
    %20 = arith.addf %18, %19 : vector<256x128xf32>
    %cst_12 = arith.constant 5.000000e-01 : f32
    %21 = vector.broadcast %cst_12 : f32 to vector<256x128xf32>
    %22 = arith.mulf %21, %20 : vector<256x128xf32>
    %23 = arith.mulf %15, %22 : vector<256x128xf32>
    %cst_13 = arith.constant 5.000000e-01 : f32
    %24 = vector.broadcast %cst_13 : f32 to vector<256x128xf32>
    %25 = arith.mulf %24, %12 : vector<256x128xf32>
    %26 = math.tanh %25 : vector<256x128xf32>
    %cst_14 = arith.constant 1.000000e+00 : f32
    %27 = vector.broadcast %cst_14 : f32 to vector<256x128xf32>
    %28 = arith.addf %26, %27 : vector<256x128xf32>
    %cst_15 = arith.constant 5.000000e-01 : f32
    %29 = vector.broadcast %cst_15 : f32 to vector<256x128xf32>
    %30 = arith.mulf %29, %28 : vector<256x128xf32>
    %c0_16 = arith.constant 0 : index
    %c0_17 = arith.constant 0 : index
    %31 = vector.load %arg3[%c0_16, %c0_17] : memref<256x128xf32, #tpu.memory_space<vmem>>, vector<256x128xf32>
    %32 = arith.mulf %30, %31 : vector<256x128xf32>
    %33 = arith.addf %23, %32 : vector<256x128xf32>
    %cst_18 = arith.constant 5.000000e-01 : f32
    %34 = vector.broadcast %cst_18 : f32 to vector<256x128xf32>
    %35 = arith.mulf %34, %13 : vector<256x128xf32>
    %36 = math.tanh %35 : vector<256x128xf32>
    %cst_19 = arith.constant 1.000000e+00 : f32
    %37 = vector.broadcast %cst_19 : f32 to vector<256x128xf32>
    %38 = arith.addf %36, %37 : vector<256x128xf32>
    %cst_20 = arith.constant 5.000000e-01 : f32
    %39 = vector.broadcast %cst_20 : f32 to vector<256x128xf32>
    %40 = arith.mulf %39, %38 : vector<256x128xf32>
    %c0_21 = arith.constant 0 : index
    %c0_22 = arith.constant 0 : index
    %41 = vector.load %arg4[%c0_21, %c0_22] : memref<256x128xf32, #tpu.memory_space<vmem>>, vector<256x128xf32>
    %42 = arith.mulf %40, %41 : vector<256x128xf32>
    %43 = arith.addf %33, %42 : vector<256x128xf32>
    %cst_23 = arith.constant 5.000000e-01 : f32
    %44 = vector.broadcast %cst_23 : f32 to vector<256x128xf32>
    %45 = arith.mulf %44, %14 : vector<256x128xf32>
    %46 = math.tanh %45 : vector<256x128xf32>
    %cst_24 = arith.constant 1.000000e+00 : f32
    %47 = vector.broadcast %cst_24 : f32 to vector<256x128xf32>
    %48 = arith.addf %46, %47 : vector<256x128xf32>
    %cst_25 = arith.constant 5.000000e-01 : f32
    %49 = vector.broadcast %cst_25 : f32 to vector<256x128xf32>
    %50 = arith.mulf %49, %48 : vector<256x128xf32>
    %51 = math.tanh %43 : vector<256x128xf32>
    %52 = arith.mulf %50, %51 : vector<256x128xf32>
    %c0_26 = arith.constant 0 : index
    %c0_27 = arith.constant 0 : index
    %53 = vector.load %arg8[%c0_26, %c0_27] : memref<256x128xf32, #tpu.memory_space<vmem>>, vector<256x128xf32>
    tpu.vector_store %arg8[%c0_26, %c0_27], %52 {strides = array<i32>} : memref<256x128xf32, #tpu.memory_space<vmem>>, vector<256x128xf32>,
    %c0_28 = arith.constant 0 : index
    %c0_29 = arith.constant 0 : index
    %54 = vector.load %arg9[%c0_28, %c0_29] : memref<256x128xf32, #tpu.memory_space<vmem>>, vector<256x128xf32>
    tpu.vector_store %arg9[%c0_28, %c0_29], %43 {strides = array<i32>} : memref<256x128xf32, #tpu.memory_space<vmem>>, vector<256x128xf32>,
    return
  }
  func.func @transform_0(%arg0: i32) -> (i32, i32) {
    %c0_i32 = arith.constant 0 : i32
    %c0_i32_0 = arith.constant 0 : i32
    return %arg0, %c0_i32 : i32, i32
  }
  func.func @transform_1(%arg0: i32) -> (i32, i32) {
    %c0_i32 = arith.constant 0 : i32
    %c0_i32_0 = arith.constant 0 : i32
    return %arg0, %c0_i32 : i32, i32
  }
  func.func @transform_2(%arg0: i32) -> (i32, i32) {
    %c0_i32 = arith.constant 0 : i32
    %c0_i32_0 = arith.constant 0 : i32
    return %arg0, %c0_i32 : i32, i32
  }
  func.func @transform_3(%arg0: i32) -> (i32, i32) {
    %c0_i32 = arith.constant 0 : i32
    %c0_i32_0 = arith.constant 0 : i32
    return %arg0, %c0_i32 : i32, i32
  }
  func.func @transform_4(%arg0: i32) -> (i32, i32) {
    %c0_i32 = arith.constant 0 : i32
    %c0_i32_0 = arith.constant 0 : i32
    %c0_i32_1 = arith.constant 0 : i32
    return %c0_i32, %c0_i32_0 : i32, i32
  }
  func.func @transform_5(%arg0: i32) -> (i32, i32) {
    %c0_i32 = arith.constant 0 : i32
    %c0_i32_0 = arith.constant 0 : i32
    %c0_i32_1 = arith.constant 0 : i32
    return %c0_i32, %c0_i32_0 : i32, i32
  }
  func.func @transform_6(%arg0: i32) -> (i32, i32) {
    %c0_i32 = arith.constant 0 : i32
    %c0_i32_0 = arith.constant 0 : i32
    %c0_i32_1 = arith.constant 0 : i32
    return %c0_i32, %c0_i32_0 : i32, i32
  }
  func.func @transform_7(%arg0: i32) -> (i32, i32) {
    %c0_i32 = arith.constant 0 : i32
    %c0_i32_0 = arith.constant 0 : i32
    return %arg0, %c0_i32 : i32, i32
  }
  func.func @transform_8(%arg0: i32) -> (i32, i32) {
    %c0_i32 = arith.constant 0 : i32
    %c0_i32_0 = arith.constant 0 : i32
    return %arg0, %c0_i32 : i32, i32
  }
}

</mosaic_0001>

<llo_original>
// kernel: tpu_custom_call.1
$region0: #{tpu_custom_call.1}
  #allocation0 [shape = 'u32[]', space=smem, size = 0x4, offset = 0x4, fixed_abs, tag = 'smem constant byte address 0x4 - core index']
  #allocation1 [shape = 'u32[144,128]{1,0:T(1,128)}', space=vmem, size = 0x12000, scoped, tag = 'internal scratch']
  %s0 = inlined_call_operand.hbm [shape: f32[1000,128], index: 0, kind: input, shape index: {}]
  %s1 = inlined_call_operand.hbm [shape: f32[1000,128], index: 1, kind: input, shape index: {}]
  %s2 = inlined_call_operand.hbm [shape: f32[1000,128], index: 2, kind: input, shape index: {}]
  %s3 = inlined_call_operand.hbm [shape: f32[1000,128], index: 3, kind: input, shape index: {}]
  %s4 = inlined_call_operand.hbm [shape: f32[128,640], index: 4, kind: input, shape index: {}]
  %s5 = inlined_call_operand.hbm [shape: f32[128,640], index: 5, kind: input, shape index: {}]
  %s6 = inlined_call_operand.vmem [shape: f32[1,640], index: 6, kind: input, shape index: {}]
  %s7 = inlined_call_operand.hbm [shape: f32[1000,128], index: 7, kind: output, shape index: {0}]
  %s8 = inlined_call_operand.hbm [shape: f32[1000,128], index: 8, kind: output, shape index: {1}]
  %9 = xla_tuple %s7, %s8
  %s10 = sld [smem:[#allocation0]]
  $region93: #{tpu_custom_call.1} parent=0
    _
  %s12 = ssub.s32 1, %s10
  %s13 = scalar_select 0, %s12, %s10
  $region1: #{tpu_custom_call.1} parent=0
    #allocation2 [shape = 'u8[262144]{0}', space=vmem, size = 0x40000, scoped, tag = 'input window, operand 0']
    #allocation3 [shape = 's32[2]{0}', space=sflag, size = 0x8, scoped, tag = 'scoped memory for tpu_custom_call.1']
    #allocation4 [shape = 's32[2]{0}', space=sflag, size = 0x8, scoped, tag = 'scoped memory for tpu_custom_call.1']
    #allocation5 [shape = 'u8[262144]{0}', space=vmem, size = 0x40000, scoped, tag = 'input window, operand 1']
    #allocation6 [shape = 's32[2]{0}', space=sflag, size = 0x8, scoped, tag = 'scoped memory for tpu_custom_call.1']
    #allocation7 [shape = 'u8[262144]{0}', space=vmem, size = 0x40000, scoped, tag = 'input window, operand 2']
    #allocation8 [shape = 'u8[262144]{0}', space=vmem, size = 0x40000, scoped, tag = 'input window, operand 3']
    #allocation9 [shape = 's32[2]{0}', space=sflag, size = 0x8, scoped, tag = 'scoped memory for tpu_custom_call.1']
    #allocation10 [shape = 'u8[327680]{0}', space=vmem, size = 0x50000, scoped, tag = 'input window, operand 4, single buffered']
    #allocation11 [shape = 'u8[327680]{0}', space=vmem, size = 0x50000, scoped, tag = 'input window, operand 5, single buffered']
    #allocation12 [shape = 's32[1]{0}', space=sflag, size = 0x4, scoped, tag = 'scoped memory for tpu_custom_call.1']
    #allocation13 [shape = 'u8[262144]{0}', space=vmem, size = 0x40000, scoped, tag = 'output window, operand 0']
    #allocation14 [shape = 'u8[262144]{0}', space=vmem, size = 0x40000, scoped, tag = 'output window, operand 1']
    #allocation15 [shape = 's32[2]{0}', space=sflag, size = 0x8, scoped, tag = 'scoped memory for tpu_custom_call.1']
    %14 = vsyncpa [#allocation3], 0
    %s15 = scalar_lea.sflag [#allocation3], 1
    %16 = vsyncpa %s15, 0
    %17 = vsyncpa [#allocation6], 0
    %s18 = scalar_lea.sflag [#allocation6], 1
    %19 = vsyncpa %s18, 0
    %20 = vsyncpa [#allocation9], 0
    %s21 = scalar_lea.sflag [#allocation9], 1
    %22 = vsyncpa %s21, 0
    %23 = vsyncpa [#allocation12], 0
    %24 = vsyncpa [#allocation4], 0
    %s25 = scalar_lea.sflag [#allocation4], 1
    %26 = vsyncpa %s25, 0
    %27 = vsyncpa [#allocation15], 0
    %s28 = scalar_lea.sflag [#allocation15], 1
    %29 = vsyncpa %s28, 0
    loop: start=0, step=1, limit=6
    $region2: #{tpu_custom_call.1} parent=1 // loop_pre_header
      _
    $region3: #{tpu_custom_call.1} parent=1 // loop_header
      %s31 = sphi 0, %s35
      %p32 = scmp.ge.s32.totalorder %s31, 6
      %s41 = sphi 0, %s43
      %s44 = sphi 0, %s41
      %s45 = sphi 0, %s44
      %s61 = sphi 0, %s45
      %s67 = sphi 0, %s69
      %s70 = sphi 0, %s67
      %s71 = sphi 0, %s70
      %s87 = sphi 0, %s71
      %s93 = sphi 0, %s95
      %s96 = sphi 0, %s93
      %s97 = sphi 0, %s96
      %s113 = sphi 0, %s97
      %s119 = sphi 0, %s121
      %s122 = sphi 0, %s119
      %s123 = sphi 0, %s122
      %s139 = sphi 0, %s123
      %s143 = sphi 0, %s143
      %s145 = sphi 0, %s143
      %s146 = sphi 0, %s145
      %s160 = sphi 0, %s146
      %s164 = sphi 0, %s164
      %s166 = sphi 0, %s164
      %s167 = sphi 0, %s166
      %s181 = sphi 0, %s167
      %s185 = sphi 0, %s185
      %s187 = sphi 0, %s185
      %s188 = sphi 0, %s187
      %s202 = sphi 0, %s188
      %s208 = sphi 0, %s210
      %s211 = sphi 0, %s208
      %s212 = sphi 0, %s211
      %s228 = sphi 0, %s212
      %s234 = sphi 0, %s236
      %s237 = sphi 0, %s234
      %s238 = sphi 0, %s237
      %s254 = sphi 0, %s238
    $region4: #{tpu_custom_call.1} parent=1 // loop_header_branch
      %34 = sbr.rel (%p32) target = $region8
    $region5: #{tpu_custom_call.1} parent=1 // loop_body
      %s36 = ssub.s32 %s31, 1
      %s37 = ssub.s32 %s31, 2
      %s38 = sadd.s32 %s31, 1
      %s39 = ssub.s32 %s31, %s38
      %p40 = scmp.eq.s32.totalorder %s39, 0
      %s42 = sadd.s32 %s41, 1
      %s43 = scalar_select %p40, %s41, %s42
      %p46 = pneg %p40
      %p47 = scmp.eq.s32.totalorder %s31, 3
      %p48 = por %p46, %p47
      %p49 = scmp.ne.s32.totalorder %s41, %s44
      %p50 = scmp.eq.s32.totalorder %s31, 0
      %p51 = por %p49, %p50
      %p52 = scmp.ne.s32.totalorder %s41, %s44
      %p53 = scmp.eq.s32.totalorder %s36, 3
      %p54 = por %p52, %p53
      %p55 = scmp.ne.s32.totalorder %s44, %s45
      %p56 = scmp.eq.s32.totalorder %s36, 0
      %p57 = por %p55, %p56
      %p58 = scmp.ne.s32.totalorder %s44, %s45
      %p59 = scmp.eq.s32.totalorder %s37, 3
      %p60 = por %p58, %p59
      %p62 = scmp.ne.s32.totalorder %s45, %s61
      %p63 = scmp.eq.s32.totalorder %s37, 0
      %p64 = por %p62, %p63
      %s65 = ssub.s32 %s31, %s38
      %p66 = scmp.eq.s32.totalorder %s65, 0
      %s68 = sadd.s32 %s67, 1
      %s69 = scalar_select %p66, %s67, %s68
      %p72 = pneg %p66
      %p73 = scmp.eq.s32.totalorder %s31, 3
      %p74 = por %p72, %p73
      %p75 = scmp.ne.s32.totalorder %s67, %s70
      %p76 = scmp.eq.s32.totalorder %s31, 0
      %p77 = por %p75, %p76
      %p78 = scmp.ne.s32.totalorder %s67, %s70
      %p79 = scmp.eq.s32.totalorder %s36, 3
      %p80 = por %p78, %p79
      %p81 = scmp.ne.s32.totalorder %s70, %s71
      %p82 = scmp.eq.s32.totalorder %s36, 0
      %p83 = por %p81, %p82
      %p84 = scmp.ne.s32.totalorder %s70, %s71
      %p85 = scmp.eq.s32.totalorder %s37, 3
      %p86 = por %p84, %p85
      %p88 = scmp.ne.s32.totalorder %s71, %s87
      %p89 = scmp.eq.s32.totalorder %s37, 0
      %p90 = por %p88, %p89
      %s91 = ssub.s32 %s31, %s38
      %p92 = scmp.eq.s32.totalorder %s91, 0
      %s94 = sadd.s32 %s93, 1
      %s95 = scalar_select %p92, %s93, %s94
      %p98 = pneg %p92
      %p99 = scmp.eq.s32.totalorder %s31, 3
      %p100 = por %p98, %p99
      %p101 = scmp.ne.s32.totalorder %s93, %s96
      %p102 = scmp.eq.s32.totalorder %s31, 0
      %p103 = por %p101, %p102
      %p104 = scmp.ne.s32.totalorder %s93, %s96
      %p105 = scmp.eq.s32.totalorder %s36, 3
      %p106 = por %p104, %p105
      %p107 = scmp.ne.s32.totalorder %s96, %s97
      %p108 = scmp.eq.s32.totalorder %s36, 0
      %p109 = por %p107, %p108
      %p110 = scmp.ne.s32.totalorder %s96, %s97
      %p111 = scmp.eq.s32.totalorder %s37, 3
      %p112 = por %p110, %p111
      %p114 = scmp.ne.s32.totalorder %s97, %s113
      %p115 = scmp.eq.s32.totalorder %s37, 0
      %p116 = por %p114, %p115
      %s117 = ssub.s32 %s31, %s38
      %p118 = scmp.eq.s32.totalorder %s117, 0
      %s120 = sadd.s32 %s119, 1
      %s121 = scalar_select %p118, %s119, %s120
      %p124 = pneg %p118
      %p125 = scmp.eq.s32.totalorder %s31, 3
      %p126 = por %p124, %p125
      %p127 = scmp.ne.s32.totalorder %s119, %s122
      %p128 = scmp.eq.s32.totalorder %s31, 0
      %p129 = por %p127, %p128
      %p130 = scmp.ne.s32.totalorder %s119, %s122
      %p131 = scmp.eq.s32.totalorder %s36, 3
      %p132 = por %p130, %p131
      %p133 = scmp.ne.s32.totalorder %s122, %s123
      %p134 = scmp.eq.s32.totalorder %s36, 0
      %p135 = por %p133, %p134
      %p136 = scmp.ne.s32.totalorder %s122, %s123
      %p137 = scmp.eq.s32.totalorder %s37, 3
      %p138 = por %p136, %p137
      %p140 = scmp.ne.s32.totalorder %s123, %s139
      %p141 = scmp.eq.s32.totalorder %s37, 0
      %p142 = por %p140, %p141
      %s144 = sadd.s32 %s143, 1
      %p147 = scmp.eq.s32.totalorder %s31, 3
      %p148 = scmp.ne.s32.totalorder %s143, %s145
      %p149 = scmp.eq.s32.totalorder %s31, 0
      %p150 = por %p148, %p149
      %p151 = scmp.ne.s32.totalorder %s143, %s145
      %p152 = scmp.eq.s32.totalorder %s36, 3
      %p153 = por %p151, %p152
      %p154 = scmp.ne.s32.totalorder %s145, %s146
      %p155 = scmp.eq.s32.totalorder %s36, 0
      %p156 = por %p154, %p155
      %p157 = scmp.ne.s32.totalorder %s145, %s146
      %p158 = scmp.eq.s32.totalorder %s37, 3
      %p159 = por %p157, %p158
      %p161 = scmp.ne.s32.totalorder %s146, %s160
      %p162 = scmp.eq.s32.totalorder %s37, 0
      %p163 = por %p161, %p162
      %s165 = sadd.s32 %s164, 1
      %p168 = scmp.eq.s32.totalorder %s31, 3
      %p169 = scmp.ne.s32.totalorder %s164, %s166
      %p170 = scmp.eq.s32.totalorder %s31, 0
      %p171 = por %p169, %p170
      %p172 = scmp.ne.s32.totalorder %s164, %s166
      %p173 = scmp.eq.s32.totalorder %s36, 3
      %p174 = por %p172, %p173
      %p175 = scmp.ne.s32.totalorder %s166, %s167
      %p176 = scmp.eq.s32.totalorder %s36, 0
      %p177 = por %p175, %p176
      %p178 = scmp.ne.s32.totalorder %s166, %s167
      %p179 = scmp.eq.s32.totalorder %s37, 3
      %p180 = por %p178, %p179
      %p182 = scmp.ne.s32.totalorder %s167, %s181
      %p183 = scmp.eq.s32.totalorder %s37, 0
      %p184 = por %p182, %p183
      %s186 = sadd.s32 %s185, 1
      %p189 = scmp.eq.s32.totalorder %s31, 3
      %p190 = scmp.ne.s32.totalorder %s185, %s187
      %p191 = scmp.eq.s32.totalorder %s31, 0
      %p192 = por %p190, %p191
      %p193 = scmp.ne.s32.totalorder %s185, %s187
      %p194 = scmp.eq.s32.totalorder %s36, 3
      %p195 = por %p193, %p194
      %p196 = scmp.ne.s32.totalorder %s187, %s188
      %p197 = scmp.eq.s32.totalorder %s36, 0
      %p198 = por %p196, %p197
      %p199 = scmp.ne.s32.totalorder %s187, %s188
      %p200 = scmp.eq.s32.totalorder %s37, 3
      %p201 = por %p199, %p200
      %p203 = scmp.ne.s32.totalorder %s188, %s202
      %p204 = scmp.eq.s32.totalorder %s37, 0
      %p205 = por %p203, %p204
      %s206 = ssub.s32 %s31, %s38
      %p207 = scmp.eq.s32.totalorder %s206, 0
      %s209 = sadd.s32 %s208, 1
      %s210 = scalar_select %p207, %s208, %s209
      %p213 = pneg %p207
      %p214 = scmp.eq.s32.totalorder %s31, 3
      %p215 = por %p213, %p214
      %p216 = scmp.ne.s32.totalorder %s208, %s211
      %p217 = scmp.eq.s32.totalorder %s31, 0
      %p218 = por %p216, %p217
      %p219 = scmp.ne.s32.totalorder %s208, %s211
      %p220 = scmp.eq.s32.totalorder %s36, 3
      %p221 = por %p219, %p220
      %p222 = scmp.ne.s32.totalorder %s211, %s212
      %p223 = scmp.eq.s32.totalorder %s36, 0
      %p224 = por %p222, %p223
      %p225 = scmp.ne.s32.totalorder %s211, %s212
      %p226 = scmp.eq.s32.totalorder %s37, 3
      %p227 = por %p225, %p226
      %p229 = scmp.ne.s32.totalorder %s212, %s228
      %p230 = scmp.eq.s32.totalorder %s37, 0
      %p231 = por %p229, %p230
      %s232 = ssub.s32 %s31, %s38
      %p233 = scmp.eq.s32.totalorder %s232, 0
      %s235 = sadd.s32 %s234, 1
      %s236 = scalar_select %p233, %s234, %s235
      %p239 = pneg %p233
      %p240 = scmp.eq.s32.totalorder %s31, 3
      %p241 = por %p239, %p240
      %p242 = scmp.ne.s32.totalorder %s234, %s237
      %p243 = scmp.eq.s32.totalorder %s31, 0
      %p244 = por %p242, %p243
      %p245 = scmp.ne.s32.totalorder %s234, %s237
      %p246 = scmp.eq.s32.totalorder %s36, 3
      %p247 = por %p245, %p246
      %p248 = scmp.ne.s32.totalorder %s237, %s238
      %p249 = scmp.eq.s32.totalorder %s36, 0
      %p250 = por %p248, %p249
      %p251 = scmp.ne.s32.totalorder %s237, %s238
      %p252 = scmp.eq.s32.totalorder %s37, 3
      %p253 = por %p251, %p252
      %p255 = scmp.ne.s32.totalorder %s238, %s254
      %p256 = scmp.eq.s32.totalorder %s37, 0
      %p257 = por %p255, %p256
      %p258 = scmp.le.s32.totalorder 1, %s31
      %p259 = scmp.lt.s32.totalorder %s31, 5
      %p260 = pnand %p258, %p259
      %p261 = pneg %p260
      // Predicated region
      $region9: #{tpu_custom_call.1} parent=5 // pred_check
        _
      $region10: #{tpu_custom_call.1} parent=5 // pred_check_branch
        %263 = sbr.rel (%p260) target = $region12
      $region11: #{tpu_custom_call.1} parent=5 // pred_region
        %s264 = ssub.s32 %s31, 1
        // Predicated region
        $region13: #{tpu_custom_call.1} parent=11 // pred_check
          %p265 = pneg %p156
        $region14: #{tpu_custom_call.1} parent=11 // pred_check_branch
          %267 = sbr.rel (%p265) target = $region16
        $region15: #{tpu_custom_call.1} parent=11 // pred_region
          %s269 = ssub.s32 10240, 10240
          %270 = vsyncadd [#allocation9], %s269
          %s271 = sshll.u32 [#allocation10], 4
          %s272 = int_to_ptr.vmem [resolvable:$true] %s271
          %277 = dma.hbm_to_vmem [thread:$0]  %s4, 10240, %s272, [#allocation9], 640, 640, 40
        $region16: #{tpu_custom_call.1} parent=11 // pred_fallthru
          _
        // Predicated region
        $region17: #{tpu_custom_call.1} parent=11 // pred_check
          %p278 = pneg %p177
        $region18: #{tpu_custom_call.1} parent=11 // pred_check_branch
          %280 = sbr.rel (%p278) target = $region20
        $region19: #{tpu_custom_call.1} parent=11 // pred_region
          %s282 = ssub.s32 10240, 10240
          %283 = vsyncadd [#allocation12], %s282
          %s284 = sshll.u32 [#allocation11], 4
          %s285 = int_to_ptr.vmem [resolvable:$true] %s284
          %290 = dma.hbm_to_vmem [thread:$0]  %s5, 10240, %s285, [#allocation12], 640, 640, 40
        $region20: #{tpu_custom_call.1} parent=11 // pred_fallthru
          _
        // Predicated region
        $region21: #{tpu_custom_call.1} parent=11 // pred_check
          %p291 = pneg %p198
        $region22: #{tpu_custom_call.1} parent=11 // pred_check_branch
          %293 = sbr.rel (%p291) target = $region24
        $region23: #{tpu_custom_call.1} parent=11 // pred_region
          _
        $region24: #{tpu_custom_call.1} parent=11 // pred_fallthru
          _
      $region12: #{tpu_custom_call.1} parent=5 // pred_fallthru
        _
      %p294 = scmp.lt.s32.totalorder %s31, 4
      // Predicated region
      $region25: #{tpu_custom_call.1} parent=5 // pred_check
        %p295 = pneg %p294
      $region26: #{tpu_custom_call.1} parent=5 // pred_check_branch
        %297 = sbr.rel (%p295) target = $region28
      $region27: #{tpu_custom_call.1} parent=5 // pred_region
        // Predicated region
        $region29: #{tpu_custom_call.1} parent=27 // pred_check
          %p298 = pneg %p51
        $region30: #{tpu_custom_call.1} parent=27 // pred_check_branch
          %300 = sbr.rel (%p298) target = $region32
        $region31: #{tpu_custom_call.1} parent=27 // pred_region
          %s301 = sand.u32 %s41, 1
          %s302 = scalar_lea.sflag [#allocation3], %s301
          %s303 = sand.u32 %s41, 1
          %s304 = smul.addr %s303, 256
          %s305 = scalar_lea.vmem [#allocation2], %s304
          %s306 = smul.u32 32, %s31
          %s307 = ssub.s32 125, %s306
          %p308 = scmp.lt.s32.totalorder %s307, 32
          %s309 = scalar_select %p308, %s307, 32
          %s310 = smul.u32 128, %s309
          %s312 = ssub.s32 4096, %s310
          %313 = vsyncadd %s302, %s312
          %p314 = scmp.ne.s32.totalorder 0, %s310
          %s315 = smul.addr %s306, 128
          %s316 = scalar_lea.hbm %s0, %s315
          %s317 = smul.u32 8, %s309
          %s318 = sshll.u32 %s305, 4
          %s319 = int_to_ptr.vmem [resolvable:$true] %s318
          %s320 = sshll.u32 %s317, 4
          %324 = dma.hbm_to_vmem [thread:$0]  (%p314), %s316, %s320, %s319, %s302, 128, 128, 8
        $region32: #{tpu_custom_call.1} parent=27 // pred_fallthru
          _
        // Predicated region
        $region33: #{tpu_custom_call.1} parent=27 // pred_check
          %p325 = pneg %p77
        $region34: #{tpu_custom_call.1} parent=27 // pred_check_branch
          %327 = sbr.rel (%p325) target = $region36
        $region35: #{tpu_custom_call.1} parent=27 // pred_region
          %s328 = sand.u32 %s31, 1
          %s329 = scalar_lea.sflag [#allocation6], %s328
          %s330 = sand.u32 %s67, 1
          %s331 = smul.addr %s330, 256
          %s332 = scalar_lea.vmem [#allocation5], %s331
          %s333 = smul.u32 32, %s31
          %s334 = ssub.s32 125, %s333
          %p335 = scmp.lt.s32.totalorder %s334, 32
          %s336 = scalar_select %p335, %s334, 32
          %s337 = smul.u32 128, %s336
          %s339 = ssub.s32 4096, %s337
          %340 = vsyncadd %s329, %s339
          %p341 = scmp.ne.s32.totalorder 0, %s337
          %s342 = smul.addr %s333, 128
          %s343 = scalar_lea.hbm %s1, %s342
          %s344 = smul.u32 8, %s336
          %s345 = sshll.u32 %s332, 4
          %s346 = int_to_ptr.vmem [resolvable:$true] %s345
          %s347 = sshll.u32 %s344, 4
          %351 = dma.hbm_to_vmem [thread:$0]  (%p341), %s343, %s347, %s346, %s329, 128, 128, 8
        $region36: #{tpu_custom_call.1} parent=27 // pred_fallthru
          _
        // Predicated region
        $region37: #{tpu_custom_call.1} parent=27 // pred_check
          %p352 = pneg %p103
        $region38: #{tpu_custom_call.1} parent=27 // pred_check_branch
          %354 = sbr.rel (%p352) target = $region40
        $region39: #{tpu_custom_call.1} parent=27 // pred_region
          %s355 = sand.u32 %s31, 1
          %s356 = scalar_lea.sflag [#allocation6], %s355
          %s357 = sand.u32 %s93, 1
          %s358 = smul.addr %s357, 256
          %s359 = scalar_lea.vmem [#allocation7], %s358
          %s360 = smul.u32 32, %s31
          %s361 = ssub.s32 125, %s360
          %p362 = scmp.lt.s32.totalorder %s361, 32
          %s363 = scalar_select %p362, %s361, 32
          %s364 = smul.u32 128, %s363
          %s366 = ssub.s32 4096, %s364
          %367 = vsyncadd %s356, %s366
          %p368 = scmp.ne.s32.totalorder 0, %s364
          %s369 = smul.addr %s360, 128
          %s370 = scalar_lea.hbm %s2, %s369
          %s371 = smul.u32 8, %s363
          %s372 = sshll.u32 %s359, 4
          %s373 = int_to_ptr.vmem [resolvable:$true] %s372
          %s374 = sshll.u32 %s371, 4
          %378 = dma.hbm_to_vmem [thread:$0]  (%p368), %s370, %s374, %s373, %s356, 128, 128, 8
        $region40: #{tpu_custom_call.1} parent=27 // pred_fallthru
          _
        // Predicated region
        $region41: #{tpu_custom_call.1} parent=27 // pred_check
          %p379 = pneg %p129
        $region42: #{tpu_custom_call.1} parent=27 // pred_check_branch
          %381 = sbr.rel (%p379) target = $region44
        $region43: #{tpu_custom_call.1} parent=27 // pred_region
          %s382 = sand.u32 %s31, 1
          %s383 = scalar_lea.sflag [#allocation9], %s382
          %s384 = sand.u32 %s119, 1
          %s385 = smul.addr %s384, 256
          %s386 = scalar_lea.vmem [#allocation8], %s385
          %s387 = smul.u32 32, %s31
          %s388 = ssub.s32 125, %s387
          %p389 = scmp.lt.s32.totalorder %s388, 32
          %s390 = scalar_select %p389, %s388, 32
          %s391 = smul.u32 128, %s390
          %s393 = ssub.s32 4096, %s391
          %394 = vsyncadd %s383, %s393
          %p395 = scmp.ne.s32.totalorder 0, %s391
          %s396 = smul.addr %s387, 128
          %s397 = scalar_lea.hbm %s3, %s396
          %s398 = smul.u32 8, %s390
          %s399 = sshll.u32 %s386, 4
          %s400 = int_to_ptr.vmem [resolvable:$true] %s399
          %s401 = sshll.u32 %s398, 4
          %405 = dma.hbm_to_vmem [thread:$0]  (%p395), %s397, %s401, %s400, %s383, 128, 128, 8
        $region44: #{tpu_custom_call.1} parent=27 // pred_fallthru
          _
      $region28: #{tpu_custom_call.1} parent=5 // pred_fallthru
        _
      %p406 = scmp.le.s32.totalorder 1, %s31
      %p407 = scmp.lt.s32.totalorder %s31, 5
      %p408 = pnand %p406, %p407
      %p409 = pneg %p408
      // Predicated region
      $region45: #{tpu_custom_call.1} parent=5 // pred_check
        _
      $region46: #{tpu_custom_call.1} parent=5 // pred_check_branch
        %411 = sbr.rel (%p408) target = $region48
      $region47: #{tpu_custom_call.1} parent=5 // pred_region
        %s412 = ssub.s32 %s31, 1
        %s413 = sand.u32 %s44, 1
        %s414 = scalar_lea.sflag [#allocation3], %s413
        %s415 = sand.u32 %s44, 1
        %s416 = smul.addr %s415, 256
        %s417 = scalar_lea.vmem [#allocation2], %s416
        // Predicated region
        $region49: #{tpu_custom_call.1} parent=47 // pred_check
          %p418 = pneg %p57
        $region50: #{tpu_custom_call.1} parent=47 // pred_check_branch
          %420 = sbr.rel (%p418) target = $region52
        $region51: #{tpu_custom_call.1} parent=47 // pred_region
          %421 = dma.done %s414, 4096
        $region52: #{tpu_custom_call.1} parent=47 // pred_fallthru
          _
        %s422 = sand.u32 %s36, 1
        %s423 = scalar_lea.sflag [#allocation6], %s422
        %s424 = sand.u32 %s70, 1
        %s425 = smul.addr %s424, 256
        %s426 = scalar_lea.vmem [#allocation5], %s425
        // Predicated region
        $region53: #{tpu_custom_call.1} parent=47 // pred_check
          %p427 = pneg %p83
        $region54: #{tpu_custom_call.1} parent=47 // pred_check_branch
          %429 = sbr.rel (%p427) target = $region56
        $region55: #{tpu_custom_call.1} parent=47 // pred_region
          %430 = dma.done %s423, 4096
        $region56: #{tpu_custom_call.1} parent=47 // pred_fallthru
          _
        %s431 = sand.u32 %s36, 1
        %s432 = scalar_lea.sflag [#allocation6], %s431
        %s433 = sand.u32 %s96, 1
        %s434 = smul.addr %s433, 256
        %s435 = scalar_lea.vmem [#allocation7], %s434
        // Predicated region
        $region57: #{tpu_custom_call.1} parent=47 // pred_check
          %p436 = pneg %p109
        $region58: #{tpu_custom_call.1} parent=47 // pred_check_branch
          %438 = sbr.rel (%p436) target = $region60
        $region59: #{tpu_custom_call.1} parent=47 // pred_region
          %439 = dma.done %s432, 4096
        $region60: #{tpu_custom_call.1} parent=47 // pred_fallthru
          _
        %s440 = sand.u32 %s36, 1
        %s441 = scalar_lea.sflag [#allocation9], %s440
        %s442 = sand.u32 %s122, 1
        %s443 = smul.addr %s442, 256
        %s444 = scalar_lea.vmem [#allocation8], %s443
        // Predicated region
        $region61: #{tpu_custom_call.1} parent=47 // pred_check
          %p445 = pneg %p135
        $region62: #{tpu_custom_call.1} parent=47 // pred_check_branch
          %447 = sbr.rel (%p445) target = $region64
        $region63: #{tpu_custom_call.1} parent=47 // pred_region
          %448 = dma.done %s441, 4096
        $region64: #{tpu_custom_call.1} parent=47 // pred_fallthru
          _
        // Predicated region
        $region65: #{tpu_custom_call.1} parent=47 // pred_check
          %p449 = pneg %p156
        $region66: #{tpu_custom_call.1} parent=47 // pred_check_branch
          %451 = sbr.rel (%p449) target = $region68
        $region67: #{tpu_custom_call.1} parent=47 // pred_region
          %452 = dma.done [#allocation9], 10240
        $region68: #{tpu_custom_call.1} parent=47 // pred_fallthru
          _
        // Predicated region
        $region69: #{tpu_custom_call.1} parent=47 // pred_check
          %p453 = pneg %p177
        $region70: #{tpu_custom_call.1} parent=47 // pred_check_branch
          %455 = sbr.rel (%p453) target = $region72
        $region71: #{tpu_custom_call.1} parent=47 // pred_region
          %456 = dma.done [#allocation12], 10240
        $region72: #{tpu_custom_call.1} parent=47 // pred_fallthru
          _
        %s457 = sand.u32 %s44, 1
        %s458 = scalar_lea.sflag [#allocation3], %s457
        %s459 = sand.u32 %s44, 1
        %s460 = smul.addr %s459, 256
        %s461 = scalar_lea.vmem [#allocation2], %s460
        %p462 = pneg %p57
        %p463 = pneg %p54
        %s464 = sand.u32 %s36, 1
        %s465 = scalar_lea.sflag [#allocation6], %s464
        %s466 = sand.u32 %s70, 1
        %s467 = smul.addr %s466, 256
        %s468 = scalar_lea.vmem [#allocation5], %s467
        %p469 = pneg %p83
        %p470 = pneg %p80
        %s471 = sand.u32 %s36, 1
        %s472 = scalar_lea.sflag [#allocation6], %s471
        %s473 = sand.u32 %s96, 1
        %s474 = smul.addr %s473, 256
        %s475 = scalar_lea.vmem [#allocation7], %s474
        %p476 = pneg %p109
        %p477 = pneg %p106
        %s478 = sand.u32 %s36, 1
        %s479 = scalar_lea.sflag [#allocation9], %s478
        %s480 = sand.u32 %s122, 1
        %s481 = smul.addr %s480, 256
        %s482 = scalar_lea.vmem [#allocation8], %s481
        %p483 = pneg %p135
        %p484 = pneg %p132
        %p485 = pneg %p156
        %p486 = pneg %p153
        %p487 = pneg %p177
        %p488 = pneg %p174
        %p489 = pneg %p198
        %p490 = pneg %p195
        %p491 = pneg %p224
        %p492 = pneg %p221
        %s493 = sand.u32 %s211, 1
        %s494 = scalar_lea.sflag [#allocation4], %s493
        %s495 = sand.u32 %s211, 1
        %s496 = smul.addr %s495, 256
        %s497 = scalar_lea.vmem [#allocation13], %s496
        %p498 = pneg %p250
        %p499 = pneg %p247
        %s500 = sand.u32 %s237, 1
        %s501 = scalar_lea.sflag [#allocation15], %s500
        %s502 = sand.u32 %s237, 1
        %s503 = smul.addr %s502, 256
        %s504 = scalar_lea.vmem [#allocation14], %s503
        %s505 = smul.u32 32, %s36
        %s506 = ssub.s32 125, %s505
        %p507 = scmp.lt.s32.totalorder %s506, 32
        %s508 = scalar_select %p507, %s506, 32
        %s509 = smul.u32 128, %s508
        %s510 = smul.u32 32, %s36
        %s511 = ssub.s32 125, %s510
        %p512 = scmp.lt.s32.totalorder %s511, 32
        %s513 = scalar_select %p512, %s511, 32
        %s514 = smul.u32 128, %s513
        %s515 = smul.u32 32, %s36
        %s516 = ssub.s32 125, %s515
        %p517 = scmp.lt.s32.totalorder %s516, 32
        %s518 = scalar_select %p517, %s516, 32
        %s519 = smul.u32 128, %s518
        %s520 = smul.u32 32, %s36
        %s521 = ssub.s32 125, %s520
        %p522 = scmp.lt.s32.totalorder %s521, 32
        %s523 = scalar_select %p522, %s521, 32
        %s524 = smul.u32 128, %s523
        %s525 = smul.u32 32, %s36
        %s526 = ssub.s32 125, %s525
        %p527 = scmp.lt.s32.totalorder %s526, 32
        %s528 = scalar_select %p527, %s526, 32
        %s529 = smul.u32 128, %s528
        %s530 = smul.u32 32, %s36
        %s531 = ssub.s32 125, %s530
        %p532 = scmp.lt.s32.totalorder %s531, 32
        %s533 = scalar_select %p532, %s531, 32
        %s534 = smul.u32 128, %s533
        %v535 = vld [vmem:[%s417] sm:$0xff]
        %v536 = vld [vmem:[%s417 + $0x8] sm:$0xff]
        %v537 = vld [vmem:[%s417 + $0x10] sm:$0xff]
        %v538 = vld [vmem:[%s417 + $0x18] sm:$0xff]
        %v539 = vld [vmem:[%s417 + $0x20] sm:$0xff]
        %v540 = vld [vmem:[%s417 + $0x28] sm:$0xff]
        %v541 = vld [vmem:[%s417 + $0x30] sm:$0xff]
        %v542 = vld [vmem:[%s417 + $0x38] sm:$0xff]
        %v543 = vld [vmem:[%s417 + $0x40] sm:$0xff]
        %v544 = vld [vmem:[%s417 + $0x48] sm:$0xff]
        %v545 = vld [vmem:[%s417 + $0x50] sm:$0xff]
        %v546 = vld [vmem:[%s417 + $0x58] sm:$0xff]
        %v547 = vld [vmem:[%s417 + $0x60] sm:$0xff]
        %v548 = vld [vmem:[%s417 + $0x68] sm:$0xff]
        %v549 = vld [vmem:[%s417 + $0x70] sm:$0xff]
        %v550 = vld [vmem:[%s417 + $0x78] sm:$0xff]
        %v551 = vld [vmem:[%s417 + $0x80] sm:$0xff]
        %v552 = vld [vmem:[%s417 + $0x88] sm:$0xff]
        %v553 = vld [vmem:[%s417 + $0x90] sm:$0xff]
        %v554 = vld [vmem:[%s417 + $0x98] sm:$0xff]
        %v555 = vld [vmem:[%s417 + $0xa0] sm:$0xff]
        %v556 = vld [vmem:[%s417 + $0xa8] sm:$0xff]
        %v557 = vld [vmem:[%s417 + $0xb0] sm:$0xff]
        %v558 = vld [vmem:[%s417 + $0xb8] sm:$0xff]
        %v559 = vld [vmem:[%s417 + $0xc0] sm:$0xff]
        %v560 = vld [vmem:[%s417 + $0xc8] sm:$0xff]
        %v561 = vld [vmem:[%s417 + $0xd0] sm:$0xff]
        %v562 = vld [vmem:[%s417 + $0xd8] sm:$0xff]
        %v563 = vld [vmem:[%s417 + $0xe0] sm:$0xff]
        %v564 = vld [vmem:[%s417 + $0xe8] sm:$0xff]
        %v565 = vld [vmem:[%s417 + $0xf0] sm:$0xff]
        %v566 = vld [vmem:[%s417 + $0xf8] sm:$0xff]
        %v567 = vld [vmem:[%s426] sm:$0xff]
        %v568 = vld [vmem:[%s426 + $0x8] sm:$0xff]
        %v569 = vld [vmem:[%s426 + $0x10] sm:$0xff]
        %v570 = vld [vmem:[%s426 + $0x18] sm:$0xff]
        %v571 = vld [vmem:[%s426 + $0x20] sm:$0xff]
        %v572 = vld [vmem:[%s426 + $0x28] sm:$0xff]
        %v573 = vld [vmem:[%s426 + $0x30] sm:$0xff]
        %v574 = vld [vmem:[%s426 + $0x38] sm:$0xff]
        %v575 = vld [vmem:[%s426 + $0x40] sm:$0xff]
        %v576 = vld [vmem:[%s426 + $0x48] sm:$0xff]
        %v577 = vld [vmem:[%s426 + $0x50] sm:$0xff]
        %v578 = vld [vmem:[%s426 + $0x58] sm:$0xff]
        %v579 = vld [vmem:[%s426 + $0x60] sm:$0xff]
        %v580 = vld [vmem:[%s426 + $0x68] sm:$0xff]
        %v581 = vld [vmem:[%s426 + $0x70] sm:$0xff]
        %v582 = vld [vmem:[%s426 + $0x78] sm:$0xff]
        %v583 = vld [vmem:[%s426 + $0x80] sm:$0xff]
        %v584 = vld [vmem:[%s426 + $0x88] sm:$0xff]
        %v585 = vld [vmem:[%s426 + $0x90] sm:$0xff]
        %v586 = vld [vmem:[%s426 + $0x98] sm:$0xff]
        %v587 = vld [vmem:[%s426 + $0xa0] sm:$0xff]
        %v588 = vld [vmem:[%s426 + $0xa8] sm:$0xff]
        %v589 = vld [vmem:[%s426 + $0xb0] sm:$0xff]
        %v590 = vld [vmem:[%s426 + $0xb8] sm:$0xff]
        %v591 = vld [vmem:[%s426 + $0xc0] sm:$0xff]
        %v592 = vld [vmem:[%s426 + $0xc8] sm:$0xff]
        %v593 = vld [vmem:[%s426 + $0xd0] sm:$0xff]
        %v594 = vld [vmem:[%s426 + $0xd8] sm:$0xff]
        %v595 = vld [vmem:[%s426 + $0xe0] sm:$0xff]
        %v596 = vld [vmem:[%s426 + $0xe8] sm:$0xff]
        %v597 = vld [vmem:[%s426 + $0xf0] sm:$0xff]
        %v598 = vld [vmem:[%s426 + $0xf8] sm:$0xff]
        %v599 = vld [vmem:[#allocation10] sm:$0xff]
        %v600 = vld [vmem:[#allocation10 + $0x8] sm:$0xff]
        %v601 = vld [vmem:[#allocation10 + $0x10] sm:$0xff]
        %v602 = vld [vmem:[#allocation10 + $0x18] sm:$0xff]
        %v603 = vld [vmem:[#allocation10 + $0x20] sm:$0xff]
        %v604 = vld [vmem:[#allocation10 + $0x28] sm:$0xff]
        %v605 = vld [vmem:[#allocation10 + $0x30] sm:$0xff]
        %v606 = vld [vmem:[#allocation10 + $0x38] sm:$0xff]
        %v607 = vld [vmem:[#allocation10 + $0x40] sm:$0xff]
        %v608 = vld [vmem:[#allocation10 + $0x48] sm:$0xff]
        %v609 = vld [vmem:[#allocation10 + $0x50] sm:$0xff]
        %v610 = vld [vmem:[#allocation10 + $0x58] sm:$0xff]
        %v611 = vld [vmem:[#allocation10 + $0x60] sm:$0xff]
        %v612 = vld [vmem:[#allocation10 + $0x68] sm:$0xff]
        %v613 = vld [vmem:[#allocation10 + $0x70] sm:$0xff]
        %v614 = vld [vmem:[#allocation10 + $0x78] sm:$0xff]
        %v615 = vld [vmem:[#allocation10 + $0x80] sm:$0xff]
        %v616 = vld [vmem:[#allocation10 + $0x88] sm:$0xff]
        %v617 = vld [vmem:[#allocation10 + $0x90] sm:$0xff]
        %v618 = vld [vmem:[#allocation10 + $0x98] sm:$0xff]
        %v619 = vld [vmem:[#allocation10 + $0xa0] sm:$0xff]
        %v620 = vld [vmem:[#allocation10 + $0xa8] sm:$0xff]
        %v621 = vld [vmem:[#allocation10 + $0xb0] sm:$0xff]
        %v622 = vld [vmem:[#allocation10 + $0xb8] sm:$0xff]
        %v623 = vld [vmem:[#allocation10 + $0xc0] sm:$0xff]
        %v624 = vld [vmem:[#allocation10 + $0xc8] sm:$0xff]
        %v625 = vld [vmem:[#allocation10 + $0xd0] sm:$0xff]
        %v626 = vld [vmem:[#allocation10 + $0xd8] sm:$0xff]
        %v627 = vld [vmem:[#allocation10 + $0xe0] sm:$0xff]
        %v628 = vld [vmem:[#allocation10 + $0xe8] sm:$0xff]
        %v629 = vld [vmem:[#allocation10 + $0xf0] sm:$0xff]
        %v630 = vld [vmem:[#allocation10 + $0xf8] sm:$0xff]
        %v631 = vld [vmem:[#allocation10 + $0x100] sm:$0xff]
        %v632 = vld [vmem:[#allocation10 + $0x108] sm:$0xff]
        %v633 = vld [vmem:[#allocation10 + $0x110] sm:$0xff]
        %v634 = vld [vmem:[#allocation10 + $0x118] sm:$0xff]
        %v635 = vld [vmem:[#allocation10 + $0x120] sm:$0xff]
        %v636 = vld [vmem:[#allocation10 + $0x128] sm:$0xff]
        %v637 = vld [vmem:[#allocation10 + $0x130] sm:$0xff]
        %v638 = vld [vmem:[#allocation10 + $0x138] sm:$0xff]
        %v639 = vld [vmem:[#allocation10 + $0x140] sm:$0xff]
        %v640 = vld [vmem:[#allocation10 + $0x148] sm:$0xff]
        %v641 = vld [vmem:[#allocation10 + $0x150] sm:$0xff]
        %v642 = vld [vmem:[#allocation10 + $0x158] sm:$0xff]
        %v643 = vld [vmem:[#allocation10 + $0x160] sm:$0xff]
        %v644 = vld [vmem:[#allocation10 + $0x168] sm:$0xff]
        %v645 = vld [vmem:[#allocation10 + $0x170] sm:$0xff]
        %v646 = vld [vmem:[#allocation10 + $0x178] sm:$0xff]
        %v647 = vld [vmem:[#allocation10 + $0x180] sm:$0xff]
        %v648 = vld [vmem:[#allocation10 + $0x188] sm:$0xff]
        %v649 = vld [vmem:[#allocation10 + $0x190] sm:$0xff]
        %v650 = vld [vmem:[#allocation10 + $0x198] sm:$0xff]
        %v651 = vld [vmem:[#allocation10 + $0x1a0] sm:$0xff]
        %v652 = vld [vmem:[#allocation10 + $0x1a8] sm:$0xff]
        %v653 = vld [vmem:[#allocation10 + $0x1b0] sm:$0xff]
        %v654 = vld [vmem:[#allocation10 + $0x1b8] sm:$0xff]
        %v655 = vld [vmem:[#allocation10 + $0x1c0] sm:$0xff]
        %v656 = vld [vmem:[#allocation10 + $0x1c8] sm:$0xff]
        %v657 = vld [vmem:[#allocation10 + $0x1d0] sm:$0xff]
        %v658 = vld [vmem:[#allocation10 + $0x1d8] sm:$0xff]
        %v659 = vld [vmem:[#allocation10 + $0x1e0] sm:$0xff]
        %v660 = vld [vmem:[#allocation10 + $0x1e8] sm:$0xff]
        %v661 = vld [vmem:[#allocation10 + $0x1f0] sm:$0xff]
        %v662 = vld [vmem:[#allocation10 + $0x1f8] sm:$0xff]
        %v663 = vld [vmem:[#allocation10 + $0x200] sm:$0xff]
        %v664 = vld [vmem:[#allocation10 + $0x208] sm:$0xff]
        %v665 = vld [vmem:[#allocation10 + $0x210] sm:$0xff]
        %v666 = vld [vmem:[#allocation10 + $0x218] sm:$0xff]
        %v667 = vld [vmem:[#allocation10 + $0x220] sm:$0xff]
        %v668 = vld [vmem:[#allocation10 + $0x228] sm:$0xff]
        %v669 = vld [vmem:[#allocation10 + $0x230] sm:$0xff]
        %v670 = vld [vmem:[#allocation10 + $0x238] sm:$0xff]
        %v671 = vld [vmem:[#allocation10 + $0x240] sm:$0xff]
        %v672 = vld [vmem:[#allocation10 + $0x248] sm:$0xff]
        %v673 = vld [vmem:[#allocation10 + $0x250] sm:$0xff]
        %v674 = vld [vmem:[#allocation10 + $0x258] sm:$0xff]
        %v675 = vld [vmem:[#allocation10 + $0x260] sm:$0xff]
        %v676 = vld [vmem:[#allocation10 + $0x268] sm:$0xff]
        %v677 = vld [vmem:[#allocation10 + $0x270] sm:$0xff]
        %v678 = vld [vmem:[#allocation10 + $0x278] sm:$0xff]
        %v679 = vld [vmem:[#allocation11] sm:$0xff]
        %v680 = vld [vmem:[#allocation11 + $0x8] sm:$0xff]
        %v681 = vld [vmem:[#allocation11 + $0x10] sm:$0xff]
        %v682 = vld [vmem:[#allocation11 + $0x18] sm:$0xff]
        %v683 = vld [vmem:[#allocation11 + $0x20] sm:$0xff]
        %v684 = vld [vmem:[#allocation11 + $0x28] sm:$0xff]
        %v685 = vld [vmem:[#allocation11 + $0x30] sm:$0xff]
        %v686 = vld [vmem:[#allocation11 + $0x38] sm:$0xff]
        %v687 = vld [vmem:[#allocation11 + $0x40] sm:$0xff]
        %v688 = vld [vmem:[#allocation11 + $0x48] sm:$0xff]
        %v689 = vld [vmem:[#allocation11 + $0x50] sm:$0xff]
        %v690 = vld [vmem:[#allocation11 + $0x58] sm:$0xff]
        %v691 = vld [vmem:[#allocation11 + $0x60] sm:$0xff]
        %v692 = vld [vmem:[#allocation11 + $0x68] sm:$0xff]
        %v693 = vld [vmem:[#allocation11 + $0x70] sm:$0xff]
        %v694 = vld [vmem:[#allocation11 + $0x78] sm:$0xff]
        %v695 = vld [vmem:[#allocation11 + $0x80] sm:$0xff]
        %v696 = vld [vmem:[#allocation11 + $0x88] sm:$0xff]
        %v697 = vld [vmem:[#allocation11 + $0x90] sm:$0xff]
        %v698 = vld [vmem:[#allocation11 + $0x98] sm:$0xff]
        %v699 = vld [vmem:[#allocation11 + $0xa0] sm:$0xff]
        %v700 = vld [vmem:[#allocation11 + $0xa8] sm:$0xff]
        %v701 = vld [vmem:[#allocation11 + $0xb0] sm:$0xff]
        %v702 = vld [vmem:[#allocation11 + $0xb8] sm:$0xff]
        %v703 = vld [vmem:[#allocation11 + $0xc0] sm:$0xff]
        %v704 = vld [vmem:[#allocation11 + $0xc8] sm:$0xff]
        %v705 = vld [vmem:[#allocation11 + $0xd0] sm:$0xff]
        %v706 = vld [vmem:[#allocation11 + $0xd8] sm:$0xff]
        %v707 = vld [vmem:[#allocation11 + $0xe0] sm:$0xff]
        %v708 = vld [vmem:[#allocation11 + $0xe8] sm:$0xff]
        %v709 = vld [vmem:[#allocation11 + $0xf0] sm:$0xff]
        %v710 = vld [vmem:[#allocation11 + $0xf8] sm:$0xff]
        %v711 = vld [vmem:[#allocation11 + $0x100] sm:$0xff]
        %v712 = vld [vmem:[#allocation11 + $0x108] sm:$0xff]
        %v713 = vld [vmem:[#allocation11 + $0x110] sm:$0xff]
        %v714 = vld [vmem:[#allocation11 + $0x118] sm:$0xff]
        %v715 = vld [vmem:[#allocation11 + $0x120] sm:$0xff]
        %v716 = vld [vmem:[#allocation11 + $0x128] sm:$0xff]
        %v717 = vld [vmem:[#allocation11 + $0x130] sm:$0xff]
        %v718 = vld [vmem:[#allocation11 + $0x138] sm:$0xff]
        %v719 = vld [vmem:[#allocation11 + $0x140] sm:$0xff]
        %v720 = vld [vmem:[#allocation11 + $0x148] sm:$0xff]
        %v721 = vld [vmem:[#allocation11 + $0x150] sm:$0xff]
        %v722 = vld [vmem:[#allocation11 + $0x158] sm:$0xff]
        %v723 = vld [vmem:[#allocation11 + $0x160] sm:$0xff]
        %v724 = vld [vmem:[#allocation11 + $0x168] sm:$0xff]
        %v725 = vld [vmem:[#allocation11 + $0x170] sm:$0xff]
        %v726 = vld [vmem:[#allocation11 + $0x178] sm:$0xff]
        %v727 = vld [vmem:[#allocation11 + $0x180] sm:$0xff]
        %v728 = vld [vmem:[#allocation11 + $0x188] sm:$0xff]
        %v729 = vld [vmem:[#allocation11 + $0x190] sm:$0xff]
        %v730 = vld [vmem:[#allocation11 + $0x198] sm:$0xff]
        %v731 = vld [vmem:[#allocation11 + $0x1a0] sm:$0xff]
        %v732 = vld [vmem:[#allocation11 + $0x1a8] sm:$0xff]
        %v733 = vld [vmem:[#allocation11 + $0x1b0] sm:$0xff]
        %v734 = vld [vmem:[#allocation11 + $0x1b8] sm:$0xff]
        %v735 = vld [vmem:[#allocation11 + $0x1c0] sm:$0xff]
        %v736 = vld [vmem:[#allocation11 + $0x1c8] sm:$0xff]
        %v737 = vld [vmem:[#allocation11 + $0x1d0] sm:$0xff]
        %v738 = vld [vmem:[#allocation11 + $0x1d8] sm:$0xff]
        %v739 = vld [vmem:[#allocation11 + $0x1e0] sm:$0xff]
        %v740 = vld [vmem:[#allocation11 + $0x1e8] sm:$0xff]
        %v741 = vld [vmem:[#allocation11 + $0x1f0] sm:$0xff]
        %v742 = vld [vmem:[#allocation11 + $0x1f8] sm:$0xff]
        %v743 = vld [vmem:[#allocation11 + $0x200] sm:$0xff]
        %v744 = vld [vmem:[#allocation11 + $0x208] sm:$0xff]
        %v745 = vld [vmem:[#allocation11 + $0x210] sm:$0xff]
        %v746 = vld [vmem:[#allocation11 + $0x218] sm:$0xff]
        %v747 = vld [vmem:[#allocation11 + $0x220] sm:$0xff]
        %v748 = vld [vmem:[#allocation11 + $0x228] sm:$0xff]
        %v749 = vld [vmem:[#allocation11 + $0x230] sm:$0xff]
        %v750 = vld [vmem:[#allocation11 + $0x238] sm:$0xff]
        %v751 = vld [vmem:[#allocation11 + $0x240] sm:$0xff]
        %v752 = vld [vmem:[#allocation11 + $0x248] sm:$0xff]
        %v753 = vld [vmem:[#allocation11 + $0x250] sm:$0xff]
        %v754 = vld [vmem:[#allocation11 + $0x258] sm:$0xff]
        %v755 = vld [vmem:[#allocation11 + $0x260] sm:$0xff]
        %v756 = vld [vmem:[#allocation11 + $0x268] sm:$0xff]
        %v757 = vld [vmem:[#allocation11 + $0x270] sm:$0xff]
        %v758 = vld [vmem:[#allocation11 + $0x278] sm:$0xff]
        %759 = vmatprep.subr.mxu0 %v680
        %760 = vmatpush1.msra.mxu0 %v679
        %761 = vmatprep.subr.mxu0 %v685
        %762 = vmatpush1.msra.mxu0 %v684
        %763 = vmatprep.subr.mxu0 %v690
        %764 = vmatpush1.msra.mxu0 %v689
        %765 = vmatprep.subr.mxu0 %v695
        %766 = vmatpush1.msra.mxu0 %v694
        %767 = vmatprep.subr.mxu0 %v700
        %768 = vmatpush1.msra.mxu0 %v699
        %769 = vmatprep.subr.mxu0 %v705
        %770 = vmatpush1.msra.mxu0 %v704
        %771 = vmatprep.subr.mxu0 %v710
        %772 = vmatpush1.msra.mxu0 %v709
        %773 = vmatprep.subr.mxu0 %v715
        %774 = vmatpush1.msra.mxu0 %v714
        %775 = vmatprep.subr.mxu0 %v720
        %776 = vmatpush1.msra.mxu0 %v719
        %777 = vmatprep.subr.mxu0 %v725
        %778 = vmatpush1.msra.mxu0 %v724
        %779 = vmatprep.subr.mxu0 %v730
        %780 = vmatpush1.msra.mxu0 %v729
        %781 = vmatprep.subr.mxu0 %v735
        %782 = vmatpush1.msra.mxu0 %v734
        %783 = vmatprep.subr.mxu0 %v740
        %784 = vmatpush1.msra.mxu0 %v739
        %785 = vmatprep.subr.mxu0 %v745
        %786 = vmatpush1.msra.mxu0 %v744
        %787 = vmatprep.subr.mxu0 %v750
        %788 = vmatpush1.msra.mxu0 %v749
        %789 = vmatprep.subr.mxu0 %v755
        %790 = vmatpush1.msra.mxu0 %v754
        %791 = vmatprep.subr.mxu0 0.0
        %792 = vmatpush1.msra.mxu0 0.0
        %793 = vmatprep.subr.mxu0 0.0
        %794 = vmatpush1.msra.mxu0 0.0
        %795 = vmatprep.subr.mxu0 0.0
        %796 = vmatpush1.msra.mxu0 0.0
        %797 = vmatprep.subr.mxu0 0.0
        %798 = vmatpush1.msra.mxu0 0.0
        %799 = vmatprep.subr.mxu0 0.0
        %800 = vmatpush1.msra.mxu0 0.0
        %801 = vmatprep.subr.mxu0 0.0
        %802 = vmatpush1.msra.mxu0 0.0
        %803 = vmatprep.subr.mxu0 0.0
        %804 = vmatpush1.msra.mxu0 0.0
        %805 = vmatprep.subr.mxu0 0.0
        %806 = vmatpush1.msra.mxu0 0.0
        %807 = vmatprep.subr.mxu0 0.0
        %808 = vmatpush1.msra.mxu0 0.0
        %809 = vmatprep.subr.mxu0 0.0
        %810 = vmatpush1.msra.mxu0 0.0
        %811 = vmatprep.subr.mxu0 0.0
        %812 = vmatpush1.msra.mxu0 0.0
        %813 = vmatprep.subr.mxu0 0.0
        %814 = vmatpush1.msra.mxu0 0.0
        %815 = vmatprep.subr.mxu0 0.0
        %816 = vmatpush1.msra.mxu0 0.0
        %817 = vmatprep.subr.mxu0 0.0
        %818 = vmatpush1.msra.mxu0 0.0
        %819 = vmatprep.subr.mxu0 0.0
        %820 = vmatpush1.msra.mxu0 0.0
        %821 = vmatprep.subr.mxu0 0.0
        %822 = vmatpush1.msra.mxu0 0.0
        %823 = vmatprep.mubr.f32.mxu0 0.0
        %824 = vmatmul.mubr.f32.gmra.mrb[0].mxu0 %v567
        %v825 = vpop.f32.mrb[0].mxu0
        %v826 = vadd.f32 0.0, %v825
        %v827 = vpop.f32.mrb[0].mxu0
        %v828 = vadd.f32 0.0, %v827
        %829 = vmatprep.mubr.f32.mxu0 0.0
        %830 = vmatmul.mubr.f32.gmra.mrb[0].mxu0 %v568
        %v831 = vpop.f32.mrb[0].mxu0
        %v832 = vadd.f32 0.0, %v831
        %v833 = vpop.f32.mrb[0].mxu0
        %v834 = vadd.f32 0.0, %v833
        %835 = vmatprep.mubr.f32.mxu0 0.0
        %836 = vmatmul.mubr.f32.gmra.mrb[0].mxu0 %v569
        %v837 = vpop.f32.mrb[0].mxu0
        %v838 = vadd.f32 0.0, %v837
        %v839 = vpop.f32.mrb[0].mxu0
        %v840 = vadd.f32 0.0, %v839
        %841 = vmatprep.mubr.f32.mxu0 0.0
        %842 = vmatmul.mubr.f32.gmra.mrb[0].mxu0 %v570
        %v843 = vpop.f32.mrb[0].mxu0
        %v844 = vadd.f32 0.0, %v843
        %v845 = vpop.f32.mrb[0].mxu0
        %v846 = vadd.f32 0.0, %v845
        %847 = vmatprep.mubr.f32.mxu0 0.0
        %848 = vmatmul.mubr.f32.gmra.mrb[0].mxu0 %v571
        %v849 = vpop.f32.mrb[0].mxu0
        %v850 = vadd.f32 0.0, %v849
        %v851 = vpop.f32.mrb[0].mxu0
        %v852 = vadd.f32 0.0, %v851
        %853 = vmatprep.mubr.f32.mxu0 0.0
        %854 = vmatmul.mubr.f32.gmra.mrb[0].mxu0 %v572
        %v855 = vpop.f32.mrb[0].mxu0
        %v856 = vadd.f32 0.0, %v855
        %v857 = vpop.f32.mrb[0].mxu0
        %v858 = vadd.f32 0.0, %v857
        %859 = vmatprep.mubr.f32.mxu0 0.0
        %860 = vmatmul.mubr.f32.gmra.mrb[0].mxu0 %v573
        %v861 = vpop.f32.mrb[0].mxu0
        %v862 = vadd.f32 0.0, %v861
        %v863 = vpop.f32.mrb[0].mxu0
        %v864 = vadd.f32 0.0, %v863
        %865 = vmatprep.mubr.f32.mxu0 0.0
        %866 = vmatmul.mubr.f32.gmra.mrb[0].mxu0 %v574
        %v867 = vpop.f32.mrb[0].mxu0
        %v868 = vadd.f32 0.0, %v867
        %v869 = vpop.f32.mrb[0].mxu0
        %v870 = vadd.f32 0.0, %v869
        %871 = vmatprep.mubr.f32.mxu0 0.0
        %872 = vmatmul.mubr.f32.gmra.mrb[0].mxu0 %v575
        %v873 = vpop.f32.mrb[0].mxu0
        %v874 = vadd.f32 0.0, %v873
        %v875 = vpop.f32.mrb[0].mxu0
        %v876 = vadd.f32 0.0, %v875
        %877 = vmatprep.mubr.f32.mxu0 0.0
        %878 = vmatmul.mubr.f32.gmra.mrb[0].mxu0 %v576
        %v879 = vpop.f32.mrb[0].mxu0
        %v880 = vadd.f32 0.0, %v879
        %v881 = vpop.f32.mrb[0].mxu0
        %v882 = vadd.f32 0.0, %v881
        %883 = vmatprep.mubr.f32.mxu0 0.0
        %884 = vmatmul.mubr.f32.gmra.mrb[0].mxu0 %v577
        %v885 = vpop.f32.mrb[0].mxu0
        %v886 = vadd.f32 0.0, %v885
        %v887 = vpop.f32.mrb[0].mxu0
        %v888 = vadd.f32 0.0, %v887
        %889 = vmatprep.mubr.f32.mxu0 0.0
        %890 = vmatmul.mubr.f32.gmra.mrb[0].mxu0 %v578
        %v891 = vpop.f32.mrb[0].mxu0
        %v892 = vadd.f32 0.0, %v891
        %v893 = vpop.f32.mrb[0].mxu0
        %v894 = vadd.f32 0.0, %v893
        %895 = vmatprep.mubr.f32.mxu0 0.0
        %896 = vmatmul.mubr.f32.gmra.mrb[0].mxu0 %v579
        %v897 = vpop.f32.mrb[0].mxu0
        %v898 = vadd.f32 0.0, %v897
        %v899 = vpop.f32.mrb[0].mxu0
        %v900 = vadd.f32 0.0, %v899
        %901 = vmatprep.mubr.f32.mxu0 0.0
        %902 = vmatmul.mubr.f32.gmra.mrb[0].mxu0 %v580
        %v903 = vpop.f32.mrb[0].mxu0
        %v904 = vadd.f32 0.0, %v903
        %v905 = vpop.f32.mrb[0].mxu0
        %v906 = vadd.f32 0.0, %v905
        %907 = vmatprep.mubr.f32.mxu0 0.0
        %908 = vmatmul.mubr.f32.gmra.mrb[0].mxu0 %v581
        %v909 = vpop.f32.mrb[0].mxu0
        %v910 = vadd.f32 0.0, %v909
        %v911 = vpop.f32.mrb[0].mxu0
        %v912 = vadd.f32 0.0, %v911
        %913 = vmatprep.mubr.f32.mxu0 0.0
        %914 = vmatmul.mubr.f32.gmra.mrb[0].mxu0 %v582
        %v915 = vpop.f32.mrb[0].mxu0
        %v916 = vadd.f32 0.0, %v915
        %v917 = vpop.f32.mrb[0].mxu0
        %v918 = vadd.f32 0.0, %v917
        %919 = vmatprep.mubr.f32.mxu0 0.0
        %920 = vmatmul.mubr.f32.gmra.mrb[0].mxu0 %v583
        %v921 = vpop.f32.mrb[0].mxu0
        %v922 = vadd.f32 0.0, %v921
        %v923 = vpop.f32.mrb[0].mxu0
        %v924 = vadd.f32 0.0, %v923
        %925 = vmatprep.mubr.f32.mxu0 0.0
        %926 = vmatmul.mubr.f32.gmra.mrb[0].mxu0 %v584
        %v927 = vpop.f32.mrb[0].mxu0
        %v928 = vadd.f32 0.0, %v927
        %v929 = vpop.f32.mrb[0].mxu0
        %v930 = vadd.f32 0.0, %v929
        %931 = vmatprep.mubr.f32.mxu0 0.0
        %932 = vmatmul.mubr.f32.gmra.mrb[0].mxu0 %v585
        %v933 = vpop.f32.mrb[0].mxu0
        %v934 = vadd.f32 0.0, %v933
        %v935 = vpop.f32.mrb[0].mxu0
        %v936 = vadd.f32 0.0, %v935
        %937 = vmatprep.mubr.f32.mxu0 0.0
        %938 = vmatmul.mubr.f32.gmra.mrb[0].mxu0 %v586
        %v939 = vpop.f32.mrb[0].mxu0
        %v940 = vadd.f32 0.0, %v939
        %v941 = vpop.f32.mrb[0].mxu0
        %v942 = vadd.f32 0.0, %v941
        %943 = vmatprep.mubr.f32.mxu0 0.0
        %944 = vmatmul.mubr.f32.gmra.mrb[0].mxu0 %v587
        %v945 = vpop.f32.mrb[0].mxu0
        %v946 = vadd.f32 0.0, %v945
        %v947 = vpop.f32.mrb[0].mxu0
        %v948 = vadd.f32 0.0, %v947
        %949 = vmatprep.mubr.f32.mxu0 0.0
        %950 = vmatmul.mubr.f32.gmra.mrb[0].mxu0 %v588
        %v951 = vpop.f32.mrb[0].mxu0
        %v952 = vadd.f32 0.0, %v951
        %v953 = vpop.f32.mrb[0].mxu0
        %v954 = vadd.f32 0.0, %v953
        %955 = vmatprep.mubr.f32.mxu0 0.0
        %956 = vmatmul.mubr.f32.gmra.mrb[0].mxu0 %v589
        %v957 = vpop.f32.mrb[0].mxu0
        %v958 = vadd.f32 0.0, %v957
        %v959 = vpop.f32.mrb[0].mxu0
        %v960 = vadd.f32 0.0, %v959
        %961 = vmatprep.mubr.f32.mxu0 0.0
        %962 = vmatmul.mubr.f32.gmra.mrb[0].mxu0 %v590
        %v963 = vpop.f32.mrb[0].mxu0
        %v964 = vadd.f32 0.0, %v963
        %v965 = vpop.f32.mrb[0].mxu0
        %v966 = vadd.f32 0.0, %v965
        %967 = vmatprep.mubr.f32.mxu0 0.0
        %968 = vmatmul.mubr.f32.gmra.mrb[0].mxu0 %v591
        %v969 = vpop.f32.mrb[0].mxu0
        %v970 = vadd.f32 0.0, %v969
        %v971 = vpop.f32.mrb[0].mxu0
        %v972 = vadd.f32 0.0, %v971
        %973 = vmatprep.mubr.f32.mxu0 0.0
        %974 = vmatmul.mubr.f32.gmra.mrb[0].mxu0 %v592
        %v975 = vpop.f32.mrb[0].mxu0
        %v976 = vadd.f32 0.0, %v975
        %v977 = vpop.f32.mrb[0].mxu0
        %v978 = vadd.f32 0.0, %v977
        %979 = vmatprep.mubr.f32.mxu0 0.0
        %980 = vmatmul.mubr.f32.gmra.mrb[0].mxu0 %v593
        %v981 = vpop.f32.mrb[0].mxu0
        %v982 = vadd.f32 0.0, %v981
        %v983 = vpop.f32.mrb[0].mxu0
        %v984 = vadd.f32 0.0, %v983
        %985 = vmatprep.mubr.f32.mxu0 0.0
        %986 = vmatmul.mubr.f32.gmra.mrb[0].mxu0 %v594
        %v987 = vpop.f32.mrb[0].mxu0
        %v988 = vadd.f32 0.0, %v987
        %v989 = vpop.f32.mrb[0].mxu0
        %v990 = vadd.f32 0.0, %v989
        %991 = vmatprep.mubr.f32.mxu0 0.0
        %992 = vmatmul.mubr.f32.gmra.mrb[0].mxu0 %v595
        %v993 = vpop.f32.mrb[0].mxu0
        %v994 = vadd.f32 0.0, %v993
        %v995 = vpop.f32.mrb[0].mxu0
        %v996 = vadd.f32 0.0, %v995
        %997 = vmatprep.mubr.f32.mxu0 0.0
        %998 = vmatmul.mubr.f32.gmra.mrb[0].mxu0 %v596
        %v999 = vpop.f32.mrb[0].mxu0
        %v1000 = vadd.f32 0.0, %v999
        %v1001 = vpop.f32.mrb[0].mxu0
        %v1002 = vadd.f32 0.0, %v1001
        %1003 = vmatprep.mubr.f32.mxu0 0.0
        %1004 = vmatmul.mubr.f32.gmra.mrb[0].mxu0 %v597
        %v1005 = vpop.f32.mrb[0].mxu0
        %v1006 = vadd.f32 0.0, %v1005
        %v1007 = vpop.f32.mrb[0].mxu0
        %v1008 = vadd.f32 0.0, %v1007
        %1009 = vmatprep.mubr.f32.mxu0 0.0
        %1010 = vmatmul.mubr.f32.gmra.mrb[0].mxu0 %v598
        %v1011 = vpop.f32.mrb[0].mxu0
        %v1012 = vadd.f32 0.0, %v1011
        %v1013 = vpop.f32.mrb[0].mxu0
        %v1014 = vadd.f32 0.0, %v1013
        %1015 = vdwg.mxu0
        %1016 = vmatprep.subr.mxu0 %v682
        %1017 = vmatpush1.msra.mxu0 %v681
        %1018 = vmatprep.subr.mxu0 %v687
        %1019 = vmatpush1.msra.mxu0 %v686
        %1020 = vmatprep.subr.mxu0 %v692
        %1021 = vmatpush1.msra.mxu0 %v691
        %1022 = vmatprep.subr.mxu0 %v697
        %1023 = vmatpush1.msra.mxu0 %v696
        %1024 = vmatprep.subr.mxu0 %v702
        %1025 = vmatpush1.msra.mxu0 %v701
        %1026 = vmatprep.subr.mxu0 %v707
        %1027 = vmatpush1.msra.mxu0 %v706
        %1028 = vmatprep.subr.mxu0 %v712
        %1029 = vmatpush1.msra.mxu0 %v711
        %1030 = vmatprep.subr.mxu0 %v717
        %1031 = vmatpush1.msra.mxu0 %v716
        %1032 = vmatprep.subr.mxu0 %v722
        %1033 = vmatpush1.msra.mxu0 %v721
        %1034 = vmatprep.subr.mxu0 %v727
        %1035 = vmatpush1.msra.mxu0 %v726
        %1036 = vmatprep.subr.mxu0 %v732
        %1037 = vmatpush1.msra.mxu0 %v731
        %1038 = vmatprep.subr.mxu0 %v737
        %1039 = vmatpush1.msra.mxu0 %v736
        %1040 = vmatprep.subr.mxu0 %v742
        %1041 = vmatpush1.msra.mxu0 %v741
        %1042 = vmatprep.subr.mxu0 %v747
        %1043 = vmatpush1.msra.mxu0 %v746
        %1044 = vmatprep.subr.mxu0 %v752
        %1045 = vmatpush1.msra.mxu0 %v751
        %1046 = vmatprep.subr.mxu0 %v757
        %1047 = vmatpush1.msra.mxu0 %v756
        %1048 = vmatprep.subr.mxu0 0.0
        %1049 = vmatpush1.msra.mxu0 0.0
        %1050 = vmatprep.subr.mxu0 0.0
        %1051 = vmatpush1.msra.mxu0 0.0
        %1052 = vmatprep.subr.mxu0 0.0
        %1053 = vmatpush1.msra.mxu0 0.0
        %1054 = vmatprep.subr.mxu0 0.0
        %1055 = vmatpush1.msra.mxu0 0.0
        %1056 = vmatprep.subr.mxu0 0.0
        %1057 = vmatpush1.msra.mxu0 0.0
        %1058 = vmatprep.subr.mxu0 0.0
        %1059 = vmatpush1.msra.mxu0 0.0
        %1060 = vmatprep.subr.mxu0 0.0
        %1061 = vmatpush1.msra.mxu0 0.0
        %1062 = vmatprep.subr.mxu0 0.0
        %1063 = vmatpush1.msra.mxu0 0.0
        %1064 = vmatprep.subr.mxu0 0.0
        %1065 = vmatpush1.msra.mxu0 0.0
        %1066 = vmatprep.subr.mxu0 0.0
        %1067 = vmatpush1.msra.mxu0 0.0
        %1068 = vmatprep.subr.mxu0 0.0
        %1069 = vmatpush1.msra.mxu0 0.0
        %1070 = vmatprep.subr.mxu0 0.0
        %1071 = vmatpush1.msra.mxu0 0.0
        %1072 = vmatprep.subr.mxu0 0.0
        %1073 = vmatpush1.msra.mxu0 0.0
        %1074 = vmatprep.subr.mxu0 0.0
        %1075 = vmatpush1.msra.mxu0 0.0
        %1076 = vmatprep.subr.mxu0 0.0
        %1077 = vmatpush1.msra.mxu0 0.0
        %1078 = vmatprep.subr.mxu0 0.0
        %1079 = vmatpush1.msra.mxu0 0.0
        %1080 = vmatprep.mubr.f32.mxu0 0.0
        %1081 = vmatmul.mubr.f32.gmra.mrb[0].mxu0 %v567
        %v1082 = vpop.f32.mrb[0].mxu0
        %v1083 = vadd.f32 0.0, %v1082
        %v1084 = vpop.f32.mrb[0].mxu0
        %v1085 = vadd.f32 0.0, %v1084
        %1086 = vmatprep.mubr.f32.mxu0 0.0
        %1087 = vmatmul.mubr.f32.gmra.mrb[0].mxu0 %v568
        %v1088 = vpop.f32.mrb[0].mxu0
        %v1089 = vadd.f32 0.0, %v1088
        %v1090 = vpop.f32.mrb[0].mxu0
        %v1091 = vadd.f32 0.0, %v1090
        %1092 = vmatprep.mubr.f32.mxu0 0.0
        %1093 = vmatmul.mubr.f32.gmra.mrb[0].mxu0 %v569
        %v1094 = vpop.f32.mrb[0].mxu0
        %v1095 = vadd.f32 0.0, %v1094
        %v1096 = vpop.f32.mrb[0].mxu0
        %v1097 = vadd.f32 0.0, %v1096
        %1098 = vmatprep.mubr.f32.mxu0 0.0
        %1099 = vmatmul.mubr.f32.gmra.mrb[0].mxu0 %v570
        %v1100 = vpop.f32.mrb[0].mxu0
        %v1101 = vadd.f32 0.0, %v1100
        %v1102 = vpop.f32.mrb[0].mxu0
        %v1103 = vadd.f32 0.0, %v1102
        %1104 = vmatprep.mubr.f32.mxu0 0.0
        %1105 = vmatmul.mubr.f32.gmra.mrb[0].mxu0 %v571
        %v1106 = vpop.f32.mrb[0].mxu0
        %v1107 = vadd.f32 0.0, %v1106
        %v1108 = vpop.f32.mrb[0].mxu0
        %v1109 = vadd.f32 0.0, %v1108
        %1110 = vmatprep.mubr.f32.mxu0 0.0
        %1111 = vmatmul.mubr.f32.gmra.mrb[0].mxu0 %v572
        %v1112 = vpop.f32.mrb[0].mxu0
        %v1113 = vadd.f32 0.0, %v1112
        %v1114 = vpop.f32.mrb[0].mxu0
        %v1115 = vadd.f32 0.0, %v1114
        %1116 = vmatprep.mubr.f32.mxu0 0.0
        %1117 = vmatmul.mubr.f32.gmra.mrb[0].mxu0 %v573
        %v1118 = vpop.f32.mrb[0].mxu0
        %v1119 = vadd.f32 0.0, %v1118
        %v1120 = vpop.f32.mrb[0].mxu0
        %v1121 = vadd.f32 0.0, %v1120
        %1122 = vmatprep.mubr.f32.mxu0 0.0
        %1123 = vmatmul.mubr.f32.gmra.mrb[0].mxu0 %v574
        %v1124 = vpop.f32.mrb[0].mxu0
        %v1125 = vadd.f32 0.0, %v1124
        %v1126 = vpop.f32.mrb[0].mxu0
        %v1127 = vadd.f32 0.0, %v1126
        %1128 = vmatprep.mubr.f32.mxu0 0.0
        %1129 = vmatmul.mubr.f32.gmra.mrb[0].mxu0 %v575
        %v1130 = vpop.f32.mrb[0].mxu0
        %v1131 = vadd.f32 0.0, %v1130
        %v1132 = vpop.f32.mrb[0].mxu0
        %v1133 = vadd.f32 0.0, %v1132
        %1134 = vmatprep.mubr.f32.mxu0 0.0
        %1135 = vmatmul.mubr.f32.gmra.mrb[0].mxu0 %v576
        %v1136 = vpop.f32.mrb[0].mxu0
        %v1137 = vadd.f32 0.0, %v1136
        %v1138 = vpop.f32.mrb[0].mxu0
        %v1139 = vadd.f32 0.0, %v1138
        %1140 = vmatprep.mubr.f32.mxu0 0.0
        %1141 = vmatmul.mubr.f32.gmra.mrb[0].mxu0 %v577
        %v1142 = vpop.f32.mrb[0].mxu0
        %v1143 = vadd.f32 0.0, %v1142
        %v1144 = vpop.f32.mrb[0].mxu0
        %v1145 = vadd.f32 0.0, %v1144
        %1146 = vmatprep.mubr.f32.mxu0 0.0
        %1147 = vmatmul.mubr.f32.gmra.mrb[0].mxu0 %v578
        %v1148 = vpop.f32.mrb[0].mxu0
        %v1149 = vadd.f32 0.0, %v1148
        %v1150 = vpop.f32.mrb[0].mxu0
        %v1151 = vadd.f32 0.0, %v1150
        %1152 = vmatprep.mubr.f32.mxu0 0.0
        %1153 = vmatmul.mubr.f32.gmra.mrb[0].mxu0 %v579
        %v1154 = vpop.f32.mrb[0].mxu0
        %v1155 = vadd.f32 0.0, %v1154
        %v1156 = vpop.f32.mrb[0].mxu0
        %v1157 = vadd.f32 0.0, %v1156
        %1158 = vmatprep.mubr.f32.mxu0 0.0
        %1159 = vmatmul.mubr.f32.gmra.mrb[0].mxu0 %v580
        %v1160 = vpop.f32.mrb[0].mxu0
        %v1161 = vadd.f32 0.0, %v1160
        %v1162 = vpop.f32.mrb[0].mxu0
        %v1163 = vadd.f32 0.0, %v1162
        %1164 = vmatprep.mubr.f32.mxu0 0.0
        %1165 = vmatmul.mubr.f32.gmra.mrb[0].mxu0 %v581
        %v1166 = vpop.f32.mrb[0].mxu0
        %v1167 = vadd.f32 0.0, %v1166
        %v1168 = vpop.f32.mrb[0].mxu0
        %v1169 = vadd.f32 0.0, %v1168
        %1170 = vmatprep.mubr.f32.mxu0 0.0
        %1171 = vmatmul.mubr.f32.gmra.mrb[0].mxu0 %v582
        %v1172 = vpop.f32.mrb[0].mxu0
        %v1173 = vadd.f32 0.0, %v1172
        %v1174 = vpop.f32.mrb[0].mxu0
        %v1175 = vadd.f32 0.0, %v1174
        %1176 = vmatprep.mubr.f32.mxu0 0.0
        %1177 = vmatmul.mubr.f32.gmra.mrb[0].mxu0 %v583
        %v1178 = vpop.f32.mrb[0].mxu0
        %v1179 = vadd.f32 0.0, %v1178
        %v1180 = vpop.f32.mrb[0].mxu0
        %v1181 = vadd.f32 0.0, %v1180
        %1182 = vmatprep.mubr.f32.mxu0 0.0
        %1183 = vmatmul.mubr.f32.gmra.mrb[0].mxu0 %v584
        %v1184 = vpop.f32.mrb[0].mxu0
        %v1185 = vadd.f32 0.0, %v1184
        %v1186 = vpop.f32.mrb[0].mxu0
        %v1187 = vadd.f32 0.0, %v1186
        %1188 = vmatprep.mubr.f32.mxu0 0.0
        %1189 = vmatmul.mubr.f32.gmra.mrb[0].mxu0 %v585
        %v1190 = vpop.f32.mrb[0].mxu0
        %v1191 = vadd.f32 0.0, %v1190
        %v1192 = vpop.f32.mrb[0].mxu0
        %v1193 = vadd.f32 0.0, %v1192
        %1194 = vmatprep.mubr.f32.mxu0 0.0
        %1195 = vmatmul.mubr.f32.gmra.mrb[0].mxu0 %v586
        %v1196 = vpop.f32.mrb[0].mxu0
        %v1197 = vadd.f32 0.0, %v1196
        %v1198 = vpop.f32.mrb[0].mxu0
        %v1199 = vadd.f32 0.0, %v1198
        %1200 = vmatprep.mubr.f32.mxu0 0.0
        %1201 = vmatmul.mubr.f32.gmra.mrb[0].mxu0 %v587
        %v1202 = vpop.f32.mrb[0].mxu0
        %v1203 = vadd.f32 0.0, %v1202
        %v1204 = vpop.f32.mrb[0].mxu0
        %v1205 = vadd.f32 0.0, %v1204
        %1206 = vmatprep.mubr.f32.mxu0 0.0
        %1207 = vmatmul.mubr.f32.gmra.mrb[0].mxu0 %v588
        %v1208 = vpop.f32.mrb[0].mxu0
        %v1209 = vadd.f32 0.0, %v1208
        %v1210 = vpop.f32.mrb[0].mxu0
        %v1211 = vadd.f32 0.0, %v1210
        %1212 = vmatprep.mubr.f32.mxu0 0.0
        %1213 = vmatmul.mubr.f32.gmra.mrb[0].mxu0 %v589
        %v1214 = vpop.f32.mrb[0].mxu0
        %v1215 = vadd.f32 0.0, %v1214
        %v1216 = vpop.f32.mrb[0].mxu0
        %v1217 = vadd.f32 0.0, %v1216
        %1218 = vmatprep.mubr.f32.mxu0 0.0
        %1219 = vmatmul.mubr.f32.gmra.mrb[0].mxu0 %v590
        %v1220 = vpop.f32.mrb[0].mxu0
        %v1221 = vadd.f32 0.0, %v1220
        %v1222 = vpop.f32.mrb[0].mxu0
        %v1223 = vadd.f32 0.0, %v1222
        %1224 = vmatprep.mubr.f32.mxu0 0.0
        %1225 = vmatmul.mubr.f32.gmra.mrb[0].mxu0 %v591
        %v1226 = vpop.f32.mrb[0].mxu0
        %v1227 = vadd.f32 0.0, %v1226
        %v1228 = vpop.f32.mrb[0].mxu0
        %v1229 = vadd.f32 0.0, %v1228
        %1230 = vmatprep.mubr.f32.mxu0 0.0
        %1231 = vmatmul.mubr.f32.gmra.mrb[0].mxu0 %v592
        %v1232 = vpop.f32.mrb[0].mxu0
        %v1233 = vadd.f32 0.0, %v1232
        %v1234 = vpop.f32.mrb[0].mxu0
        %v1235 = vadd.f32 0.0, %v1234
        %1236 = vmatprep.mubr.f32.mxu0 0.0
        %1237 = vmatmul.mubr.f32.gmra.mrb[0].mxu0 %v593
        %v1238 = vpop.f32.mrb[0].mxu0
        %v1239 = vadd.f32 0.0, %v1238
        %v1240 = vpop.f32.mrb[0].mxu0
        %v1241 = vadd.f32 0.0, %v1240
        %1242 = vmatprep.mubr.f32.mxu0 0.0
        %1243 = vmatmul.mubr.f32.gmra.mrb[0].mxu0 %v594
        %v1244 = vpop.f32.mrb[0].mxu0
        %v1245 = vadd.f32 0.0, %v1244
        %v1246 = vpop.f32.mrb[0].mxu0
        %v1247 = vadd.f32 0.0, %v1246
        %1248 = vmatprep.mubr.f32.mxu0 0.0
        %1249 = vmatmul.mubr.f32.gmra.mrb[0].mxu0 %v595
        %v1250 = vpop.f32.mrb[0].mxu0
        %v1251 = vadd.f32 0.0, %v1250
        %v1252 = vpop.f32.mrb[0].mxu0
        %v1253 = vadd.f32 0.0, %v1252
        %1254 = vmatprep.mubr.f32.mxu0 0.0
        %1255 = vmatmul.mubr.f32.gmra.mrb[0].mxu0 %v596
        %v1256 = vpop.f32.mrb[0].mxu0
        %v1257 = vadd.f32 0.0, %v1256
        %v1258 = vpop.f32.mrb[0].mxu0
        %v1259 = vadd.f32 0.0, %v1258
        %1260 = vmatprep.mubr.f32.mxu0 0.0
        %1261 = vmatmul.mubr.f32.gmra.mrb[0].mxu0 %v597
        %v1262 = vpop.f32.mrb[0].mxu0
        %v1263 = vadd.f32 0.0, %v1262
        %v1264 = vpop.f32.mrb[0].mxu0
        %v1265 = vadd.f32 0.0, %v1264
        %1266 = vmatprep.mubr.f32.mxu0 0.0
        %1267 = vmatmul.mubr.f32.gmra.mrb[0].mxu0 %v598
        %v1268 = vpop.f32.mrb[0].mxu0
        %v1269 = vadd.f32 0.0, %v1268
        %v1270 = vpop.f32.mrb[0].mxu0
        %v1271 = vadd.f32 0.0, %v1270
        %1272 = vdwg.mxu0
        %1273 = vmatprep.subr.mxu0 0.0
        %1274 = vmatpush1.msra.mxu0 %v683
        %1275 = vmatprep.subr.mxu0 0.0
        %1276 = vmatpush1.msra.mxu0 %v688
        %1277 = vmatprep.subr.mxu0 0.0
        %1278 = vmatpush1.msra.mxu0 %v693
        %1279 = vmatprep.subr.mxu0 0.0
        %1280 = vmatpush1.msra.mxu0 %v698
        %1281 = vmatprep.subr.mxu0 0.0
        %1282 = vmatpush1.msra.mxu0 %v703
        %1283 = vmatprep.subr.mxu0 0.0
        %1284 = vmatpush1.msra.mxu0 %v708
        %1285 = vmatprep.subr.mxu0 0.0
        %1286 = vmatpush1.msra.mxu0 %v713
        %1287 = vmatprep.subr.mxu0 0.0
        %1288 = vmatpush1.msra.mxu0 %v718
        %1289 = vmatprep.subr.mxu0 0.0
        %1290 = vmatpush1.msra.mxu0 %v723
        %1291 = vmatprep.subr.mxu0 0.0
        %1292 = vmatpush1.msra.mxu0 %v728
        %1293 = vmatprep.subr.mxu0 0.0
        %1294 = vmatpush1.msra.mxu0 %v733
        %1295 = vmatprep.subr.mxu0 0.0
        %1296 = vmatpush1.msra.mxu0 %v738
        %1297 = vmatprep.subr.mxu0 0.0
        %1298 = vmatpush1.msra.mxu0 %v743
        %1299 = vmatprep.subr.mxu0 0.0
        %1300 = vmatpush1.msra.mxu0 %v748
        %1301 = vmatprep.subr.mxu0 0.0
        %1302 = vmatpush1.msra.mxu0 %v753
        %1303 = vmatprep.subr.mxu0 0.0
        %1304 = vmatpush1.msra.mxu0 %v758
        %1305 = vmatprep.subr.mxu0 0.0
        %1306 = vmatpush1.msra.mxu0 0.0
        %1307 = vmatprep.subr.mxu0 0.0
        %1308 = vmatpush1.msra.mxu0 0.0
        %1309 = vmatprep.subr.mxu0 0.0
        %1310 = vmatpush1.msra.mxu0 0.0
        %1311 = vmatprep.subr.mxu0 0.0
        %1312 = vmatpush1.msra.mxu0 0.0
        %1313 = vmatprep.subr.mxu0 0.0
        %1314 = vmatpush1.msra.mxu0 0.0
        %1315 = vmatprep.subr.mxu0 0.0
        %1316 = vmatpush1.msra.mxu0 0.0
        %1317 = vmatprep.subr.mxu0 0.0
        %1318 = vmatpush1.msra.mxu0 0.0
        %1319 = vmatprep.subr.mxu0 0.0
        %1320 = vmatpush1.msra.mxu0 0.0
        %1321 = vmatprep.subr.mxu0 0.0
        %1322 = vmatpush1.msra.mxu0 0.0
        %1323 = vmatprep.subr.mxu0 0.0
        %1324 = vmatpush1.msra.mxu0 0.0
        %1325 = vmatprep.subr.mxu0 0.0
        %1326 = vmatpush1.msra.mxu0 0.0
        %1327 = vmatprep.subr.mxu0 0.0
        %1328 = vmatpush1.msra.mxu0 0.0
        %1329 = vmatprep.subr.mxu0 0.0
        %1330 = vmatpush1.msra.mxu0 0.0
        %1331 = vmatprep.subr.mxu0 0.0
        %1332 = vmatpush1.msra.mxu0 0.0
        %1333 = vmatprep.subr.mxu0 0.0
        %1334 = vmatpush1.msra.mxu0 0.0
        %1335 = vmatprep.subr.mxu0 0.0
        %1336 = vmatpush1.msra.mxu0 0.0
        %1337 = vmatprep.mubr.f32.mxu0 0.0
        %1338 = vmatmul.mubr.f32.gmra.mrb[0].mxu0 %v567
        %v1339 = vpop.f32.mrb[0].mxu0
        %v1340 = vadd.f32 0.0, %v1339
        %v1341 = vpop.f32.mrb[0].mxu0
        %1342 = vmatprep.mubr.f32.mxu0 0.0
        %1343 = vmatmul.mubr.f32.gmra.mrb[0].mxu0 %v568
        %v1344 = vpop.f32.mrb[0].mxu0
        %v1345 = vadd.f32 0.0, %v1344
        %v1346 = vpop.f32.mrb[0].mxu0
        %1347 = vmatprep.mubr.f32.mxu0 0.0
        %1348 = vmatmul.mubr.f32.gmra.mrb[0].mxu0 %v569
        %v1349 = vpop.f32.mrb[0].mxu0
        %v1350 = vadd.f32 0.0, %v1349
        %v1351 = vpop.f32.mrb[0].mxu0
        %1352 = vmatprep.mubr.f32.mxu0 0.0
        %1353 = vmatmul.mubr.f32.gmra.mrb[0].mxu0 %v570
        %v1354 = vpop.f32.mrb[0].mxu0
        %v1355 = vadd.f32 0.0, %v1354
        %v1356 = vpop.f32.mrb[0].mxu0
        %1357 = vmatprep.mubr.f32.mxu0 0.0
        %1358 = vmatmul.mubr.f32.gmra.mrb[0].mxu0 %v571
        %v1359 = vpop.f32.mrb[0].mxu0
        %v1360 = vadd.f32 0.0, %v1359
        %v1361 = vpop.f32.mrb[0].mxu0
        %1362 = vmatprep.mubr.f32.mxu0 0.0
        %1363 = vmatmul.mubr.f32.gmra.mrb[0].mxu0 %v572
        %v1364 = vpop.f32.mrb[0].mxu0
        %v1365 = vadd.f32 0.0, %v1364
        %v1366 = vpop.f32.mrb[0].mxu0
        %1367 = vmatprep.mubr.f32.mxu0 0.0
        %1368 = vmatmul.mubr.f32.gmra.mrb[0].mxu0 %v573
        %v1369 = vpop.f32.mrb[0].mxu0
        %v1370 = vadd.f32 0.0, %v1369
        %v1371 = vpop.f32.mrb[0].mxu0
        %1372 = vmatprep.mubr.f32.mxu0 0.0
        %1373 = vmatmul.mubr.f32.gmra.mrb[0].mxu0 %v574
        %v1374 = vpop.f32.mrb[0].mxu0
        %v1375 = vadd.f32 0.0, %v1374
        %v1376 = vpop.f32.mrb[0].mxu0
        %1377 = vmatprep.mubr.f32.mxu0 0.0
        %1378 = vmatmul.mubr.f32.gmra.mrb[0].mxu0 %v575
        %v1379 = vpop.f32.mrb[0].mxu0
        %v1380 = vadd.f32 0.0, %v1379
        %v1381 = vpop.f32.mrb[0].mxu0
        %1382 = vmatprep.mubr.f32.mxu0 0.0
        %1383 = vmatmul.mubr.f32.gmra.mrb[0].mxu0 %v576
        %v1384 = vpop.f32.mrb[0].mxu0
        %v1385 = vadd.f32 0.0, %v1384
        %v1386 = vpop.f32.mrb[0].mxu0
        %1387 = vmatprep.mubr.f32.mxu0 0.0
        %1388 = vmatmul.mubr.f32.gmra.mrb[0].mxu0 %v577
        %v1389 = vpop.f32.mrb[0].mxu0
        %v1390 = vadd.f32 0.0, %v1389
        %v1391 = vpop.f32.mrb[0].mxu0
        %1392 = vmatprep.mubr.f32.mxu0 0.0
        %1393 = vmatmul.mubr.f32.gmra.mrb[0].mxu0 %v578
        %v1394 = vpop.f32.mrb[0].mxu0
        %v1395 = vadd.f32 0.0, %v1394
        %v1396 = vpop.f32.mrb[0].mxu0
        %1397 = vmatprep.mubr.f32.mxu0 0.0
        %1398 = vmatmul.mubr.f32.gmra.mrb[0].mxu0 %v579
        %v1399 = vpop.f32.mrb[0].mxu0
        %v1400 = vadd.f32 0.0, %v1399
        %v1401 = vpop.f32.mrb[0].mxu0
        %1402 = vmatprep.mubr.f32.mxu0 0.0
        %1403 = vmatmul.mubr.f32.gmra.mrb[0].mxu0 %v580
        %v1404 = vpop.f32.mrb[0].mxu0
        %v1405 = vadd.f32 0.0, %v1404
        %v1406 = vpop.f32.mrb[0].mxu0
        %1407 = vmatprep.mubr.f32.mxu0 0.0
        %1408 = vmatmul.mubr.f32.gmra.mrb[0].mxu0 %v581
        %v1409 = vpop.f32.mrb[0].mxu0
        %v1410 = vadd.f32 0.0, %v1409
        %v1411 = vpop.f32.mrb[0].mxu0
        %1412 = vmatprep.mubr.f32.mxu0 0.0
        %1413 = vmatmul.mubr.f32.gmra.mrb[0].mxu0 %v582
        %v1414 = vpop.f32.mrb[0].mxu0
        %v1415 = vadd.f32 0.0, %v1414
        %v1416 = vpop.f32.mrb[0].mxu0
        %1417 = vmatprep.mubr.f32.mxu0 0.0
        %1418 = vmatmul.mubr.f32.gmra.mrb[0].mxu0 %v583
        %v1419 = vpop.f32.mrb[0].mxu0
        %v1420 = vadd.f32 0.0, %v1419
        %v1421 = vpop.f32.mrb[0].mxu0
        %1422 = vmatprep.mubr.f32.mxu0 0.0
        %1423 = vmatmul.mubr.f32.gmra.mrb[0].mxu0 %v584
        %v1424 = vpop.f32.mrb[0].mxu0
        %v1425 = vadd.f32 0.0, %v1424
        %v1426 = vpop.f32.mrb[0].mxu0
        %1427 = vmatprep.mubr.f32.mxu0 0.0
        %1428 = vmatmul.mubr.f32.gmra.mrb[0].mxu0 %v585
        %v1429 = vpop.f32.mrb[0].mxu0
        %v1430 = vadd.f32 0.0, %v1429
        %v1431 = vpop.f32.mrb[0].mxu0
        %1432 = vmatprep.mubr.f32.mxu0 0.0
        %1433 = vmatmul.mubr.f32.gmra.mrb[0].mxu0 %v586
        %v1434 = vpop.f32.mrb[0].mxu0
        %v1435 = vadd.f32 0.0, %v1434
        %v1436 = vpop.f32.mrb[0].mxu0
        %1437 = vmatprep.mubr.f32.mxu0 0.0
        %1438 = vmatmul.mubr.f32.gmra.mrb[0].mxu0 %v587
        %v1439 = vpop.f32.mrb[0].mxu0
        %v1440 = vadd.f32 0.0, %v1439
        %v1441 = vpop.f32.mrb[0].mxu0
        %1442 = vmatprep.mubr.f32.mxu0 0.0
        %1443 = vmatmul.mubr.f32.gmra.mrb[0].mxu0 %v588
        %v1444 = vpop.f32.mrb[0].mxu0
        %v1445 = vadd.f32 0.0, %v1444
        %v1446 = vpop.f32.mrb[0].mxu0
        %1447 = vmatprep.mubr.f32.mxu0 0.0
        %1448 = vmatmul.mubr.f32.gmra.mrb[0].mxu0 %v589
        %v1449 = vpop.f32.mrb[0].mxu0
        %v1450 = vadd.f32 0.0, %v1449
        %v1451 = vpop.f32.mrb[0].mxu0
        %1452 = vmatprep.mubr.f32.mxu0 0.0
        %1453 = vmatmul.mubr.f32.gmra.mrb[0].mxu0 %v590
        %v1454 = vpop.f32.mrb[0].mxu0
        %v1455 = vadd.f32 0.0, %v1454
        %v1456 = vpop.f32.mrb[0].mxu0
        %1457 = vmatprep.mubr.f32.mxu0 0.0
        %1458 = vmatmul.mubr.f32.gmra.mrb[0].mxu0 %v591
        %v1459 = vpop.f32.mrb[0].mxu0
        %v1460 = vadd.f32 0.0, %v1459
        %v1461 = vpop.f32.mrb[0].mxu0
        %1462 = vmatprep.mubr.f32.mxu0 0.0
        %1463 = vmatmul.mubr.f32.gmra.mrb[0].mxu0 %v592
        %v1464 = vpop.f32.mrb[0].mxu0
        %v1465 = vadd.f32 0.0, %v1464
        %v1466 = vpop.f32.mrb[0].mxu0
        %1467 = vmatprep.mubr.f32.mxu0 0.0
        %1468 = vmatmul.mubr.f32.gmra.mrb[0].mxu0 %v593
        %v1469 = vpop.f32.mrb[0].mxu0
        %v1470 = vadd.f32 0.0, %v1469
        %v1471 = vpop.f32.mrb[0].mxu0
        %1472 = vmatprep.mubr.f32.mxu0 0.0
        %1473 = vmatmul.mubr.f32.gmra.mrb[0].mxu0 %v594
        %v1474 = vpop.f32.mrb[0].mxu0
        %v1475 = vadd.f32 0.0, %v1474
        %v1476 = vpop.f32.mrb[0].mxu0
        %1477 = vmatprep.mubr.f32.mxu0 0.0
        %1478 = vmatmul.mubr.f32.gmra.mrb[0].mxu0 %v595
        %v1479 = vpop.f32.mrb[0].mxu0
        %v1480 = vadd.f32 0.0, %v1479
        %v1481 = vpop.f32.mrb[0].mxu0
        %1482 = vmatprep.mubr.f32.mxu0 0.0
        %1483 = vmatmul.mubr.f32.gmra.mrb[0].mxu0 %v596
        %v1484 = vpop.f32.mrb[0].mxu0
        %v1485 = vadd.f32 0.0, %v1484
        %v1486 = vpop.f32.mrb[0].mxu0
        %1487 = vmatprep.mubr.f32.mxu0 0.0
        %1488 = vmatmul.mubr.f32.gmra.mrb[0].mxu0 %v597
        %v1489 = vpop.f32.mrb[0].mxu0
        %v1490 = vadd.f32 0.0, %v1489
        %v1491 = vpop.f32.mrb[0].mxu0
        %1492 = vmatprep.mubr.f32.mxu0 0.0
        %1493 = vmatmul.mubr.f32.gmra.mrb[0].mxu0 %v598
        %v1494 = vpop.f32.mrb[0].mxu0
        %v1495 = vadd.f32 0.0, %v1494
        %v1496 = vpop.f32.mrb[0].mxu0
        %1497 = vdwg.mxu0
        %1498 = vmatprep.subr.mxu0 %v600
        %1499 = vmatpush1.msra.mxu0 %v599
        %1500 = vmatprep.subr.mxu0 %v605
        %1501 = vmatpush1.msra.mxu0 %v604
        %1502 = vmatprep.subr.mxu0 %v610
        %1503 = vmatpush1.msra.mxu0 %v609
        %1504 = vmatprep.subr.mxu0 %v615
        %1505 = vmatpush1.msra.mxu0 %v614
        %1506 = vmatprep.subr.mxu0 %v620
        %1507 = vmatpush1.msra.mxu0 %v619
        %1508 = vmatprep.subr.mxu0 %v625
        %1509 = vmatpush1.msra.mxu0 %v624
        %1510 = vmatprep.subr.mxu0 %v630
        %1511 = vmatpush1.msra.mxu0 %v629
        %1512 = vmatprep.subr.mxu0 %v635
        %1513 = vmatpush1.msra.mxu0 %v634
        %1514 = vmatprep.subr.mxu0 %v640
        %1515 = vmatpush1.msra.mxu0 %v639
        %1516 = vmatprep.subr.mxu0 %v645
        %1517 = vmatpush1.msra.mxu0 %v644
        %1518 = vmatprep.subr.mxu0 %v650
        %1519 = vmatpush1.msra.mxu0 %v649
        %1520 = vmatprep.subr.mxu0 %v655
        %1521 = vmatpush1.msra.mxu0 %v654
        %1522 = vmatprep.subr.mxu0 %v660
        %1523 = vmatpush1.msra.mxu0 %v659
        %1524 = vmatprep.subr.mxu0 %v665
        %1525 = vmatpush1.msra.mxu0 %v664
        %1526 = vmatprep.subr.mxu0 %v670
        %1527 = vmatpush1.msra.mxu0 %v669
        %1528 = vmatprep.subr.mxu0 %v675
        %1529 = vmatpush1.msra.mxu0 %v674
        %1530 = vmatprep.subr.mxu0 0.0
        %1531 = vmatpush1.msra.mxu0 0.0
        %1532 = vmatprep.subr.mxu0 0.0
        %1533 = vmatpush1.msra.mxu0 0.0
        %1534 = vmatprep.subr.mxu0 0.0
        %1535 = vmatpush1.msra.mxu0 0.0
        %1536 = vmatprep.subr.mxu0 0.0
        %1537 = vmatpush1.msra.mxu0 0.0
        %1538 = vmatprep.subr.mxu0 0.0
        %1539 = vmatpush1.msra.mxu0 0.0
        %1540 = vmatprep.subr.mxu0 0.0
        %1541 = vmatpush1.msra.mxu0 0.0
        %1542 = vmatprep.subr.mxu0 0.0
        %1543 = vmatpush1.msra.mxu0 0.0
        %1544 = vmatprep.subr.mxu0 0.0
        %1545 = vmatpush1.msra.mxu0 0.0
        %1546 = vmatprep.subr.mxu0 0.0
        %1547 = vmatpush1.msra.mxu0 0.0
        %1548 = vmatprep.subr.mxu0 0.0
        %1549 = vmatpush1.msra.mxu0 0.0
        %1550 = vmatprep.subr.mxu0 0.0
        %1551 = vmatpush1.msra.mxu0 0.0
        %1552 = vmatprep.subr.mxu0 0.0
        %1553 = vmatpush1.msra.mxu0 0.0
        %1554 = vmatprep.subr.mxu0 0.0
        %1555 = vmatpush1.msra.mxu0 0.0
        %1556 = vmatprep.subr.mxu0 0.0
        %1557 = vmatpush1.msra.mxu0 0.0
        %1558 = vmatprep.subr.mxu0 0.0
        %1559 = vmatpush1.msra.mxu0 0.0
        %1560 = vmatprep.subr.mxu0 0.0
        %1561 = vmatpush1.msra.mxu0 0.0
        %1562 = vmatprep.mubr.f32.mxu0 0.0
        %1563 = vmatmul.mubr.f32.gmra.mrb[0].mxu0 %v535
        %v1564 = vpop.f32.mrb[0].mxu0
        %v1565 = vadd.f32 %v826, %v1564
        %v1566 = vpop.f32.mrb[0].mxu0
        %v1567 = vadd.f32 %v828, %v1566
        %1568 = vmatprep.mubr.f32.mxu0 0.0
        %1569 = vmatmul.mubr.f32.gmra.mrb[0].mxu0 %v536
        %v1570 = vpop.f32.mrb[0].mxu0
        %v1571 = vadd.f32 %v832, %v1570
        %v1572 = vpop.f32.mrb[0].mxu0
        %v1573 = vadd.f32 %v834, %v1572
        %1574 = vmatprep.mubr.f32.mxu0 0.0
        %1575 = vmatmul.mubr.f32.gmra.mrb[0].mxu0 %v537
        %v1576 = vpop.f32.mrb[0].mxu0
        %v1577 = vadd.f32 %v838, %v1576
        %v1578 = vpop.f32.mrb[0].mxu0
        %v1579 = vadd.f32 %v840, %v1578
        %1580 = vmatprep.mubr.f32.mxu0 0.0
        %1581 = vmatmul.mubr.f32.gmra.mrb[0].mxu0 %v538
        %v1582 = vpop.f32.mrb[0].mxu0
        %v1583 = vadd.f32 %v844, %v1582
        %v1584 = vpop.f32.mrb[0].mxu0
        %v1585 = vadd.f32 %v846, %v1584
        %1586 = vmatprep.mubr.f32.mxu0 0.0
        %1587 = vmatmul.mubr.f32.gmra.mrb[0].mxu0 %v539
        %v1588 = vpop.f32.mrb[0].mxu0
        %v1589 = vadd.f32 %v850, %v1588
        %v1590 = vpop.f32.mrb[0].mxu0
        %v1591 = vadd.f32 %v852, %v1590
        %1592 = vmatprep.mubr.f32.mxu0 0.0
        %1593 = vmatmul.mubr.f32.gmra.mrb[0].mxu0 %v540
        %v1594 = vpop.f32.mrb[0].mxu0
        %v1595 = vadd.f32 %v856, %v1594
        %v1596 = vpop.f32.mrb[0].mxu0
        %v1597 = vadd.f32 %v858, %v1596
        %1598 = vmatprep.mubr.f32.mxu0 0.0
        %1599 = vmatmul.mubr.f32.gmra.mrb[0].mxu0 %v541
        %v1600 = vpop.f32.mrb[0].mxu0
        %v1601 = vadd.f32 %v862, %v1600
        %v1602 = vpop.f32.mrb[0].mxu0
        %v1603 = vadd.f32 %v864, %v1602
        %1604 = vmatprep.mubr.f32.mxu0 0.0
        %1605 = vmatmul.mubr.f32.gmra.mrb[0].mxu0 %v542
        %v1606 = vpop.f32.mrb[0].mxu0
        %v1607 = vadd.f32 %v868, %v1606
        %v1608 = vpop.f32.mrb[0].mxu0
        %v1609 = vadd.f32 %v870, %v1608
        %1610 = vmatprep.mubr.f32.mxu0 0.0
        %1611 = vmatmul.mubr.f32.gmra.mrb[0].mxu0 %v543
        %v1612 = vpop.f32.mrb[0].mxu0
        %v1613 = vadd.f32 %v874, %v1612
        %v1614 = vpop.f32.mrb[0].mxu0
        %v1615 = vadd.f32 %v876, %v1614
        %1616 = vmatprep.mubr.f32.mxu0 0.0
        %1617 = vmatmul.mubr.f32.gmra.mrb[0].mxu0 %v544
        %v1618 = vpop.f32.mrb[0].mxu0
        %v1619 = vadd.f32 %v880, %v1618
        %v1620 = vpop.f32.mrb[0].mxu0
        %v1621 = vadd.f32 %v882, %v1620
        %1622 = vmatprep.mubr.f32.mxu0 0.0
        %1623 = vmatmul.mubr.f32.gmra.mrb[0].mxu0 %v545
        %v1624 = vpop.f32.mrb[0].mxu0
        %v1625 = vadd.f32 %v886, %v1624
        %v1626 = vpop.f32.mrb[0].mxu0
        %v1627 = vadd.f32 %v888, %v1626
        %1628 = vmatprep.mubr.f32.mxu0 0.0
        %1629 = vmatmul.mubr.f32.gmra.mrb[0].mxu0 %v546
        %v1630 = vpop.f32.mrb[0].mxu0
        %v1631 = vadd.f32 %v892, %v1630
        %v1632 = vpop.f32.mrb[0].mxu0
        %v1633 = vadd.f32 %v894, %v1632
        %1634 = vmatprep.mubr.f32.mxu0 0.0
        %1635 = vmatmul.mubr.f32.gmra.mrb[0].mxu0 %v547
        %v1636 = vpop.f32.mrb[0].mxu0
        %v1637 = vadd.f32 %v898, %v1636
        %v1638 = vpop.f32.mrb[0].mxu0
        %v1639 = vadd.f32 %v900, %v1638
        %1640 = vmatprep.mubr.f32.mxu0 0.0
        %1641 = vmatmul.mubr.f32.gmra.mrb[0].mxu0 %v548
        %v1642 = vpop.f32.mrb[0].mxu0
        %v1643 = vadd.f32 %v904, %v1642
        %v1644 = vpop.f32.mrb[0].mxu0
        %v1645 = vadd.f32 %v906, %v1644
        %1646 = vmatprep.mubr.f32.mxu0 0.0
        %1647 = vmatmul.mubr.f32.gmra.mrb[0].mxu0 %v549
        %v1648 = vpop.f32.mrb[0].mxu0
        %v1649 = vadd.f32 %v910, %v1648
        %v1650 = vpop.f32.mrb[0].mxu0
        %v1651 = vadd.f32 %v912, %v1650
        %1652 = vmatprep.mubr.f32.mxu0 0.0
        %1653 = vmatmul.mubr.f32.gmra.mrb[0].mxu0 %v550
        %v1654 = vpop.f32.mrb[0].mxu0
        %v1655 = vadd.f32 %v916, %v1654
        %v1656 = vpop.f32.mrb[0].mxu0
        %v1657 = vadd.f32 %v918, %v1656
        %1658 = vmatprep.mubr.f32.mxu0 0.0
        %1659 = vmatmul.mubr.f32.gmra.mrb[0].mxu0 %v551
        %v1660 = vpop.f32.mrb[0].mxu0
        %v1661 = vadd.f32 %v922, %v1660
        %v1662 = vpop.f32.mrb[0].mxu0
        %v1663 = vadd.f32 %v924, %v1662
        %1664 = vmatprep.mubr.f32.mxu0 0.0
        %1665 = vmatmul.mubr.f32.gmra.mrb[0].mxu0 %v552
        %v1666 = vpop.f32.mrb[0].mxu0
        %v1667 = vadd.f32 %v928, %v1666
        %v1668 = vpop.f32.mrb[0].mxu0
        %v1669 = vadd.f32 %v930, %v1668
        %1670 = vmatprep.mubr.f32.mxu0 0.0
        %1671 = vmatmul.mubr.f32.gmra.mrb[0].mxu0 %v553
        %v1672 = vpop.f32.mrb[0].mxu0
        %v1673 = vadd.f32 %v934, %v1672
        %v1674 = vpop.f32.mrb[0].mxu0
        %v1675 = vadd.f32 %v936, %v1674
        %1676 = vmatprep.mubr.f32.mxu0 0.0
        %1677 = vmatmul.mubr.f32.gmra.mrb[0].mxu0 %v554
        %v1678 = vpop.f32.mrb[0].mxu0
        %v1679 = vadd.f32 %v940, %v1678
        %v1680 = vpop.f32.mrb[0].mxu0
        %v1681 = vadd.f32 %v942, %v1680
        %1682 = vmatprep.mubr.f32.mxu0 0.0
        %1683 = vmatmul.mubr.f32.gmra.mrb[0].mxu0 %v555
        %v1684 = vpop.f32.mrb[0].mxu0
        %v1685 = vadd.f32 %v946, %v1684
        %v1686 = vpop.f32.mrb[0].mxu0
        %v1687 = vadd.f32 %v948, %v1686
        %1688 = vmatprep.mubr.f32.mxu0 0.0
        %1689 = vmatmul.mubr.f32.gmra.mrb[0].mxu0 %v556
        %v1690 = vpop.f32.mrb[0].mxu0
        %v1691 = vadd.f32 %v952, %v1690
        %v1692 = vpop.f32.mrb[0].mxu0
        %v1693 = vadd.f32 %v954, %v1692
        %1694 = vmatprep.mubr.f32.mxu0 0.0
        %1695 = vmatmul.mubr.f32.gmra.mrb[0].mxu0 %v557
        %v1696 = vpop.f32.mrb[0].mxu0
        %v1697 = vadd.f32 %v958, %v1696
        %v1698 = vpop.f32.mrb[0].mxu0
        %v1699 = vadd.f32 %v960, %v1698
        %1700 = vmatprep.mubr.f32.mxu0 0.0
        %1701 = vmatmul.mubr.f32.gmra.mrb[0].mxu0 %v558
        %v1702 = vpop.f32.mrb[0].mxu0
        %v1703 = vadd.f32 %v964, %v1702
        %v1704 = vpop.f32.mrb[0].mxu0
        %v1705 = vadd.f32 %v966, %v1704
        %1706 = vmatprep.mubr.f32.mxu0 0.0
        %1707 = vmatmul.mubr.f32.gmra.mrb[0].mxu0 %v559
        %v1708 = vpop.f32.mrb[0].mxu0
        %v1709 = vadd.f32 %v970, %v1708
        %v1710 = vpop.f32.mrb[0].mxu0
        %v1711 = vadd.f32 %v972, %v1710
        %1712 = vmatprep.mubr.f32.mxu0 0.0
        %1713 = vmatmul.mubr.f32.gmra.mrb[0].mxu0 %v560
        %v1714 = vpop.f32.mrb[0].mxu0
        %v1715 = vadd.f32 %v976, %v1714
        %v1716 = vpop.f32.mrb[0].mxu0
        %v1717 = vadd.f32 %v978, %v1716
        %1718 = vmatprep.mubr.f32.mxu0 0.0
        %1719 = vmatmul.mubr.f32.gmra.mrb[0].mxu0 %v561
        %v1720 = vpop.f32.mrb[0].mxu0
        %v1721 = vadd.f32 %v982, %v1720
        %v1722 = vpop.f32.mrb[0].mxu0
        %v1723 = vadd.f32 %v984, %v1722
        %1724 = vmatprep.mubr.f32.mxu0 0.0
        %1725 = vmatmul.mubr.f32.gmra.mrb[0].mxu0 %v562
        %v1726 = vpop.f32.mrb[0].mxu0
        %v1727 = vadd.f32 %v988, %v1726
        %v1728 = vpop.f32.mrb[0].mxu0
        %v1729 = vadd.f32 %v990, %v1728
        %1730 = vmatprep.mubr.f32.mxu0 0.0
        %1731 = vmatmul.mubr.f32.gmra.mrb[0].mxu0 %v563
        %v1732 = vpop.f32.mrb[0].mxu0
        %v1733 = vadd.f32 %v994, %v1732
        %v1734 = vpop.f32.mrb[0].mxu0
        %v1735 = vadd.f32 %v996, %v1734
        %1736 = vmatprep.mubr.f32.mxu0 0.0
        %1737 = vmatmul.mubr.f32.gmra.mrb[0].mxu0 %v564
        %v1738 = vpop.f32.mrb[0].mxu0
        %v1739 = vadd.f32 %v1000, %v1738
        %v1740 = vpop.f32.mrb[0].mxu0
        %v1741 = vadd.f32 %v1002, %v1740
        %1742 = vmatprep.mubr.f32.mxu0 0.0
        %1743 = vmatmul.mubr.f32.gmra.mrb[0].mxu0 %v565
        %v1744 = vpop.f32.mrb[0].mxu0
        %v1745 = vadd.f32 %v1006, %v1744
        %v1746 = vpop.f32.mrb[0].mxu0
        %v1747 = vadd.f32 %v1008, %v1746
        %1748 = vmatprep.mubr.f32.mxu0 0.0
        %1749 = vmatmul.mubr.f32.gmra.mrb[0].mxu0 %v566
        %v1750 = vpop.f32.mrb[0].mxu0
        %v1751 = vadd.f32 %v1012, %v1750
        %v1752 = vpop.f32.mrb[0].mxu0
        %v1753 = vadd.f32 %v1014, %v1752
        %1754 = vdwg.mxu0
        %1755 = vmatprep.subr.mxu0 %v602
        %1756 = vmatpush1.msra.mxu0 %v601
        %1757 = vmatprep.subr.mxu0 %v607
        %1758 = vmatpush1.msra.mxu0 %v606
        %1759 = vmatprep.subr.mxu0 %v612
        %1760 = vmatpush1.msra.mxu0 %v611
        %1761 = vmatprep.subr.mxu0 %v617
        %1762 = vmatpush1.msra.mxu0 %v616
        %1763 = vmatprep.subr.mxu0 %v622
        %1764 = vmatpush1.msra.mxu0 %v621
        %1765 = vmatprep.subr.mxu0 %v627
        %1766 = vmatpush1.msra.mxu0 %v626
        %1767 = vmatprep.subr.mxu0 %v632
        %1768 = vmatpush1.msra.mxu0 %v631
        %1769 = vmatprep.subr.mxu0 %v637
        %1770 = vmatpush1.msra.mxu0 %v636
        %1771 = vmatprep.subr.mxu0 %v642
        %1772 = vmatpush1.msra.mxu0 %v641
        %1773 = vmatprep.subr.mxu0 %v647
        %1774 = vmatpush1.msra.mxu0 %v646
        %1775 = vmatprep.subr.mxu0 %v652
        %1776 = vmatpush1.msra.mxu0 %v651
        %1777 = vmatprep.subr.mxu0 %v657
        %1778 = vmatpush1.msra.mxu0 %v656
        %1779 = vmatprep.subr.mxu0 %v662
        %1780 = vmatpush1.msra.mxu0 %v661
        %1781 = vmatprep.subr.mxu0 %v667
        %1782 = vmatpush1.msra.mxu0 %v666
        %1783 = vmatprep.subr.mxu0 %v672
        %1784 = vmatpush1.msra.mxu0 %v671
        %1785 = vmatprep.subr.mxu0 %v677
        %1786 = vmatpush1.msra.mxu0 %v676
        %1787 = vmatprep.subr.mxu0 0.0
        %1788 = vmatpush1.msra.mxu0 0.0
        %1789 = vmatprep.subr.mxu0 0.0
        %1790 = vmatpush1.msra.mxu0 0.0
        %1791 = vmatprep.subr.mxu0 0.0
        %1792 = vmatpush1.msra.mxu0 0.0
        %1793 = vmatprep.subr.mxu0 0.0
        %1794 = vmatpush1.msra.mxu0 0.0
        %1795 = vmatprep.subr.mxu0 0.0
        %1796 = vmatpush1.msra.mxu0 0.0
        %1797 = vmatprep.subr.mxu0 0.0
        %1798 = vmatpush1.msra.mxu0 0.0
        %1799 = vmatprep.subr.mxu0 0.0
        %1800 = vmatpush1.msra.mxu0 0.0
        %1801 = vmatprep.subr.mxu0 0.0
        %1802 = vmatpush1.msra.mxu0 0.0
        %1803 = vmatprep.subr.mxu0 0.0
        %1804 = vmatpush1.msra.mxu0 0.0
        %1805 = vmatprep.subr.mxu0 0.0
        %1806 = vmatpush1.msra.mxu0 0.0
        %1807 = vmatprep.subr.mxu0 0.0
        %1808 = vmatpush1.msra.mxu0 0.0
        %1809 = vmatprep.subr.mxu0 0.0
        %1810 = vmatpush1.msra.mxu0 0.0
        %1811 = vmatprep.subr.mxu0 0.0
        %1812 = vmatpush1.msra.mxu0 0.0
        %1813 = vmatprep.subr.mxu0 0.0
        %1814 = vmatpush1.msra.mxu0 0.0
        %1815 = vmatprep.subr.mxu0 0.0
        %1816 = vmatpush1.msra.mxu0 0.0
        %1817 = vmatprep.subr.mxu0 0.0
        %1818 = vmatpush1.msra.mxu0 0.0
        %1819 = vmatprep.mubr.f32.mxu0 0.0
        %1820 = vmatmul.mubr.f32.gmra.mrb[0].mxu0 %v535
        %v1821 = vpop.f32.mrb[0].mxu0
        %v1822 = vadd.f32 %v1083, %v1821
        %v1823 = vpop.f32.mrb[0].mxu0
        %v1824 = vadd.f32 %v1085, %v1823
        %1825 = vmatprep.mubr.f32.mxu0 0.0
        %1826 = vmatmul.mubr.f32.gmra.mrb[0].mxu0 %v536
        %v1827 = vpop.f32.mrb[0].mxu0
        %v1828 = vadd.f32 %v1089, %v1827
        %v1829 = vpop.f32.mrb[0].mxu0
        %v1830 = vadd.f32 %v1091, %v1829
        %1831 = vmatprep.mubr.f32.mxu0 0.0
        %1832 = vmatmul.mubr.f32.gmra.mrb[0].mxu0 %v537
        %v1833 = vpop.f32.mrb[0].mxu0
        %v1834 = vadd.f32 %v1095, %v1833
        %v1835 = vpop.f32.mrb[0].mxu0
        %v1836 = vadd.f32 %v1097, %v1835
        %1837 = vmatprep.mubr.f32.mxu0 0.0
        %1838 = vmatmul.mubr.f32.gmra.mrb[0].mxu0 %v538
        %v1839 = vpop.f32.mrb[0].mxu0
        %v1840 = vadd.f32 %v1101, %v1839
        %v1841 = vpop.f32.mrb[0].mxu0
        %v1842 = vadd.f32 %v1103, %v1841
        %1843 = vmatprep.mubr.f32.mxu0 0.0
        %1844 = vmatmul.mubr.f32.gmra.mrb[0].mxu0 %v539
        %v1845 = vpop.f32.mrb[0].mxu0
        %v1846 = vadd.f32 %v1107, %v1845
        %v1847 = vpop.f32.mrb[0].mxu0
        %v1848 = vadd.f32 %v1109, %v1847
        %1849 = vmatprep.mubr.f32.mxu0 0.0
        %1850 = vmatmul.mubr.f32.gmra.mrb[0].mxu0 %v540
        %v1851 = vpop.f32.mrb[0].mxu0
        %v1852 = vadd.f32 %v1113, %v1851
        %v1853 = vpop.f32.mrb[0].mxu0
        %v1854 = vadd.f32 %v1115, %v1853
        %1855 = vmatprep.mubr.f32.mxu0 0.0
        %1856 = vmatmul.mubr.f32.gmra.mrb[0].mxu0 %v541
        %v1857 = vpop.f32.mrb[0].mxu0
        %v1858 = vadd.f32 %v1119, %v1857
        %v1859 = vpop.f32.mrb[0].mxu0
        %v1860 = vadd.f32 %v1121, %v1859
        %1861 = vmatprep.mubr.f32.mxu0 0.0
        %1862 = vmatmul.mubr.f32.gmra.mrb[0].mxu0 %v542
        %v1863 = vpop.f32.mrb[0].mxu0
        %v1864 = vadd.f32 %v1125, %v1863
        %v1865 = vpop.f32.mrb[0].mxu0
        %v1866 = vadd.f32 %v1127, %v1865
        %1867 = vmatprep.mubr.f32.mxu0 0.0
        %1868 = vmatmul.mubr.f32.gmra.mrb[0].mxu0 %v543
        %v1869 = vpop.f32.mrb[0].mxu0
        %v1870 = vadd.f32 %v1131, %v1869
        %v1871 = vpop.f32.mrb[0].mxu0
        %v1872 = vadd.f32 %v1133, %v1871
        %1873 = vmatprep.mubr.f32.mxu0 0.0
        %1874 = vmatmul.mubr.f32.gmra.mrb[0].mxu0 %v544
        %v1875 = vpop.f32.mrb[0].mxu0
        %v1876 = vadd.f32 %v1137, %v1875
        %v1877 = vpop.f32.mrb[0].mxu0
        %v1878 = vadd.f32 %v1139, %v1877
        %1879 = vmatprep.mubr.f32.mxu0 0.0
        %1880 = vmatmul.mubr.f32.gmra.mrb[0].mxu0 %v545
        %v1881 = vpop.f32.mrb[0].mxu0
        %v1882 = vadd.f32 %v1143, %v1881
        %v1883 = vpop.f32.mrb[0].mxu0
        %v1884 = vadd.f32 %v1145, %v1883
        %1885 = vmatprep.mubr.f32.mxu0 0.0
        %1886 = vmatmul.mubr.f32.gmra.mrb[0].mxu0 %v546
        %v1887 = vpop.f32.mrb[0].mxu0
        %v1888 = vadd.f32 %v1149, %v1887
        %v1889 = vpop.f32.mrb[0].mxu0
        %v1890 = vadd.f32 %v1151, %v1889
        %1891 = vmatprep.mubr.f32.mxu0 0.0
        %1892 = vmatmul.mubr.f32.gmra.mrb[0].mxu0 %v547
        %v1893 = vpop.f32.mrb[0].mxu0
        %v1894 = vadd.f32 %v1155, %v1893
        %v1895 = vpop.f32.mrb[0].mxu0
        %v1896 = vadd.f32 %v1157, %v1895
        %1897 = vmatprep.mubr.f32.mxu0 0.0
        %1898 = vmatmul.mubr.f32.gmra.mrb[0].mxu0 %v548
        %v1899 = vpop.f32.mrb[0].mxu0
        %v1900 = vadd.f32 %v1161, %v1899
        %v1901 = vpop.f32.mrb[0].mxu0
        %v1902 = vadd.f32 %v1163, %v1901
        %1903 = vmatprep.mubr.f32.mxu0 0.0
        %1904 = vmatmul.mubr.f32.gmra.mrb[0].mxu0 %v549
        %v1905 = vpop.f32.mrb[0].mxu0
        %v1906 = vadd.f32 %v1167, %v1905
        %v1907 = vpop.f32.mrb[0].mxu0
        %v1908 = vadd.f32 %v1169, %v1907
        %1909 = vmatprep.mubr.f32.mxu0 0.0
        %1910 = vmatmul.mubr.f32.gmra.mrb[0].mxu0 %v550
        %v1911 = vpop.f32.mrb[0].mxu0
        %v1912 = vadd.f32 %v1173, %v1911
        %v1913 = vpop.f32.mrb[0].mxu0
        %v1914 = vadd.f32 %v1175, %v1913
        %1915 = vmatprep.mubr.f32.mxu0 0.0
        %1916 = vmatmul.mubr.f32.gmra.mrb[0].mxu0 %v551
        %v1917 = vpop.f32.mrb[0].mxu0
        %v1918 = vadd.f32 %v1179, %v1917
        %v1919 = vpop.f32.mrb[0].mxu0
        %v1920 = vadd.f32 %v1181, %v1919
        %1921 = vmatprep.mubr.f32.mxu0 0.0
        %1922 = vmatmul.mubr.f32.gmra.mrb[0].mxu0 %v552
        %v1923 = vpop.f32.mrb[0].mxu0
        %v1924 = vadd.f32 %v1185, %v1923
        %v1925 = vpop.f32.mrb[0].mxu0
        %v1926 = vadd.f32 %v1187, %v1925
        %1927 = vmatprep.mubr.f32.mxu0 0.0
        %1928 = vmatmul.mubr.f32.gmra.mrb[0].mxu0 %v553
        %v1929 = vpop.f32.mrb[0].mxu0
        %v1930 = vadd.f32 %v1191, %v1929
        %v1931 = vpop.f32.mrb[0].mxu0
        %v1932 = vadd.f32 %v1193, %v1931
        %1933 = vmatprep.mubr.f32.mxu0 0.0
        %1934 = vmatmul.mubr.f32.gmra.mrb[0].mxu0 %v554
        %v1935 = vpop.f32.mrb[0].mxu0
        %v1936 = vadd.f32 %v1197, %v1935
        %v1937 = vpop.f32.mrb[0].mxu0
        %v1938 = vadd.f32 %v1199, %v1937
        %1939 = vmatprep.mubr.f32.mxu0 0.0
        %1940 = vmatmul.mubr.f32.gmra.mrb[0].mxu0 %v555
        %v1941 = vpop.f32.mrb[0].mxu0
        %v1942 = vadd.f32 %v1203, %v1941
        %v1943 = vpop.f32.mrb[0].mxu0
        %v1944 = vadd.f32 %v1205, %v1943
        %1945 = vmatprep.mubr.f32.mxu0 0.0
        %1946 = vmatmul.mubr.f32.gmra.mrb[0].mxu0 %v556
        %v1947 = vpop.f32.mrb[0].mxu0
        %v1948 = vadd.f32 %v1209, %v1947
        %v1949 = vpop.f32.mrb[0].mxu0
        %v1950 = vadd.f32 %v1211, %v1949
        %1951 = vmatprep.mubr.f32.mxu0 0.0
        %1952 = vmatmul.mubr.f32.gmra.mrb[0].mxu0 %v557
        %v1953 = vpop.f32.mrb[0].mxu0
        %v1954 = vadd.f32 %v1215, %v1953
        %v1955 = vpop.f32.mrb[0].mxu0
        %v1956 = vadd.f32 %v1217, %v1955
        %1957 = vmatprep.mubr.f32.mxu0 0.0
        %1958 = vmatmul.mubr.f32.gmra.mrb[0].mxu0 %v558
        %v1959 = vpop.f32.mrb[0].mxu0
        %v1960 = vadd.f32 %v1221, %v1959
        %v1961 = vpop.f32.mrb[0].mxu0
        %v1962 = vadd.f32 %v1223, %v1961
        %1963 = vmatprep.mubr.f32.mxu0 0.0
        %1964 = vmatmul.mubr.f32.gmra.mrb[0].mxu0 %v559
        %v1965 = vpop.f32.mrb[0].mxu0
        %v1966 = vadd.f32 %v1227, %v1965
        %v1967 = vpop.f32.mrb[0].mxu0
        %v1968 = vadd.f32 %v1229, %v1967
        %1969 = vmatprep.mubr.f32.mxu0 0.0
        %1970 = vmatmul.mubr.f32.gmra.mrb[0].mxu0 %v560
        %v1971 = vpop.f32.mrb[0].mxu0
        %v1972 = vadd.f32 %v1233, %v1971
        %v1973 = vpop.f32.mrb[0].mxu0
        %v1974 = vadd.f32 %v1235, %v1973
        %1975 = vmatprep.mubr.f32.mxu0 0.0
        %1976 = vmatmul.mubr.f32.gmra.mrb[0].mxu0 %v561
        %v1977 = vpop.f32.mrb[0].mxu0
        %v1978 = vadd.f32 %v1239, %v1977
        %v1979 = vpop.f32.mrb[0].mxu0
        %v1980 = vadd.f32 %v1241, %v1979
        %1981 = vmatprep.mubr.f32.mxu0 0.0
        %1982 = vmatmul.mubr.f32.gmra.mrb[0].mxu0 %v562
        %v1983 = vpop.f32.mrb[0].mxu0
        %v1984 = vadd.f32 %v1245, %v1983
        %v1985 = vpop.f32.mrb[0].mxu0
        %v1986 = vadd.f32 %v1247, %v1985
        %1987 = vmatprep.mubr.f32.mxu0 0.0
        %1988 = vmatmul.mubr.f32.gmra.mrb[0].mxu0 %v563
        %v1989 = vpop.f32.mrb[0].mxu0
        %v1990 = vadd.f32 %v1251, %v1989
        %v1991 = vpop.f32.mrb[0].mxu0
        %v1992 = vadd.f32 %v1253, %v1991
        %1993 = vmatprep.mubr.f32.mxu0 0.0
        %1994 = vmatmul.mubr.f32.gmra.mrb[0].mxu0 %v564
        %v1995 = vpop.f32.mrb[0].mxu0
        %v1996 = vadd.f32 %v1257, %v1995
        %v1997 = vpop.f32.mrb[0].mxu0
        %v1998 = vadd.f32 %v1259, %v1997
        %1999 = vmatprep.mubr.f32.mxu0 0.0
        %2000 = vmatmul.mubr.f32.gmra.mrb[0].mxu0 %v565
        %v2001 = vpop.f32.mrb[0].mxu0
        %v2002 = vadd.f32 %v1263, %v2001
        %v2003 = vpop.f32.mrb[0].mxu0
        %v2004 = vadd.f32 %v1265, %v2003
        %2005 = vmatprep.mubr.f32.mxu0 0.0
        %2006 = vmatmul.mubr.f32.gmra.mrb[0].mxu0 %v566
        %v2007 = vpop.f32.mrb[0].mxu0
        %v2008 = vadd.f32 %v1269, %v2007
        %v2009 = vpop.f32.mrb[0].mxu0
        %v2010 = vadd.f32 %v1271, %v2009
        %2011 = vdwg.mxu0
        %2012 = vmatprep.subr.mxu0 0.0
        %2013 = vmatpush1.msra.mxu0 %v603
        %2014 = vmatprep.subr.mxu0 0.0
        %2015 = vmatpush1.msra.mxu0 %v608
        %2016 = vmatprep.subr.mxu0 0.0
        %2017 = vmatpush1.msra.mxu0 %v613
        %2018 = vmatprep.subr.mxu0 0.0
        %2019 = vmatpush1.msra.mxu0 %v618
        %2020 = vmatprep.subr.mxu0 0.0
        %2021 = vmatpush1.msra.mxu0 %v623
        %2022 = vmatprep.subr.mxu0 0.0
        %2023 = vmatpush1.msra.mxu0 %v628
        %2024 = vmatprep.subr.mxu0 0.0
        %2025 = vmatpush1.msra.mxu0 %v633
        %2026 = vmatprep.subr.mxu0 0.0
        %2027 = vmatpush1.msra.mxu0 %v638
        %2028 = vmatprep.subr.mxu0 0.0
        %2029 = vmatpush1.msra.mxu0 %v643
        %2030 = vmatprep.subr.mxu0 0.0
        %2031 = vmatpush1.msra.mxu0 %v648
        %2032 = vmatprep.subr.mxu0 0.0
        %2033 = vmatpush1.msra.mxu0 %v653
        %2034 = vmatprep.subr.mxu0 0.0
        %2035 = vmatpush1.msra.mxu0 %v658
        %2036 = vmatprep.subr.mxu0 0.0
        %2037 = vmatpush1.msra.mxu0 %v663
        %2038 = vmatprep.subr.mxu0 0.0
        %2039 = vmatpush1.msra.mxu0 %v668
        %2040 = vmatprep.subr.mxu0 0.0
        %2041 = vmatpush1.msra.mxu0 %v673
        %2042 = vmatprep.subr.mxu0 0.0
        %2043 = vmatpush1.msra.mxu0 %v678
        %2044 = vmatprep.subr.mxu0 0.0
        %2045 = vmatpush1.msra.mxu0 0.0
        %2046 = vmatprep.subr.mxu0 0.0
        %2047 = vmatpush1.msra.mxu0 0.0
        %2048 = vmatprep.subr.mxu0 0.0
        %2049 = vmatpush1.msra.mxu0 0.0
        %2050 = vmatprep.subr.mxu0 0.0
        %2051 = vmatpush1.msra.mxu0 0.0
        %2052 = vmatprep.subr.mxu0 0.0
        %2053 = vmatpush1.msra.mxu0 0.0
        %2054 = vmatprep.subr.mxu0 0.0
        %2055 = vmatpush1.msra.mxu0 0.0
        %2056 = vmatprep.subr.mxu0 0.0
        %2057 = vmatpush1.msra.mxu0 0.0
        %2058 = vmatprep.subr.mxu0 0.0
        %2059 = vmatpush1.msra.mxu0 0.0
        %2060 = vmatprep.subr.mxu0 0.0
        %2061 = vmatpush1.msra.mxu0 0.0
        %2062 = vmatprep.subr.mxu0 0.0
        %2063 = vmatpush1.msra.mxu0 0.0
        %2064 = vmatprep.subr.mxu0 0.0
        %2065 = vmatpush1.msra.mxu0 0.0
        %2066 = vmatprep.subr.mxu0 0.0
        %2067 = vmatpush1.msra.mxu0 0.0
        %2068 = vmatprep.subr.mxu0 0.0
        %2069 = vmatpush1.msra.mxu0 0.0
        %2070 = vmatprep.subr.mxu0 0.0
        %2071 = vmatpush1.msra.mxu0 0.0
        %2072 = vmatprep.subr.mxu0 0.0
        %2073 = vmatpush1.msra.mxu0 0.0
        %2074 = vmatprep.subr.mxu0 0.0
        %2075 = vmatpush1.msra.mxu0 0.0
        %2076 = vmatprep.mubr.f32.mxu0 0.0
        %2077 = vmatmul.mubr.f32.gmra.mrb[0].mxu0 %v535
        %v2078 = vpop.f32.mrb[0].mxu0
        %v2079 = vadd.f32 %v1340, %v2078
        %v2080 = vpop.f32.mrb[0].mxu0
        %2081 = vmatprep.mubr.f32.mxu0 0.0
        %2082 = vmatmul.mubr.f32.gmra.mrb[0].mxu0 %v536
        %v2083 = vpop.f32.mrb[0].mxu0
        %v2084 = vadd.f32 %v1345, %v2083
        %v2085 = vpop.f32.mrb[0].mxu0
        %2086 = vmatprep.mubr.f32.mxu0 0.0
        %2087 = vmatmul.mubr.f32.gmra.mrb[0].mxu0 %v537
        %v2088 = vpop.f32.mrb[0].mxu0
        %v2089 = vadd.f32 %v1350, %v2088
        %v2090 = vpop.f32.mrb[0].mxu0
        %2091 = vmatprep.mubr.f32.mxu0 0.0
        %2092 = vmatmul.mubr.f32.gmra.mrb[0].mxu0 %v538
        %v2093 = vpop.f32.mrb[0].mxu0
        %v2094 = vadd.f32 %v1355, %v2093
        %v2095 = vpop.f32.mrb[0].mxu0
        %2096 = vmatprep.mubr.f32.mxu0 0.0
        %2097 = vmatmul.mubr.f32.gmra.mrb[0].mxu0 %v539
        %v2098 = vpop.f32.mrb[0].mxu0
        %v2099 = vadd.f32 %v1360, %v2098
        %v2100 = vpop.f32.mrb[0].mxu0
        %2101 = vmatprep.mubr.f32.mxu0 0.0
        %2102 = vmatmul.mubr.f32.gmra.mrb[0].mxu0 %v540
        %v2103 = vpop.f32.mrb[0].mxu0
        %v2104 = vadd.f32 %v1365, %v2103
        %v2105 = vpop.f32.mrb[0].mxu0
        %2106 = vmatprep.mubr.f32.mxu0 0.0
        %2107 = vmatmul.mubr.f32.gmra.mrb[0].mxu0 %v541
        %v2108 = vpop.f32.mrb[0].mxu0
        %v2109 = vadd.f32 %v1370, %v2108
        %v2110 = vpop.f32.mrb[0].mxu0
        %2111 = vmatprep.mubr.f32.mxu0 0.0
        %2112 = vmatmul.mubr.f32.gmra.mrb[0].mxu0 %v542
        %v2113 = vpop.f32.mrb[0].mxu0
        %v2114 = vadd.f32 %v1375, %v2113
        %v2115 = vpop.f32.mrb[0].mxu0
        %2116 = vmatprep.mubr.f32.mxu0 0.0
        %2117 = vmatmul.mubr.f32.gmra.mrb[0].mxu0 %v543
        %v2118 = vpop.f32.mrb[0].mxu0
        %v2119 = vadd.f32 %v1380, %v2118
        %v2120 = vpop.f32.mrb[0].mxu0
        %2121 = vmatprep.mubr.f32.mxu0 0.0
        %2122 = vmatmul.mubr.f32.gmra.mrb[0].mxu0 %v544
        %v2123 = vpop.f32.mrb[0].mxu0
        %v2124 = vadd.f32 %v1385, %v2123
        %v2125 = vpop.f32.mrb[0].mxu0
        %2126 = vmatprep.mubr.f32.mxu0 0.0
        %2127 = vmatmul.mubr.f32.gmra.mrb[0].mxu0 %v545
        %v2128 = vpop.f32.mrb[0].mxu0
        %v2129 = vadd.f32 %v1390, %v2128
        %v2130 = vpop.f32.mrb[0].mxu0
        %2131 = vmatprep.mubr.f32.mxu0 0.0
        %2132 = vmatmul.mubr.f32.gmra.mrb[0].mxu0 %v546
        %v2133 = vpop.f32.mrb[0].mxu0
        %v2134 = vadd.f32 %v1395, %v2133
        %v2135 = vpop.f32.mrb[0].mxu0
        %2136 = vmatprep.mubr.f32.mxu0 0.0
        %2137 = vmatmul.mubr.f32.gmra.mrb[0].mxu0 %v547
        %v2138 = vpop.f32.mrb[0].mxu0
        %v2139 = vadd.f32 %v1400, %v2138
        %v2140 = vpop.f32.mrb[0].mxu0
        %2141 = vmatprep.mubr.f32.mxu0 0.0
        %2142 = vmatmul.mubr.f32.gmra.mrb[0].mxu0 %v548
        %v2143 = vpop.f32.mrb[0].mxu0
        %v2144 = vadd.f32 %v1405, %v2143
        %v2145 = vpop.f32.mrb[0].mxu0
        %2146 = vmatprep.mubr.f32.mxu0 0.0
        %2147 = vmatmul.mubr.f32.gmra.mrb[0].mxu0 %v549
        %v2148 = vpop.f32.mrb[0].mxu0
        %v2149 = vadd.f32 %v1410, %v2148
        %v2150 = vpop.f32.mrb[0].mxu0
        %2151 = vmatprep.mubr.f32.mxu0 0.0
        %2152 = vmatmul.mubr.f32.gmra.mrb[0].mxu0 %v550
        %v2153 = vpop.f32.mrb[0].mxu0
        %v2154 = vadd.f32 %v1415, %v2153
        %v2155 = vpop.f32.mrb[0].mxu0
        %2156 = vmatprep.mubr.f32.mxu0 0.0
        %2157 = vmatmul.mubr.f32.gmra.mrb[0].mxu0 %v551
        %v2158 = vpop.f32.mrb[0].mxu0
        %v2159 = vadd.f32 %v1420, %v2158
        %v2160 = vpop.f32.mrb[0].mxu0
        %2161 = vmatprep.mubr.f32.mxu0 0.0
        %2162 = vmatmul.mubr.f32.gmra.mrb[0].mxu0 %v552
        %v2163 = vpop.f32.mrb[0].mxu0
        %v2164 = vadd.f32 %v1425, %v2163
        %v2165 = vpop.f32.mrb[0].mxu0
        %2166 = vmatprep.mubr.f32.mxu0 0.0
        %2167 = vmatmul.mubr.f32.gmra.mrb[0].mxu0 %v553
        %v2168 = vpop.f32.mrb[0].mxu0
        %v2169 = vadd.f32 %v1430, %v2168
        %v2170 = vpop.f32.mrb[0].mxu0
        %2171 = vmatprep.mubr.f32.mxu0 0.0
        %2172 = vmatmul.mubr.f32.gmra.mrb[0].mxu0 %v554
        %v2173 = vpop.f32.mrb[0].mxu0
        %v2174 = vadd.f32 %v1435, %v2173
        %v2175 = vpop.f32.mrb[0].mxu0
        %2176 = vmatprep.mubr.f32.mxu0 0.0
        %2177 = vmatmul.mubr.f32.gmra.mrb[0].mxu0 %v555
        %v2178 = vpop.f32.mrb[0].mxu0
        %v2179 = vadd.f32 %v1440, %v2178
        %v2180 = vpop.f32.mrb[0].mxu0
        %2181 = vmatprep.mubr.f32.mxu0 0.0
        %2182 = vmatmul.mubr.f32.gmra.mrb[0].mxu0 %v556
        %v2183 = vpop.f32.mrb[0].mxu0
        %v2184 = vadd.f32 %v1445, %v2183
        %v2185 = vpop.f32.mrb[0].mxu0
        %2186 = vmatprep.mubr.f32.mxu0 0.0
        %2187 = vmatmul.mubr.f32.gmra.mrb[0].mxu0 %v557
        %v2188 = vpop.f32.mrb[0].mxu0
        %v2189 = vadd.f32 %v1450, %v2188
        %v2190 = vpop.f32.mrb[0].mxu0
        %2191 = vmatprep.mubr.f32.mxu0 0.0
        %2192 = vmatmul.mubr.f32.gmra.mrb[0].mxu0 %v558
        %v2193 = vpop.f32.mrb[0].mxu0
        %v2194 = vadd.f32 %v1455, %v2193
        %v2195 = vpop.f32.mrb[0].mxu0
        %2196 = vmatprep.mubr.f32.mxu0 0.0
        %2197 = vmatmul.mubr.f32.gmra.mrb[0].mxu0 %v559
        %v2198 = vpop.f32.mrb[0].mxu0
        %v2199 = vadd.f32 %v1460, %v2198
        %v2200 = vpop.f32.mrb[0].mxu0
        %2201 = vmatprep.mubr.f32.mxu0 0.0
        %2202 = vmatmul.mubr.f32.gmra.mrb[0].mxu0 %v560
        %v2203 = vpop.f32.mrb[0].mxu0
        %v2204 = vadd.f32 %v1465, %v2203
        %v2205 = vpop.f32.mrb[0].mxu0
        %2206 = vmatprep.mubr.f32.mxu0 0.0
        %2207 = vmatmul.mubr.f32.gmra.mrb[0].mxu0 %v561
        %v2208 = vpop.f32.mrb[0].mxu0
        %v2209 = vadd.f32 %v1470, %v2208
        %v2210 = vpop.f32.mrb[0].mxu0
        %2211 = vmatprep.mubr.f32.mxu0 0.0
        %2212 = vmatmul.mubr.f32.gmra.mrb[0].mxu0 %v562
        %v2213 = vpop.f32.mrb[0].mxu0
        %v2214 = vadd.f32 %v1475, %v2213
        %v2215 = vpop.f32.mrb[0].mxu0
        %2216 = vmatprep.mubr.f32.mxu0 0.0
        %2217 = vmatmul.mubr.f32.gmra.mrb[0].mxu0 %v563
        %v2218 = vpop.f32.mrb[0].mxu0
        %v2219 = vadd.f32 %v1480, %v2218
        %v2220 = vpop.f32.mrb[0].mxu0
        %2221 = vmatprep.mubr.f32.mxu0 0.0
        %2222 = vmatmul.mubr.f32.gmra.mrb[0].mxu0 %v564
        %v2223 = vpop.f32.mrb[0].mxu0
        %v2224 = vadd.f32 %v1485, %v2223
        %v2225 = vpop.f32.mrb[0].mxu0
        %2226 = vmatprep.mubr.f32.mxu0 0.0
        %2227 = vmatmul.mubr.f32.gmra.mrb[0].mxu0 %v565
        %v2228 = vpop.f32.mrb[0].mxu0
        %v2229 = vadd.f32 %v1490, %v2228
        %v2230 = vpop.f32.mrb[0].mxu0
        %2231 = vmatprep.mubr.f32.mxu0 0.0
        %2232 = vmatmul.mubr.f32.gmra.mrb[0].mxu0 %v566
        %v2233 = vpop.f32.mrb[0].mxu0
        %v2234 = vadd.f32 %v1495, %v2233
        %v2235 = vpop.f32.mrb[0].mxu0
        %2236 = vdwg.mxu0
        %v2237 = vld [vmem:[%s6] sm:$0x1f]
        %v2239 = vlaneseq
        %v2240 = vshrl.u32 %v2239, 7
        %v2241 = vsub.s32 0, %v2240
        %v2242 = vrot.slane %v2237, %v2241
        %v2243 = vlaneseq
        %v2244 = vshrl.u32 %v2243, 7
        %v2245 = vsub.s32 1, %v2244
        %v2246 = vrot.slane %v2237, %v2245
        %v2247 = vlaneseq
        %v2248 = vshrl.u32 %v2247, 7
        %v2249 = vsub.s32 2, %v2248
        %v2250 = vrot.slane %v2237, %v2249
        %v2251 = vlaneseq
        %v2252 = vshrl.u32 %v2251, 7
        %v2253 = vsub.s32 3, %v2252
        %v2254 = vrot.slane %v2237, %v2253
        %v2255 = vlaneseq
        %v2256 = vshrl.u32 %v2255, 7
        %v2257 = vsub.s32 4, %v2256
        %v2258 = vrot.slane %v2237, %v2257
        %v2264 = vadd.f32 %v1565, %v2242
        %v2265 = vadd.f32 %v1567, %v2246
        %v2266 = vadd.f32 %v1822, %v2250
        %v2267 = vadd.f32 %v1824, %v2254
        %v2268 = vadd.f32 %v2079, %v2258
        %v2269 = vadd.f32 %v1571, %v2242
        %v2270 = vadd.f32 %v1573, %v2246
        %v2271 = vadd.f32 %v1828, %v2250
        %v2272 = vadd.f32 %v1830, %v2254
        %v2273 = vadd.f32 %v2084, %v2258
        %v2274 = vadd.f32 %v1577, %v2242
        %v2275 = vadd.f32 %v1579, %v2246
        %v2276 = vadd.f32 %v1834, %v2250
        %v2277 = vadd.f32 %v1836, %v2254
        %v2278 = vadd.f32 %v2089, %v2258
        %v2279 = vadd.f32 %v1583, %v2242
        %v2280 = vadd.f32 %v1585, %v2246
        %v2281 = vadd.f32 %v1840, %v2250
        %v2282 = vadd.f32 %v1842, %v2254
        %v2283 = vadd.f32 %v2094, %v2258
        %v2284 = vadd.f32 %v1589, %v2242
        %v2285 = vadd.f32 %v1591, %v2246
        %v2286 = vadd.f32 %v1846, %v2250
        %v2287 = vadd.f32 %v1848, %v2254
        %v2288 = vadd.f32 %v2099, %v2258
        %v2289 = vadd.f32 %v1595, %v2242
        %v2290 = vadd.f32 %v1597, %v2246
        %v2291 = vadd.f32 %v1852, %v2250
        %v2292 = vadd.f32 %v1854, %v2254
        %v2293 = vadd.f32 %v2104, %v2258
        %v2294 = vadd.f32 %v1601, %v2242
        %v2295 = vadd.f32 %v1603, %v2246
        %v2296 = vadd.f32 %v1858, %v2250
        %v2297 = vadd.f32 %v1860, %v2254
        %v2298 = vadd.f32 %v2109, %v2258
        %v2299 = vadd.f32 %v1607, %v2242
        %v2300 = vadd.f32 %v1609, %v2246
        %v2301 = vadd.f32 %v1864, %v2250
        %v2302 = vadd.f32 %v1866, %v2254
        %v2303 = vadd.f32 %v2114, %v2258
        %v2304 = vadd.f32 %v1613, %v2242
        %v2305 = vadd.f32 %v1615, %v2246
        %v2306 = vadd.f32 %v1870, %v2250
        %v2307 = vadd.f32 %v1872, %v2254
        %v2308 = vadd.f32 %v2119, %v2258
        %v2309 = vadd.f32 %v1619, %v2242
        %v2310 = vadd.f32 %v1621, %v2246
        %v2311 = vadd.f32 %v1876, %v2250
        %v2312 = vadd.f32 %v1878, %v2254
        %v2313 = vadd.f32 %v2124, %v2258
        %v2314 = vadd.f32 %v1625, %v2242
        %v2315 = vadd.f32 %v1627, %v2246
        %v2316 = vadd.f32 %v1882, %v2250
        %v2317 = vadd.f32 %v1884, %v2254
        %v2318 = vadd.f32 %v2129, %v2258
        %v2319 = vadd.f32 %v1631, %v2242
        %v2320 = vadd.f32 %v1633, %v2246
        %v2321 = vadd.f32 %v1888, %v2250
        %v2322 = vadd.f32 %v1890, %v2254
        %v2323 = vadd.f32 %v2134, %v2258
        %v2324 = vadd.f32 %v1637, %v2242
        %v2325 = vadd.f32 %v1639, %v2246
        %v2326 = vadd.f32 %v1894, %v2250
        %v2327 = vadd.f32 %v1896, %v2254
        %v2328 = vadd.f32 %v2139, %v2258
        %v2329 = vadd.f32 %v1643, %v2242
        %v2330 = vadd.f32 %v1645, %v2246
        %v2331 = vadd.f32 %v1900, %v2250
        %v2332 = vadd.f32 %v1902, %v2254
        %v2333 = vadd.f32 %v2144, %v2258
        %v2334 = vadd.f32 %v1649, %v2242
        %v2335 = vadd.f32 %v1651, %v2246
        %v2336 = vadd.f32 %v1906, %v2250
        %v2337 = vadd.f32 %v1908, %v2254
        %v2338 = vadd.f32 %v2149, %v2258
        %v2339 = vadd.f32 %v1655, %v2242
        %v2340 = vadd.f32 %v1657, %v2246
        %v2341 = vadd.f32 %v1912, %v2250
        %v2342 = vadd.f32 %v1914, %v2254
        %v2343 = vadd.f32 %v2154, %v2258
        %v2344 = vadd.f32 %v1661, %v2242
        %v2345 = vadd.f32 %v1663, %v2246
        %v2346 = vadd.f32 %v1918, %v2250
        %v2347 = vadd.f32 %v1920, %v2254
        %v2348 = vadd.f32 %v2159, %v2258
        %v2349 = vadd.f32 %v1667, %v2242
        %v2350 = vadd.f32 %v1669, %v2246
        %v2351 = vadd.f32 %v1924, %v2250
        %v2352 = vadd.f32 %v1926, %v2254
        %v2353 = vadd.f32 %v2164, %v2258
        %v2354 = vadd.f32 %v1673, %v2242
        %v2355 = vadd.f32 %v1675, %v2246
        %v2356 = vadd.f32 %v1930, %v2250
        %v2357 = vadd.f32 %v1932, %v2254
        %v2358 = vadd.f32 %v2169, %v2258
        %v2359 = vadd.f32 %v1679, %v2242
        %v2360 = vadd.f32 %v1681, %v2246
        %v2361 = vadd.f32 %v1936, %v2250
        %v2362 = vadd.f32 %v1938, %v2254
        %v2363 = vadd.f32 %v2174, %v2258
        %v2364 = vadd.f32 %v1685, %v2242
        %v2365 = vadd.f32 %v1687, %v2246
        %v2366 = vadd.f32 %v1942, %v2250
        %v2367 = vadd.f32 %v1944, %v2254
        %v2368 = vadd.f32 %v2179, %v2258
        %v2369 = vadd.f32 %v1691, %v2242
        %v2370 = vadd.f32 %v1693, %v2246
        %v2371 = vadd.f32 %v1948, %v2250
        %v2372 = vadd.f32 %v1950, %v2254
        %v2373 = vadd.f32 %v2184, %v2258
        %v2374 = vadd.f32 %v1697, %v2242
        %v2375 = vadd.f32 %v1699, %v2246
        %v2376 = vadd.f32 %v1954, %v2250
        %v2377 = vadd.f32 %v1956, %v2254
        %v2378 = vadd.f32 %v2189, %v2258
        %v2379 = vadd.f32 %v1703, %v2242
        %v2380 = vadd.f32 %v1705, %v2246
        %v2381 = vadd.f32 %v1960, %v2250
        %v2382 = vadd.f32 %v1962, %v2254
        %v2383 = vadd.f32 %v2194, %v2258
        %v2384 = vadd.f32 %v1709, %v2242
        %v2385 = vadd.f32 %v1711, %v2246
        %v2386 = vadd.f32 %v1966, %v2250
        %v2387 = vadd.f32 %v1968, %v2254
        %v2388 = vadd.f32 %v2199, %v2258
        %v2389 = vadd.f32 %v1715, %v2242
        %v2390 = vadd.f32 %v1717, %v2246
        %v2391 = vadd.f32 %v1972, %v2250
        %v2392 = vadd.f32 %v1974, %v2254
        %v2393 = vadd.f32 %v2204, %v2258
        %v2394 = vadd.f32 %v1721, %v2242
        %v2395 = vadd.f32 %v1723, %v2246
        %v2396 = vadd.f32 %v1978, %v2250
        %v2397 = vadd.f32 %v1980, %v2254
        %v2398 = vadd.f32 %v2209, %v2258
        %v2399 = vadd.f32 %v1727, %v2242
        %v2400 = vadd.f32 %v1729, %v2246
        %v2401 = vadd.f32 %v1984, %v2250
        %v2402 = vadd.f32 %v1986, %v2254
        %v2403 = vadd.f32 %v2214, %v2258
        %v2404 = vadd.f32 %v1733, %v2242
        %v2405 = vadd.f32 %v1735, %v2246
        %v2406 = vadd.f32 %v1990, %v2250
        %v2407 = vadd.f32 %v1992, %v2254
        %v2408 = vadd.f32 %v2219, %v2258
        %v2409 = vadd.f32 %v1739, %v2242
        %v2410 = vadd.f32 %v1741, %v2246
        %v2411 = vadd.f32 %v1996, %v2250
        %v2412 = vadd.f32 %v1998, %v2254
        %v2413 = vadd.f32 %v2224, %v2258
        %v2414 = vadd.f32 %v1745, %v2242
        %v2415 = vadd.f32 %v1747, %v2246
        %v2416 = vadd.f32 %v2002, %v2250
        %v2417 = vadd.f32 %v2004, %v2254
        %v2418 = vadd.f32 %v2229, %v2258
        %v2419 = vadd.f32 %v1751, %v2242
        %v2420 = vadd.f32 %v1753, %v2246
        %v2421 = vadd.f32 %v2008, %v2250
        %v2422 = vadd.f32 %v2010, %v2254
        %v2423 = vadd.f32 %v2234, %v2258
        %v2424 = vtanh.pop %v2264
        %v2425 = vtanh.pop %v2269
        %v2426 = vtanh.pop %v2274
        %v2427 = vtanh.pop %v2279
        %v2428 = vtanh.pop %v2284
        %v2429 = vtanh.pop %v2289
        %v2430 = vtanh.pop %v2294
        %v2431 = vtanh.pop %v2299
        %v2432 = vtanh.pop %v2304
        %v2433 = vtanh.pop %v2309
        %v2434 = vtanh.pop %v2314
        %v2435 = vtanh.pop %v2319
        %v2436 = vtanh.pop %v2324
        %v2437 = vtanh.pop %v2329
        %v2438 = vtanh.pop %v2334
        %v2439 = vtanh.pop %v2339
        %v2440 = vtanh.pop %v2344
        %v2441 = vtanh.pop %v2349
        %v2442 = vtanh.pop %v2354
        %v2443 = vtanh.pop %v2359
        %v2444 = vtanh.pop %v2364
        %v2445 = vtanh.pop %v2369
        %v2446 = vtanh.pop %v2374
        %v2447 = vtanh.pop %v2379
        %v2448 = vtanh.pop %v2384
        %v2449 = vtanh.pop %v2389
        %v2450 = vtanh.pop %v2394
        %v2451 = vtanh.pop %v2399
        %v2452 = vtanh.pop %v2404
        %v2453 = vtanh.pop %v2409
        %v2454 = vtanh.pop %v2414
        %v2455 = vtanh.pop %v2419
        %v2456 = vmul.f32 %v2265, 0.5
        %v2457 = vmul.f32 %v2270, 0.5
        %v2458 = vmul.f32 %v2275, 0.5
        %v2459 = vmul.f32 %v2280, 0.5
        %v2460 = vmul.f32 %v2285, 0.5
        %v2461 = vmul.f32 %v2290, 0.5
        %v2462 = vmul.f32 %v2295, 0.5
        %v2463 = vmul.f32 %v2300, 0.5
        %v2464 = vmul.f32 %v2305, 0.5
        %v2465 = vmul.f32 %v2310, 0.5
        %v2466 = vmul.f32 %v2315, 0.5
        %v2467 = vmul.f32 %v2320, 0.5
        %v2468 = vmul.f32 %v2325, 0.5
        %v2469 = vmul.f32 %v2330, 0.5
        %v2470 = vmul.f32 %v2335, 0.5
        %v2471 = vmul.f32 %v2340, 0.5
        %v2472 = vmul.f32 %v2345, 0.5
        %v2473 = vmul.f32 %v2350, 0.5
        %v2474 = vmul.f32 %v2355, 0.5
        %v2475 = vmul.f32 %v2360, 0.5
        %v2476 = vmul.f32 %v2365, 0.5
        %v2477 = vmul.f32 %v2370, 0.5
        %v2478 = vmul.f32 %v2375, 0.5
        %v2479 = vmul.f32 %v2380, 0.5
        %v2480 = vmul.f32 %v2385, 0.5
        %v2481 = vmul.f32 %v2390, 0.5
        %v2482 = vmul.f32 %v2395, 0.5
        %v2483 = vmul.f32 %v2400, 0.5
        %v2484 = vmul.f32 %v2405, 0.5
        %v2485 = vmul.f32 %v2410, 0.5
        %v2486 = vmul.f32 %v2415, 0.5
        %v2487 = vmul.f32 %v2420, 0.5
        %v2488 = vtanh.pop %v2456
        %v2489 = vtanh.pop %v2457
        %v2490 = vtanh.pop %v2458
        %v2491 = vtanh.pop %v2459
        %v2492 = vtanh.pop %v2460
        %v2493 = vtanh.pop %v2461
        %v2494 = vtanh.pop %v2462
        %v2495 = vtanh.pop %v2463
        %v2496 = vtanh.pop %v2464
        %v2497 = vtanh.pop %v2465
        %v2498 = vtanh.pop %v2466
        %v2499 = vtanh.pop %v2467
        %v2500 = vtanh.pop %v2468
        %v2501 = vtanh.pop %v2469
        %v2502 = vtanh.pop %v2470
        %v2503 = vtanh.pop %v2471
        %v2504 = vtanh.pop %v2472
        %v2505 = vtanh.pop %v2473
        %v2506 = vtanh.pop %v2474
        %v2507 = vtanh.pop %v2475
        %v2508 = vtanh.pop %v2476
        %v2509 = vtanh.pop %v2477
        %v2510 = vtanh.pop %v2478
        %v2511 = vtanh.pop %v2479
        %v2512 = vtanh.pop %v2480
        %v2513 = vtanh.pop %v2481
        %v2514 = vtanh.pop %v2482
        %v2515 = vtanh.pop %v2483
        %v2516 = vtanh.pop %v2484
        %v2517 = vtanh.pop %v2485
        %v2518 = vtanh.pop %v2486
        %v2519 = vtanh.pop %v2487
        %v2520 = vadd.f32 %v2488, 1.0
        %v2521 = vadd.f32 %v2489, 1.0
        %v2522 = vadd.f32 %v2490, 1.0
        %v2523 = vadd.f32 %v2491, 1.0
        %v2524 = vadd.f32 %v2492, 1.0
        %v2525 = vadd.f32 %v2493, 1.0
        %v2526 = vadd.f32 %v2494, 1.0
        %v2527 = vadd.f32 %v2495, 1.0
        %v2528 = vadd.f32 %v2496, 1.0
        %v2529 = vadd.f32 %v2497, 1.0
        %v2530 = vadd.f32 %v2498, 1.0
        %v2531 = vadd.f32 %v2499, 1.0
        %v2532 = vadd.f32 %v2500, 1.0
        %v2533 = vadd.f32 %v2501, 1.0
        %v2534 = vadd.f32 %v2502, 1.0
        %v2535 = vadd.f32 %v2503, 1.0
        %v2536 = vadd.f32 %v2504, 1.0
        %v2537 = vadd.f32 %v2505, 1.0
        %v2538 = vadd.f32 %v2506, 1.0
        %v2539 = vadd.f32 %v2507, 1.0
        %v2540 = vadd.f32 %v2508, 1.0
        %v2541 = vadd.f32 %v2509, 1.0
        %v2542 = vadd.f32 %v2510, 1.0
        %v2543 = vadd.f32 %v2511, 1.0
        %v2544 = vadd.f32 %v2512, 1.0
        %v2545 = vadd.f32 %v2513, 1.0
        %v2546 = vadd.f32 %v2514, 1.0
        %v2547 = vadd.f32 %v2515, 1.0
        %v2548 = vadd.f32 %v2516, 1.0
        %v2549 = vadd.f32 %v2517, 1.0
        %v2550 = vadd.f32 %v2518, 1.0
        %v2551 = vadd.f32 %v2519, 1.0
        %v2552 = vmul.f32 %v2520, 0.5
        %v2553 = vmul.f32 %v2521, 0.5
        %v2554 = vmul.f32 %v2522, 0.5
        %v2555 = vmul.f32 %v2523, 0.5
        %v2556 = vmul.f32 %v2524, 0.5
        %v2557 = vmul.f32 %v2525, 0.5
        %v2558 = vmul.f32 %v2526, 0.5
        %v2559 = vmul.f32 %v2527, 0.5
        %v2560 = vmul.f32 %v2528, 0.5
        %v2561 = vmul.f32 %v2529, 0.5
        %v2562 = vmul.f32 %v2530, 0.5
        %v2563 = vmul.f32 %v2531, 0.5
        %v2564 = vmul.f32 %v2532, 0.5
        %v2565 = vmul.f32 %v2533, 0.5
        %v2566 = vmul.f32 %v2534, 0.5
        %v2567 = vmul.f32 %v2535, 0.5
        %v2568 = vmul.f32 %v2536, 0.5
        %v2569 = vmul.f32 %v2537, 0.5
        %v2570 = vmul.f32 %v2538, 0.5
        %v2571 = vmul.f32 %v2539, 0.5
        %v2572 = vmul.f32 %v2540, 0.5
        %v2573 = vmul.f32 %v2541, 0.5
        %v2574 = vmul.f32 %v2542, 0.5
        %v2575 = vmul.f32 %v2543, 0.5
        %v2576 = vmul.f32 %v2544, 0.5
        %v2577 = vmul.f32 %v2545, 0.5
        %v2578 = vmul.f32 %v2546, 0.5
        %v2579 = vmul.f32 %v2547, 0.5
        %v2580 = vmul.f32 %v2548, 0.5
        %v2581 = vmul.f32 %v2549, 0.5
        %v2582 = vmul.f32 %v2550, 0.5
        %v2583 = vmul.f32 %v2551, 0.5
        %v2584 = vmul.f32 %v2424, %v2552
        %v2585 = vmul.f32 %v2425, %v2553
        %v2586 = vmul.f32 %v2426, %v2554
        %v2587 = vmul.f32 %v2427, %v2555
        %v2588 = vmul.f32 %v2428, %v2556
        %v2589 = vmul.f32 %v2429, %v2557
        %v2590 = vmul.f32 %v2430, %v2558
        %v2591 = vmul.f32 %v2431, %v2559
        %v2592 = vmul.f32 %v2432, %v2560
        %v2593 = vmul.f32 %v2433, %v2561
        %v2594 = vmul.f32 %v2434, %v2562
        %v2595 = vmul.f32 %v2435, %v2563
        %v2596 = vmul.f32 %v2436, %v2564
        %v2597 = vmul.f32 %v2437, %v2565
        %v2598 = vmul.f32 %v2438, %v2566
        %v2599 = vmul.f32 %v2439, %v2567
        %v2600 = vmul.f32 %v2440, %v2568
        %v2601 = vmul.f32 %v2441, %v2569
        %v2602 = vmul.f32 %v2442, %v2570
        %v2603 = vmul.f32 %v2443, %v2571
        %v2604 = vmul.f32 %v2444, %v2572
        %v2605 = vmul.f32 %v2445, %v2573
        %v2606 = vmul.f32 %v2446, %v2574
        %v2607 = vmul.f32 %v2447, %v2575
        %v2608 = vmul.f32 %v2448, %v2576
        %v2609 = vmul.f32 %v2449, %v2577
        %v2610 = vmul.f32 %v2450, %v2578
        %v2611 = vmul.f32 %v2451, %v2579
        %v2612 = vmul.f32 %v2452, %v2580
        %v2613 = vmul.f32 %v2453, %v2581
        %v2614 = vmul.f32 %v2454, %v2582
        %v2615 = vmul.f32 %v2455, %v2583
        %v2616 = vmul.f32 %v2266, 0.5
        %v2617 = vmul.f32 %v2271, 0.5
        %v2618 = vmul.f32 %v2276, 0.5
        %v2619 = vmul.f32 %v2281, 0.5
        %v2620 = vmul.f32 %v2286, 0.5
        %v2621 = vmul.f32 %v2291, 0.5
        %v2622 = vmul.f32 %v2296, 0.5
        %v2623 = vmul.f32 %v2301, 0.5
        %v2624 = vmul.f32 %v2306, 0.5
        %v2625 = vmul.f32 %v2311, 0.5
        %v2626 = vmul.f32 %v2316, 0.5
        %v2627 = vmul.f32 %v2321, 0.5
        %v2628 = vmul.f32 %v2326, 0.5
        %v2629 = vmul.f32 %v2331, 0.5
        %v2630 = vmul.f32 %v2336, 0.5
        %v2631 = vmul.f32 %v2341, 0.5
        %v2632 = vmul.f32 %v2346, 0.5
        %v2633 = vmul.f32 %v2351, 0.5
        %v2634 = vmul.f32 %v2356, 0.5
        %v2635 = vmul.f32 %v2361, 0.5
        %v2636 = vmul.f32 %v2366, 0.5
        %v2637 = vmul.f32 %v2371, 0.5
        %v2638 = vmul.f32 %v2376, 0.5
        %v2639 = vmul.f32 %v2381, 0.5
        %v2640 = vmul.f32 %v2386, 0.5
        %v2641 = vmul.f32 %v2391, 0.5
        %v2642 = vmul.f32 %v2396, 0.5
        %v2643 = vmul.f32 %v2401, 0.5
        %v2644 = vmul.f32 %v2406, 0.5
        %v2645 = vmul.f32 %v2411, 0.5
        %v2646 = vmul.f32 %v2416, 0.5
        %v2647 = vmul.f32 %v2421, 0.5
        %v2648 = vtanh.pop %v2616
        %v2649 = vtanh.pop %v2617
        %v2650 = vtanh.pop %v2618
        %v2651 = vtanh.pop %v2619
        %v2652 = vtanh.pop %v2620
        %v2653 = vtanh.pop %v2621
        %v2654 = vtanh.pop %v2622
        %v2655 = vtanh.pop %v2623
        %v2656 = vtanh.pop %v2624
        %v2657 = vtanh.pop %v2625
        %v2658 = vtanh.pop %v2626
        %v2659 = vtanh.pop %v2627
        %v2660 = vtanh.pop %v2628
        %v2661 = vtanh.pop %v2629
        %v2662 = vtanh.pop %v2630
        %v2663 = vtanh.pop %v2631
        %v2664 = vtanh.pop %v2632
        %v2665 = vtanh.pop %v2633
        %v2666 = vtanh.pop %v2634
        %v2667 = vtanh.pop %v2635
        %v2668 = vtanh.pop %v2636
        %v2669 = vtanh.pop %v2637
        %v2670 = vtanh.pop %v2638
        %v2671 = vtanh.pop %v2639
        %v2672 = vtanh.pop %v2640
        %v2673 = vtanh.pop %v2641
        %v2674 = vtanh.pop %v2642
        %v2675 = vtanh.pop %v2643
        %v2676 = vtanh.pop %v2644
        %v2677 = vtanh.pop %v2645
        %v2678 = vtanh.pop %v2646
        %v2679 = vtanh.pop %v2647
        %v2680 = vadd.f32 %v2648, 1.0
        %v2681 = vadd.f32 %v2649, 1.0
        %v2682 = vadd.f32 %v2650, 1.0
        %v2683 = vadd.f32 %v2651, 1.0
        %v2684 = vadd.f32 %v2652, 1.0
        %v2685 = vadd.f32 %v2653, 1.0
        %v2686 = vadd.f32 %v2654, 1.0
        %v2687 = vadd.f32 %v2655, 1.0
        %v2688 = vadd.f32 %v2656, 1.0
        %v2689 = vadd.f32 %v2657, 1.0
        %v2690 = vadd.f32 %v2658, 1.0
        %v2691 = vadd.f32 %v2659, 1.0
        %v2692 = vadd.f32 %v2660, 1.0
        %v2693 = vadd.f32 %v2661, 1.0
        %v2694 = vadd.f32 %v2662, 1.0
        %v2695 = vadd.f32 %v2663, 1.0
        %v2696 = vadd.f32 %v2664, 1.0
        %v2697 = vadd.f32 %v2665, 1.0
        %v2698 = vadd.f32 %v2666, 1.0
        %v2699 = vadd.f32 %v2667, 1.0
        %v2700 = vadd.f32 %v2668, 1.0
        %v2701 = vadd.f32 %v2669, 1.0
        %v2702 = vadd.f32 %v2670, 1.0
        %v2703 = vadd.f32 %v2671, 1.0
        %v2704 = vadd.f32 %v2672, 1.0
        %v2705 = vadd.f32 %v2673, 1.0
        %v2706 = vadd.f32 %v2674, 1.0
        %v2707 = vadd.f32 %v2675, 1.0
        %v2708 = vadd.f32 %v2676, 1.0
        %v2709 = vadd.f32 %v2677, 1.0
        %v2710 = vadd.f32 %v2678, 1.0
        %v2711 = vadd.f32 %v2679, 1.0
        %v2712 = vmul.f32 %v2680, 0.5
        %v2713 = vmul.f32 %v2681, 0.5
        %v2714 = vmul.f32 %v2682, 0.5
        %v2715 = vmul.f32 %v2683, 0.5
        %v2716 = vmul.f32 %v2684, 0.5
        %v2717 = vmul.f32 %v2685, 0.5
        %v2718 = vmul.f32 %v2686, 0.5
        %v2719 = vmul.f32 %v2687, 0.5
        %v2720 = vmul.f32 %v2688, 0.5
        %v2721 = vmul.f32 %v2689, 0.5
        %v2722 = vmul.f32 %v2690, 0.5
        %v2723 = vmul.f32 %v2691, 0.5
        %v2724 = vmul.f32 %v2692, 0.5
        %v2725 = vmul.f32 %v2693, 0.5
        %v2726 = vmul.f32 %v2694, 0.5
        %v2727 = vmul.f32 %v2695, 0.5
        %v2728 = vmul.f32 %v2696, 0.5
        %v2729 = vmul.f32 %v2697, 0.5
        %v2730 = vmul.f32 %v2698, 0.5
        %v2731 = vmul.f32 %v2699, 0.5
        %v2732 = vmul.f32 %v2700, 0.5
        %v2733 = vmul.f32 %v2701, 0.5
        %v2734 = vmul.f32 %v2702, 0.5
        %v2735 = vmul.f32 %v2703, 0.5
        %v2736 = vmul.f32 %v2704, 0.5
        %v2737 = vmul.f32 %v2705, 0.5
        %v2738 = vmul.f32 %v2706, 0.5
        %v2739 = vmul.f32 %v2707, 0.5
        %v2740 = vmul.f32 %v2708, 0.5
        %v2741 = vmul.f32 %v2709, 0.5
        %v2742 = vmul.f32 %v2710, 0.5
        %v2743 = vmul.f32 %v2711, 0.5
        %v2744 = vld [vmem:[%s435] sm:$0xff]
        %v2745 = vld [vmem:[%s435 + $0x8] sm:$0xff]
        %v2746 = vld [vmem:[%s435 + $0x10] sm:$0xff]
        %v2747 = vld [vmem:[%s435 + $0x18] sm:$0xff]
        %v2748 = vld [vmem:[%s435 + $0x20] sm:$0xff]
        %v2749 = vld [vmem:[%s435 + $0x28] sm:$0xff]
        %v2750 = vld [vmem:[%s435 + $0x30] sm:$0xff]
        %v2751 = vld [vmem:[%s435 + $0x38] sm:$0xff]
        %v2752 = vld [vmem:[%s435 + $0x40] sm:$0xff]
        %v2753 = vld [vmem:[%s435 + $0x48] sm:$0xff]
        %v2754 = vld [vmem:[%s435 + $0x50] sm:$0xff]
        %v2755 = vld [vmem:[%s435 + $0x58] sm:$0xff]
        %v2756 = vld [vmem:[%s435 + $0x60] sm:$0xff]
        %v2757 = vld [vmem:[%s435 + $0x68] sm:$0xff]
        %v2758 = vld [vmem:[%s435 + $0x70] sm:$0xff]
        %v2759 = vld [vmem:[%s435 + $0x78] sm:$0xff]
        %v2760 = vld [vmem:[%s435 + $0x80] sm:$0xff]
        %v2761 = vld [vmem:[%s435 + $0x88] sm:$0xff]
        %v2762 = vld [vmem:[%s435 + $0x90] sm:$0xff]
        %v2763 = vld [vmem:[%s435 + $0x98] sm:$0xff]
        %v2764 = vld [vmem:[%s435 + $0xa0] sm:$0xff]
        %v2765 = vld [vmem:[%s435 + $0xa8] sm:$0xff]
        %v2766 = vld [vmem:[%s435 + $0xb0] sm:$0xff]
        %v2767 = vld [vmem:[%s435 + $0xb8] sm:$0xff]
        %v2768 = vld [vmem:[%s435 + $0xc0] sm:$0xff]
        %v2769 = vld [vmem:[%s435 + $0xc8] sm:$0xff]
        %v2770 = vld [vmem:[%s435 + $0xd0] sm:$0xff]
        %v2771 = vld [vmem:[%s435 + $0xd8] sm:$0xff]
        %v2772 = vld [vmem:[%s435 + $0xe0] sm:$0xff]
        %v2773 = vld [vmem:[%s435 + $0xe8] sm:$0xff]
        %v2774 = vld [vmem:[%s435 + $0xf0] sm:$0xff]
        %v2775 = vld [vmem:[%s435 + $0xf8] sm:$0xff]
        %v2776 = vmul.f32 %v2712, %v2744
        %v2777 = vmul.f32 %v2713, %v2745
        %v2778 = vmul.f32 %v2714, %v2746
        %v2779 = vmul.f32 %v2715, %v2747
        %v2780 = vmul.f32 %v2716, %v2748
        %v2781 = vmul.f32 %v2717, %v2749
        %v2782 = vmul.f32 %v2718, %v2750
        %v2783 = vmul.f32 %v2719, %v2751
        %v2784 = vmul.f32 %v2720, %v2752
        %v2785 = vmul.f32 %v2721, %v2753
        %v2786 = vmul.f32 %v2722, %v2754
        %v2787 = vmul.f32 %v2723, %v2755
        %v2788 = vmul.f32 %v2724, %v2756
        %v2789 = vmul.f32 %v2725, %v2757
        %v2790 = vmul.f32 %v2726, %v2758
        %v2791 = vmul.f32 %v2727, %v2759
        %v2792 = vmul.f32 %v2728, %v2760
        %v2793 = vmul.f32 %v2729, %v2761
        %v2794 = vmul.f32 %v2730, %v2762
        %v2795 = vmul.f32 %v2731, %v2763
        %v2796 = vmul.f32 %v2732, %v2764
        %v2797 = vmul.f32 %v2733, %v2765
        %v2798 = vmul.f32 %v2734, %v2766
        %v2799 = vmul.f32 %v2735, %v2767
        %v2800 = vmul.f32 %v2736, %v2768
        %v2801 = vmul.f32 %v2737, %v2769
        %v2802 = vmul.f32 %v2738, %v2770
        %v2803 = vmul.f32 %v2739, %v2771
        %v2804 = vmul.f32 %v2740, %v2772
        %v2805 = vmul.f32 %v2741, %v2773
        %v2806 = vmul.f32 %v2742, %v2774
        %v2807 = vmul.f32 %v2743, %v2775
        %v2808 = vadd.f32 %v2584, %v2776
        %v2809 = vadd.f32 %v2585, %v2777
        %v2810 = vadd.f32 %v2586, %v2778
        %v2811 = vadd.f32 %v2587, %v2779
        %v2812 = vadd.f32 %v2588, %v2780
        %v2813 = vadd.f32 %v2589, %v2781
        %v2814 = vadd.f32 %v2590, %v2782
        %v2815 = vadd.f32 %v2591, %v2783
        %v2816 = vadd.f32 %v2592, %v2784
        %v2817 = vadd.f32 %v2593, %v2785
        %v2818 = vadd.f32 %v2594, %v2786
        %v2819 = vadd.f32 %v2595, %v2787
        %v2820 = vadd.f32 %v2596, %v2788
        %v2821 = vadd.f32 %v2597, %v2789
        %v2822 = vadd.f32 %v2598, %v2790
        %v2823 = vadd.f32 %v2599, %v2791
        %v2824 = vadd.f32 %v2600, %v2792
        %v2825 = vadd.f32 %v2601, %v2793
        %v2826 = vadd.f32 %v2602, %v2794
        %v2827 = vadd.f32 %v2603, %v2795
        %v2828 = vadd.f32 %v2604, %v2796
        %v2829 = vadd.f32 %v2605, %v2797
        %v2830 = vadd.f32 %v2606, %v2798
        %v2831 = vadd.f32 %v2607, %v2799
        %v2832 = vadd.f32 %v2608, %v2800
        %v2833 = vadd.f32 %v2609, %v2801
        %v2834 = vadd.f32 %v2610, %v2802
        %v2835 = vadd.f32 %v2611, %v2803
        %v2836 = vadd.f32 %v2612, %v2804
        %v2837 = vadd.f32 %v2613, %v2805
        %v2838 = vadd.f32 %v2614, %v2806
        %v2839 = vadd.f32 %v2615, %v2807
        %v2840 = vmul.f32 %v2267, 0.5
        %v2841 = vmul.f32 %v2272, 0.5
        %v2842 = vmul.f32 %v2277, 0.5
        %v2843 = vmul.f32 %v2282, 0.5
        %v2844 = vmul.f32 %v2287, 0.5
        %v2845 = vmul.f32 %v2292, 0.5
        %v2846 = vmul.f32 %v2297, 0.5
        %v2847 = vmul.f32 %v2302, 0.5
        %v2848 = vmul.f32 %v2307, 0.5
        %v2849 = vmul.f32 %v2312, 0.5
        %v2850 = vmul.f32 %v2317, 0.5
        %v2851 = vmul.f32 %v2322, 0.5
        %v2852 = vmul.f32 %v2327, 0.5
        %v2853 = vmul.f32 %v2332, 0.5
        %v2854 = vmul.f32 %v2337, 0.5
        %v2855 = vmul.f32 %v2342, 0.5
        %v2856 = vmul.f32 %v2347, 0.5
        %v2857 = vmul.f32 %v2352, 0.5
        %v2858 = vmul.f32 %v2357, 0.5
        %v2859 = vmul.f32 %v2362, 0.5
        %v2860 = vmul.f32 %v2367, 0.5
        %v2861 = vmul.f32 %v2372, 0.5
        %v2862 = vmul.f32 %v2377, 0.5
        %v2863 = vmul.f32 %v2382, 0.5
        %v2864 = vmul.f32 %v2387, 0.5
        %v2865 = vmul.f32 %v2392, 0.5
        %v2866 = vmul.f32 %v2397, 0.5
        %v2867 = vmul.f32 %v2402, 0.5
        %v2868 = vmul.f32 %v2407, 0.5
        %v2869 = vmul.f32 %v2412, 0.5
        %v2870 = vmul.f32 %v2417, 0.5
        %v2871 = vmul.f32 %v2422, 0.5
        %v2872 = vtanh.pop %v2840
        %v2873 = vtanh.pop %v2841
        %v2874 = vtanh.pop %v2842
        %v2875 = vtanh.pop %v2843
        %v2876 = vtanh.pop %v2844
        %v2877 = vtanh.pop %v2845
        %v2878 = vtanh.pop %v2846
        %v2879 = vtanh.pop %v2847
        %v2880 = vtanh.pop %v2848
        %v2881 = vtanh.pop %v2849
        %v2882 = vtanh.pop %v2850
        %v2883 = vtanh.pop %v2851
        %v2884 = vtanh.pop %v2852
        %v2885 = vtanh.pop %v2853
        %v2886 = vtanh.pop %v2854
        %v2887 = vtanh.pop %v2855
        %v2888 = vtanh.pop %v2856
        %v2889 = vtanh.pop %v2857
        %v2890 = vtanh.pop %v2858
        %v2891 = vtanh.pop %v2859
        %v2892 = vtanh.pop %v2860
        %v2893 = vtanh.pop %v2861
        %v2894 = vtanh.pop %v2862
        %v2895 = vtanh.pop %v2863
        %v2896 = vtanh.pop %v2864
        %v2897 = vtanh.pop %v2865
        %v2898 = vtanh.pop %v2866
        %v2899 = vtanh.pop %v2867
        %v2900 = vtanh.pop %v2868
        %v2901 = vtanh.pop %v2869
        %v2902 = vtanh.pop %v2870
        %v2903 = vtanh.pop %v2871
        %v2904 = vadd.f32 %v2872, 1.0
        %v2905 = vadd.f32 %v2873, 1.0
        %v2906 = vadd.f32 %v2874, 1.0
        %v2907 = vadd.f32 %v2875, 1.0
        %v2908 = vadd.f32 %v2876, 1.0
        %v2909 = vadd.f32 %v2877, 1.0
        %v2910 = vadd.f32 %v2878, 1.0
        %v2911 = vadd.f32 %v2879, 1.0
        %v2912 = vadd.f32 %v2880, 1.0
        %v2913 = vadd.f32 %v2881, 1.0
        %v2914 = vadd.f32 %v2882, 1.0
        %v2915 = vadd.f32 %v2883, 1.0
        %v2916 = vadd.f32 %v2884, 1.0
        %v2917 = vadd.f32 %v2885, 1.0
        %v2918 = vadd.f32 %v2886, 1.0
        %v2919 = vadd.f32 %v2887, 1.0
        %v2920 = vadd.f32 %v2888, 1.0
        %v2921 = vadd.f32 %v2889, 1.0
        %v2922 = vadd.f32 %v2890, 1.0
        %v2923 = vadd.f32 %v2891, 1.0
        %v2924 = vadd.f32 %v2892, 1.0
        %v2925 = vadd.f32 %v2893, 1.0
        %v2926 = vadd.f32 %v2894, 1.0
        %v2927 = vadd.f32 %v2895, 1.0
        %v2928 = vadd.f32 %v2896, 1.0
        %v2929 = vadd.f32 %v2897, 1.0
        %v2930 = vadd.f32 %v2898, 1.0
        %v2931 = vadd.f32 %v2899, 1.0
        %v2932 = vadd.f32 %v2900, 1.0
        %v2933 = vadd.f32 %v2901, 1.0
        %v2934 = vadd.f32 %v2902, 1.0
        %v2935 = vadd.f32 %v2903, 1.0
        %v2936 = vmul.f32 %v2904, 0.5
        %v2937 = vmul.f32 %v2905, 0.5
        %v2938 = vmul.f32 %v2906, 0.5
        %v2939 = vmul.f32 %v2907, 0.5
        %v2940 = vmul.f32 %v2908, 0.5
        %v2941 = vmul.f32 %v2909, 0.5
        %v2942 = vmul.f32 %v2910, 0.5
        %v2943 = vmul.f32 %v2911, 0.5
        %v2944 = vmul.f32 %v2912, 0.5
        %v2945 = vmul.f32 %v2913, 0.5
        %v2946 = vmul.f32 %v2914, 0.5
        %v2947 = vmul.f32 %v2915, 0.5
        %v2948 = vmul.f32 %v2916, 0.5
        %v2949 = vmul.f32 %v2917, 0.5
        %v2950 = vmul.f32 %v2918, 0.5
        %v2951 = vmul.f32 %v2919, 0.5
        %v2952 = vmul.f32 %v2920, 0.5
        %v2953 = vmul.f32 %v2921, 0.5
        %v2954 = vmul.f32 %v2922, 0.5
        %v2955 = vmul.f32 %v2923, 0.5
        %v2956 = vmul.f32 %v2924, 0.5
        %v2957 = vmul.f32 %v2925, 0.5
        %v2958 = vmul.f32 %v2926, 0.5
        %v2959 = vmul.f32 %v2927, 0.5
        %v2960 = vmul.f32 %v2928, 0.5
        %v2961 = vmul.f32 %v2929, 0.5
        %v2962 = vmul.f32 %v2930, 0.5
        %v2963 = vmul.f32 %v2931, 0.5
        %v2964 = vmul.f32 %v2932, 0.5
        %v2965 = vmul.f32 %v2933, 0.5
        %v2966 = vmul.f32 %v2934, 0.5
        %v2967 = vmul.f32 %v2935, 0.5
        %v2968 = vld [vmem:[%s444] sm:$0xff]
        %v2969 = vld [vmem:[%s444 + $0x8] sm:$0xff]
        %v2970 = vld [vmem:[%s444 + $0x10] sm:$0xff]
        %v2971 = vld [vmem:[%s444 + $0x18] sm:$0xff]
        %v2972 = vld [vmem:[%s444 + $0x20] sm:$0xff]
        %v2973 = vld [vmem:[%s444 + $0x28] sm:$0xff]
        %v2974 = vld [vmem:[%s444 + $0x30] sm:$0xff]
        %v2975 = vld [vmem:[%s444 + $0x38] sm:$0xff]
        %v2976 = vld [vmem:[%s444 + $0x40] sm:$0xff]
        %v2977 = vld [vmem:[%s444 + $0x48] sm:$0xff]
        %v2978 = vld [vmem:[%s444 + $0x50] sm:$0xff]
        %v2979 = vld [vmem:[%s444 + $0x58] sm:$0xff]
        %v2980 = vld [vmem:[%s444 + $0x60] sm:$0xff]
        %v2981 = vld [vmem:[%s444 + $0x68] sm:$0xff]
        %v2982 = vld [vmem:[%s444 + $0x70] sm:$0xff]
        %v2983 = vld [vmem:[%s444 + $0x78] sm:$0xff]
        %v2984 = vld [vmem:[%s444 + $0x80] sm:$0xff]
        %v2985 = vld [vmem:[%s444 + $0x88] sm:$0xff]
        %v2986 = vld [vmem:[%s444 + $0x90] sm:$0xff]
        %v2987 = vld [vmem:[%s444 + $0x98] sm:$0xff]
        %v2988 = vld [vmem:[%s444 + $0xa0] sm:$0xff]
        %v2989 = vld [vmem:[%s444 + $0xa8] sm:$0xff]
        %v2990 = vld [vmem:[%s444 + $0xb0] sm:$0xff]
        %v2991 = vld [vmem:[%s444 + $0xb8] sm:$0xff]
        %v2992 = vld [vmem:[%s444 + $0xc0] sm:$0xff]
        %v2993 = vld [vmem:[%s444 + $0xc8] sm:$0xff]
        %v2994 = vld [vmem:[%s444 + $0xd0] sm:$0xff]
        %v2995 = vld [vmem:[%s444 + $0xd8] sm:$0xff]
        %v2996 = vld [vmem:[%s444 + $0xe0] sm:$0xff]
        %v2997 = vld [vmem:[%s444 + $0xe8] sm:$0xff]
        %v2998 = vld [vmem:[%s444 + $0xf0] sm:$0xff]
        %v2999 = vld [vmem:[%s444 + $0xf8] sm:$0xff]
        %v3000 = vmul.f32 %v2936, %v2968
        %v3001 = vmul.f32 %v2937, %v2969
        %v3002 = vmul.f32 %v2938, %v2970
        %v3003 = vmul.f32 %v2939, %v2971
        %v3004 = vmul.f32 %v2940, %v2972
        %v3005 = vmul.f32 %v2941, %v2973
        %v3006 = vmul.f32 %v2942, %v2974
        %v3007 = vmul.f32 %v2943, %v2975
        %v3008 = vmul.f32 %v2944, %v2976
        %v3009 = vmul.f32 %v2945, %v2977
        %v3010 = vmul.f32 %v2946, %v2978
        %v3011 = vmul.f32 %v2947, %v2979
        %v3012 = vmul.f32 %v2948, %v2980
        %v3013 = vmul.f32 %v2949, %v2981
        %v3014 = vmul.f32 %v2950, %v2982
        %v3015 = vmul.f32 %v2951, %v2983
        %v3016 = vmul.f32 %v2952, %v2984
        %v3017 = vmul.f32 %v2953, %v2985
        %v3018 = vmul.f32 %v2954, %v2986
        %v3019 = vmul.f32 %v2955, %v2987
        %v3020 = vmul.f32 %v2956, %v2988
        %v3021 = vmul.f32 %v2957, %v2989
        %v3022 = vmul.f32 %v2958, %v2990
        %v3023 = vmul.f32 %v2959, %v2991
        %v3024 = vmul.f32 %v2960, %v2992
        %v3025 = vmul.f32 %v2961, %v2993
        %v3026 = vmul.f32 %v2962, %v2994
        %v3027 = vmul.f32 %v2963, %v2995
        %v3028 = vmul.f32 %v2964, %v2996
        %v3029 = vmul.f32 %v2965, %v2997
        %v3030 = vmul.f32 %v2966, %v2998
        %v3031 = vmul.f32 %v2967, %v2999
        %v3032 = vadd.f32 %v2808, %v3000
        %v3033 = vadd.f32 %v2809, %v3001
        %v3034 = vadd.f32 %v2810, %v3002
        %v3035 = vadd.f32 %v2811, %v3003
        %v3036 = vadd.f32 %v2812, %v3004
        %v3037 = vadd.f32 %v2813, %v3005
        %v3038 = vadd.f32 %v2814, %v3006
        %v3039 = vadd.f32 %v2815, %v3007
        %v3040 = vadd.f32 %v2816, %v3008
        %v3041 = vadd.f32 %v2817, %v3009
        %v3042 = vadd.f32 %v2818, %v3010
        %v3043 = vadd.f32 %v2819, %v3011
        %v3044 = vadd.f32 %v2820, %v3012
        %v3045 = vadd.f32 %v2821, %v3013
        %v3046 = vadd.f32 %v2822, %v3014
        %v3047 = vadd.f32 %v2823, %v3015
        %v3048 = vadd.f32 %v2824, %v3016
        %v3049 = vadd.f32 %v2825, %v3017
        %v3050 = vadd.f32 %v2826, %v3018
        %v3051 = vadd.f32 %v2827, %v3019
        %v3052 = vadd.f32 %v2828, %v3020
        %v3053 = vadd.f32 %v2829, %v3021
        %v3054 = vadd.f32 %v2830, %v3022
        %v3055 = vadd.f32 %v2831, %v3023
        %v3056 = vadd.f32 %v2832, %v3024
        %v3057 = vadd.f32 %v2833, %v3025
        %v3058 = vadd.f32 %v2834, %v3026
        %v3059 = vadd.f32 %v2835, %v3027
        %v3060 = vadd.f32 %v2836, %v3028
        %v3061 = vadd.f32 %v2837, %v3029
        %v3062 = vadd.f32 %v2838, %v3030
        %v3063 = vadd.f32 %v2839, %v3031
        %v3064 = vmul.f32 %v2268, 0.5
        %v3065 = vmul.f32 %v2273, 0.5
        %v3066 = vmul.f32 %v2278, 0.5
        %v3067 = vmul.f32 %v2283, 0.5
        %v3068 = vmul.f32 %v2288, 0.5
        %v3069 = vmul.f32 %v2293, 0.5
        %v3070 = vmul.f32 %v2298, 0.5
        %v3071 = vmul.f32 %v2303, 0.5
        %v3072 = vmul.f32 %v2308, 0.5
        %v3073 = vmul.f32 %v2313, 0.5
        %v3074 = vmul.f32 %v2318, 0.5
        %v3075 = vmul.f32 %v2323, 0.5
        %v3076 = vmul.f32 %v2328, 0.5
        %v3077 = vmul.f32 %v2333, 0.5
        %v3078 = vmul.f32 %v2338, 0.5
        %v3079 = vmul.f32 %v2343, 0.5
        %v3080 = vmul.f32 %v2348, 0.5
        %v3081 = vmul.f32 %v2353, 0.5
        %v3082 = vmul.f32 %v2358, 0.5
        %v3083 = vmul.f32 %v2363, 0.5
        %v3084 = vmul.f32 %v2368, 0.5
        %v3085 = vmul.f32 %v2373, 0.5
        %v3086 = vmul.f32 %v2378, 0.5
        %v3087 = vmul.f32 %v2383, 0.5
        %v3088 = vmul.f32 %v2388, 0.5
        %v3089 = vmul.f32 %v2393, 0.5
        %v3090 = vmul.f32 %v2398, 0.5
        %v3091 = vmul.f32 %v2403, 0.5
        %v3092 = vmul.f32 %v2408, 0.5
        %v3093 = vmul.f32 %v2413, 0.5
        %v3094 = vmul.f32 %v2418, 0.5
        %v3095 = vmul.f32 %v2423, 0.5
        %v3096 = vtanh.pop %v3064
        %v3097 = vtanh.pop %v3065
        %v3098 = vtanh.pop %v3066
        %v3099 = vtanh.pop %v3067
        %v3100 = vtanh.pop %v3068
        %v3101 = vtanh.pop %v3069
        %v3102 = vtanh.pop %v3070
        %v3103 = vtanh.pop %v3071
        %v3104 = vtanh.pop %v3072
        %v3105 = vtanh.pop %v3073
        %v3106 = vtanh.pop %v3074
        %v3107 = vtanh.pop %v3075
        %v3108 = vtanh.pop %v3076
        %v3109 = vtanh.pop %v3077
        %v3110 = vtanh.pop %v3078
        %v3111 = vtanh.pop %v3079
        %v3112 = vtanh.pop %v3080
        %v3113 = vtanh.pop %v3081
        %v3114 = vtanh.pop %v3082
        %v3115 = vtanh.pop %v3083
        %v3116 = vtanh.pop %v3084
        %v3117 = vtanh.pop %v3085
        %v3118 = vtanh.pop %v3086
        %v3119 = vtanh.pop %v3087
        %v3120 = vtanh.pop %v3088
        %v3121 = vtanh.pop %v3089
        %v3122 = vtanh.pop %v3090
        %v3123 = vtanh.pop %v3091
        %v3124 = vtanh.pop %v3092
        %v3125 = vtanh.pop %v3093
        %v3126 = vtanh.pop %v3094
        %v3127 = vtanh.pop %v3095
        %v3128 = vadd.f32 %v3096, 1.0
        %v3129 = vadd.f32 %v3097, 1.0
        %v3130 = vadd.f32 %v3098, 1.0
        %v3131 = vadd.f32 %v3099, 1.0
        %v3132 = vadd.f32 %v3100, 1.0
        %v3133 = vadd.f32 %v3101, 1.0
        %v3134 = vadd.f32 %v3102, 1.0
        %v3135 = vadd.f32 %v3103, 1.0
        %v3136 = vadd.f32 %v3104, 1.0
        %v3137 = vadd.f32 %v3105, 1.0
        %v3138 = vadd.f32 %v3106, 1.0
        %v3139 = vadd.f32 %v3107, 1.0
        %v3140 = vadd.f32 %v3108, 1.0
        %v3141 = vadd.f32 %v3109, 1.0
        %v3142 = vadd.f32 %v3110, 1.0
        %v3143 = vadd.f32 %v3111, 1.0
        %v3144 = vadd.f32 %v3112, 1.0
        %v3145 = vadd.f32 %v3113, 1.0
        %v3146 = vadd.f32 %v3114, 1.0
        %v3147 = vadd.f32 %v3115, 1.0
        %v3148 = vadd.f32 %v3116, 1.0
        %v3149 = vadd.f32 %v3117, 1.0
        %v3150 = vadd.f32 %v3118, 1.0
        %v3151 = vadd.f32 %v3119, 1.0
        %v3152 = vadd.f32 %v3120, 1.0
        %v3153 = vadd.f32 %v3121, 1.0
        %v3154 = vadd.f32 %v3122, 1.0
        %v3155 = vadd.f32 %v3123, 1.0
        %v3156 = vadd.f32 %v3124, 1.0
        %v3157 = vadd.f32 %v3125, 1.0
        %v3158 = vadd.f32 %v3126, 1.0
        %v3159 = vadd.f32 %v3127, 1.0
        %v3160 = vmul.f32 %v3128, 0.5
        %v3161 = vmul.f32 %v3129, 0.5
        %v3162 = vmul.f32 %v3130, 0.5
        %v3163 = vmul.f32 %v3131, 0.5
        %v3164 = vmul.f32 %v3132, 0.5
        %v3165 = vmul.f32 %v3133, 0.5
        %v3166 = vmul.f32 %v3134, 0.5
        %v3167 = vmul.f32 %v3135, 0.5
        %v3168 = vmul.f32 %v3136, 0.5
        %v3169 = vmul.f32 %v3137, 0.5
        %v3170 = vmul.f32 %v3138, 0.5
        %v3171 = vmul.f32 %v3139, 0.5
        %v3172 = vmul.f32 %v3140, 0.5
        %v3173 = vmul.f32 %v3141, 0.5
        %v3174 = vmul.f32 %v3142, 0.5
        %v3175 = vmul.f32 %v3143, 0.5
        %v3176 = vmul.f32 %v3144, 0.5
        %v3177 = vmul.f32 %v3145, 0.5
        %v3178 = vmul.f32 %v3146, 0.5
        %v3179 = vmul.f32 %v3147, 0.5
        %v3180 = vmul.f32 %v3148, 0.5
        %v3181 = vmul.f32 %v3149, 0.5
        %v3182 = vmul.f32 %v3150, 0.5
        %v3183 = vmul.f32 %v3151, 0.5
        %v3184 = vmul.f32 %v3152, 0.5
        %v3185 = vmul.f32 %v3153, 0.5
        %v3186 = vmul.f32 %v3154, 0.5
        %v3187 = vmul.f32 %v3155, 0.5
        %v3188 = vmul.f32 %v3156, 0.5
        %v3189 = vmul.f32 %v3157, 0.5
        %v3190 = vmul.f32 %v3158, 0.5
        %v3191 = vmul.f32 %v3159, 0.5
        %v3192 = vtanh.pop %v3032
        %v3193 = vtanh.pop %v3033
        %v3194 = vtanh.pop %v3034
        %v3195 = vtanh.pop %v3035
        %v3196 = vtanh.pop %v3036
        %v3197 = vtanh.pop %v3037
        %v3198 = vtanh.pop %v3038
        %v3199 = vtanh.pop %v3039
        %v3200 = vtanh.pop %v3040
        %v3201 = vtanh.pop %v3041
        %v3202 = vtanh.pop %v3042
        %v3203 = vtanh.pop %v3043
        %v3204 = vtanh.pop %v3044
        %v3205 = vtanh.pop %v3045
        %v3206 = vtanh.pop %v3046
        %v3207 = vtanh.pop %v3047
        %v3208 = vtanh.pop %v3048
        %v3209 = vtanh.pop %v3049
        %v3210 = vtanh.pop %v3050
        %v3211 = vtanh.pop %v3051
        %v3212 = vtanh.pop %v3052
        %v3213 = vtanh.pop %v3053
        %v3214 = vtanh.pop %v3054
        %v3215 = vtanh.pop %v3055
        %v3216 = vtanh.pop %v3056
        %v3217 = vtanh.pop %v3057
        %v3218 = vtanh.pop %v3058
        %v3219 = vtanh.pop %v3059
        %v3220 = vtanh.pop %v3060
        %v3221 = vtanh.pop %v3061
        %v3222 = vtanh.pop %v3062
        %v3223 = vtanh.pop %v3063
        %v3224 = vmul.f32 %v3160, %v3192
        %v3225 = vmul.f32 %v3161, %v3193
        %v3226 = vmul.f32 %v3162, %v3194
        %v3227 = vmul.f32 %v3163, %v3195
        %v3228 = vmul.f32 %v3164, %v3196
        %v3229 = vmul.f32 %v3165, %v3197
        %v3230 = vmul.f32 %v3166, %v3198
        %v3231 = vmul.f32 %v3167, %v3199
        %v3232 = vmul.f32 %v3168, %v3200
        %v3233 = vmul.f32 %v3169, %v3201
        %v3234 = vmul.f32 %v3170, %v3202
        %v3235 = vmul.f32 %v3171, %v3203
        %v3236 = vmul.f32 %v3172, %v3204
        %v3237 = vmul.f32 %v3173, %v3205
        %v3238 = vmul.f32 %v3174, %v3206
        %v3239 = vmul.f32 %v3175, %v3207
        %v3240 = vmul.f32 %v3176, %v3208
        %v3241 = vmul.f32 %v3177, %v3209
        %v3242 = vmul.f32 %v3178, %v3210
        %v3243 = vmul.f32 %v3179, %v3211
        %v3244 = vmul.f32 %v3180, %v3212
        %v3245 = vmul.f32 %v3181, %v3213
        %v3246 = vmul.f32 %v3182, %v3214
        %v3247 = vmul.f32 %v3183, %v3215
        %v3248 = vmul.f32 %v3184, %v3216
        %v3249 = vmul.f32 %v3185, %v3217
        %v3250 = vmul.f32 %v3186, %v3218
        %v3251 = vmul.f32 %v3187, %v3219
        %v3252 = vmul.f32 %v3188, %v3220
        %v3253 = vmul.f32 %v3189, %v3221
        %v3254 = vmul.f32 %v3190, %v3222
        %v3255 = vmul.f32 %v3191, %v3223
        %3256 = vst [vmem:[%s497] sm:$0xff] %v3224
        %3257 = vst [vmem:[%s497 + $0x8] sm:$0xff] %v3225
        %3258 = vst [vmem:[%s497 + $0x10] sm:$0xff] %v3226
        %3259 = vst [vmem:[%s497 + $0x18] sm:$0xff] %v3227
        %3260 = vst [vmem:[%s497 + $0x20] sm:$0xff] %v3228
        %3261 = vst [vmem:[%s497 + $0x28] sm:$0xff] %v3229
        %3262 = vst [vmem:[%s497 + $0x30] sm:$0xff] %v3230
        %3263 = vst [vmem:[%s497 + $0x38] sm:$0xff] %v3231
        %3264 = vst [vmem:[%s497 + $0x40] sm:$0xff] %v3232
        %3265 = vst [vmem:[%s497 + $0x48] sm:$0xff] %v3233
        %3266 = vst [vmem:[%s497 + $0x50] sm:$0xff] %v3234
        %3267 = vst [vmem:[%s497 + $0x58] sm:$0xff] %v3235
        %3268 = vst [vmem:[%s497 + $0x60] sm:$0xff] %v3236
        %3269 = vst [vmem:[%s497 + $0x68] sm:$0xff] %v3237
        %3270 = vst [vmem:[%s497 + $0x70] sm:$0xff] %v3238
        %3271 = vst [vmem:[%s497 + $0x78] sm:$0xff] %v3239
        %3272 = vst [vmem:[%s497 + $0x80] sm:$0xff] %v3240
        %3273 = vst [vmem:[%s497 + $0x88] sm:$0xff] %v3241
        %3274 = vst [vmem:[%s497 + $0x90] sm:$0xff] %v3242
        %3275 = vst [vmem:[%s497 + $0x98] sm:$0xff] %v3243
        %3276 = vst [vmem:[%s497 + $0xa0] sm:$0xff] %v3244
        %3277 = vst [vmem:[%s497 + $0xa8] sm:$0xff] %v3245
        %3278 = vst [vmem:[%s497 + $0xb0] sm:$0xff] %v3246
        %3279 = vst [vmem:[%s497 + $0xb8] sm:$0xff] %v3247
        %3280 = vst [vmem:[%s497 + $0xc0] sm:$0xff] %v3248
        %3281 = vst [vmem:[%s497 + $0xc8] sm:$0xff] %v3249
        %3282 = vst [vmem:[%s497 + $0xd0] sm:$0xff] %v3250
        %3283 = vst [vmem:[%s497 + $0xd8] sm:$0xff] %v3251
        %3284 = vst [vmem:[%s497 + $0xe0] sm:$0xff] %v3252
        %3285 = vst [vmem:[%s497 + $0xe8] sm:$0xff] %v3253
        %3286 = vst [vmem:[%s497 + $0xf0] sm:$0xff] %v3254
        %3287 = vst [vmem:[%s497 + $0xf8] sm:$0xff] %v3255
        %3288 = vst [vmem:[%s504] sm:$0xff] %v3032
        %3289 = vst [vmem:[%s504 + $0x8] sm:$0xff] %v3033
        %3290 = vst [vmem:[%s504 + $0x10] sm:$0xff] %v3034
        %3291 = vst [vmem:[%s504 + $0x18] sm:$0xff] %v3035
        %3292 = vst [vmem:[%s504 + $0x20] sm:$0xff] %v3036
        %3293 = vst [vmem:[%s504 + $0x28] sm:$0xff] %v3037
        %3294 = vst [vmem:[%s504 + $0x30] sm:$0xff] %v3038
        %3295 = vst [vmem:[%s504 + $0x38] sm:$0xff] %v3039
        %3296 = vst [vmem:[%s504 + $0x40] sm:$0xff] %v3040
        %3297 = vst [vmem:[%s504 + $0x48] sm:$0xff] %v3041
        %3298 = vst [vmem:[%s504 + $0x50] sm:$0xff] %v3042
        %3299 = vst [vmem:[%s504 + $0x58] sm:$0xff] %v3043
        %3300 = vst [vmem:[%s504 + $0x60] sm:$0xff] %v3044
        %3301 = vst [vmem:[%s504 + $0x68] sm:$0xff] %v3045
        %3302 = vst [vmem:[%s504 + $0x70] sm:$0xff] %v3046
        %3303 = vst [vmem:[%s504 + $0x78] sm:$0xff] %v3047
        %3304 = vst [vmem:[%s504 + $0x80] sm:$0xff] %v3048
        %3305 = vst [vmem:[%s504 + $0x88] sm:$0xff] %v3049
        %3306 = vst [vmem:[%s504 + $0x90] sm:$0xff] %v3050
        %3307 = vst [vmem:[%s504 + $0x98] sm:$0xff] %v3051
        %3308 = vst [vmem:[%s504 + $0xa0] sm:$0xff] %v3052
        %3309 = vst [vmem:[%s504 + $0xa8] sm:$0xff] %v3053
        %3310 = vst [vmem:[%s504 + $0xb0] sm:$0xff] %v3054
        %3311 = vst [vmem:[%s504 + $0xb8] sm:$0xff] %v3055
        %3312 = vst [vmem:[%s504 + $0xc0] sm:$0xff] %v3056
        %3313 = vst [vmem:[%s504 + $0xc8] sm:$0xff] %v3057
        %3314 = vst [vmem:[%s504 + $0xd0] sm:$0xff] %v3058
        %3315 = vst [vmem:[%s504 + $0xd8] sm:$0xff] %v3059
        %3316 = vst [vmem:[%s504 + $0xe0] sm:$0xff] %v3060
        %3317 = vst [vmem:[%s504 + $0xe8] sm:$0xff] %v3061
        %3318 = vst [vmem:[%s504 + $0xf0] sm:$0xff] %v3062
        %3319 = vst [vmem:[%s504 + $0xf8] sm:$0xff] %v3063
        %s3320 = sand.u32 %s211, 1
        %s3321 = scalar_lea.sflag [#allocation4], %s3320
        %s3322 = sand.u32 %s211, 1
        %s3323 = smul.addr %s3322, 256
        %s3324 = scalar_lea.vmem [#allocation13], %s3323
        %s3325 = sand.u32 %s237, 1
        %s3326 = scalar_lea.sflag [#allocation15], %s3325
        %s3327 = sand.u32 %s237, 1
        %s3328 = smul.addr %s3327, 256
        %s3329 = scalar_lea.vmem [#allocation14], %s3328
        // Predicated region
        $region73: #{tpu_custom_call.1} parent=47 // pred_check
          %p3330 = pneg %p221
        $region74: #{tpu_custom_call.1} parent=47 // pred_check_branch
          %3332 = sbr.rel (%p3330) target = $region76
        $region75: #{tpu_custom_call.1} parent=47 // pred_region
          %s3333 = smul.u32 32, %s36
          %s3334 = ssub.s32 125, %s3333
          %p3335 = scmp.lt.s32.totalorder %s3334, 32
          %s3336 = scalar_select %p3335, %s3334, 32
          %s3337 = smul.u32 128, %s3336
          %s3339 = ssub.s32 4096, %s3337
          %3340 = vsyncadd %s3321, %s3339
          %p3341 = scmp.ne.s32.totalorder 0, %s3337
          %s3342 = smul.addr %s3333, 128
          %s3343 = scalar_lea.hbm %s7, %s3342
          %s3344 = smul.u32 8, %s3336
          %s3345 = sshll.u32 %s3324, 4
          %s3346 = int_to_ptr.vmem [resolvable:$true] %s3345
          %s3347 = sshll.u32 %s3344, 4
          %3351 = dma.vmem_to_hbm [thread:$0]  (%p3341), %s3346, %s3347, %s3343, %s3321, 128, 128, 8
        $region76: #{tpu_custom_call.1} parent=47 // pred_fallthru
          _
        // Predicated region
        $region77: #{tpu_custom_call.1} parent=47 // pred_check
          %p3352 = pneg %p247
        $region78: #{tpu_custom_call.1} parent=47 // pred_check_branch
          %3354 = sbr.rel (%p3352) target = $region80
        $region79: #{tpu_custom_call.1} parent=47 // pred_region
          %s3355 = smul.u32 32, %s36
          %s3356 = ssub.s32 125, %s3355
          %p3357 = scmp.lt.s32.totalorder %s3356, 32
          %s3358 = scalar_select %p3357, %s3356, 32
          %s3359 = smul.u32 128, %s3358
          %s3361 = ssub.s32 4096, %s3359
          %3362 = vsyncadd %s3326, %s3361
          %p3363 = scmp.ne.s32.totalorder 0, %s3359
          %s3364 = smul.addr %s3355, 128
          %s3365 = scalar_lea.hbm %s8, %s3364
          %s3366 = smul.u32 8, %s3358
          %s3367 = sshll.u32 %s3329, 4
          %s3368 = int_to_ptr.vmem [resolvable:$true] %s3367
          %s3369 = sshll.u32 %s3366, 4
          %3373 = dma.vmem_to_hbm [thread:$0]  (%p3363), %s3368, %s3369, %s3365, %s3326, 128, 128, 8
        $region80: #{tpu_custom_call.1} parent=47 // pred_fallthru
          _
      $region48: #{tpu_custom_call.1} parent=5 // pred_fallthru
        _
      %p3374 = scmp.le.s32.totalorder 2, %s31
      // Predicated region
      $region81: #{tpu_custom_call.1} parent=5 // pred_check
        %p3375 = pneg %p3374
      $region82: #{tpu_custom_call.1} parent=5 // pred_check_branch
        %3377 = sbr.rel (%p3375) target = $region84
      $region83: #{tpu_custom_call.1} parent=5 // pred_region
        %s3378 = ssub.s32 %s31, 2
        // Predicated region
        $region85: #{tpu_custom_call.1} parent=83 // pred_check
          %p3379 = pneg %p227
        $region86: #{tpu_custom_call.1} parent=83 // pred_check_branch
          %3381 = sbr.rel (%p3379) target = $region88
        $region87: #{tpu_custom_call.1} parent=83 // pred_region
          %s3382 = sand.u32 %s212, 1
          %s3383 = scalar_lea.sflag [#allocation4], %s3382
          %s3384 = sand.u32 %s212, 1
          %s3385 = smul.addr %s3384, 256
          %s3386 = scalar_lea.vmem [#allocation13], %s3385
          %3387 = dma.done %s3383, 4096
        $region88: #{tpu_custom_call.1} parent=83 // pred_fallthru
          _
        // Predicated region
        $region89: #{tpu_custom_call.1} parent=83 // pred_check
          %p3388 = pneg %p253
        $region90: #{tpu_custom_call.1} parent=83 // pred_check_branch
          %3390 = sbr.rel (%p3388) target = $region92
        $region91: #{tpu_custom_call.1} parent=83 // pred_region
          %s3391 = sand.u32 %s238, 1
          %s3392 = scalar_lea.sflag [#allocation15], %s3391
          %s3393 = sand.u32 %s238, 1
          %s3394 = smul.addr %s3393, 256
          %s3395 = scalar_lea.vmem [#allocation14], %s3394
          %3396 = dma.done %s3392, 4096
        $region92: #{tpu_custom_call.1} parent=83 // pred_fallthru
          _
      $region84: #{tpu_custom_call.1} parent=5 // pred_fallthru
        _
    $region6: #{tpu_custom_call.1} parent=1 // loop_footer
      %s35 = sadd.s32 1, %s31
    $region7: #{tpu_custom_call.1} parent=1 // loop_footer_branch
      %30 = sbr.rel target = $region3
    $region8: #{tpu_custom_call.1} parent=1 // loop_exit
      _
    %3397 = vsyncpa [#allocation3], 1
    %s3398 = scalar_lea.sflag [#allocation3], 1
    %3399 = vsyncpa %s3398, 1
    %3400 = vsyncpa [#allocation6], 1
    %s3401 = scalar_lea.sflag [#allocation6], 1
    %3402 = vsyncpa %s3401, 1
    %3403 = vsyncpa [#allocation9], 1
    %s3404 = scalar_lea.sflag [#allocation9], 1
    %3405 = vsyncpa %s3404, 1
    %3406 = vsyncpa [#allocation12], 1
    %3407 = vsyncpa [#allocation4], 1
    %s3408 = scalar_lea.sflag [#allocation4], 1
    %3409 = vsyncpa %s3408, 1
    %3410 = vsyncpa [#allocation15], 1
    %s3411 = scalar_lea.sflag [#allocation15], 1
    %3412 = vsyncpa %s3411, 1

</llo_original>
